<compile_context>
chip_gen: v6e
topology: v6e:2x2x1
jax: 0.10.0
libtpu: 0.0.40
codegen_flags: <defaults>
</compile_context>

<pallas_src>
import math
import functools

import jax
import jax.numpy as jnp
from jax.experimental import pallas as pl
from jax.experimental.pallas import tpu as pltpu

_NEG = -1e9                      # finite "-inf": no NaN on fully-masked rows
_ACT_DTYPE = jnp.bfloat16        # activations / matmul operands
_WEIGHT_DTYPE = jnp.bfloat16     # matmul weights (biases / LN params stay f32)


def _compute_vmem_limit():
    # ~3/4 of physical VMEM: 96 MiB on v5e/v6e (128 MiB), 48 MiB on v7x (64 MiB).
    cap = 64 * 1024 * 1024
    try:
        info = pltpu.get_tpu_info()
        cap = int(getattr(info, "vmem_capacity_bytes", cap))
    except Exception:
        pass
    return int(min(cap * 3 // 4, 100 * 1024 * 1024))


_VMEM_LIMIT = _compute_vmem_limit()


# ----------------------------------------------------------------------------
# helpers
# ----------------------------------------------------------------------------
def _round_up(x: int, m: int) -> int:
    return ((x + m - 1) // m) * m


def _pad2d(x, rows, cols):
    r, c = x.shape
    if r == rows and c == cols:
        return x
    return jnp.pad(x, ((0, rows - r), (0, cols - c)))


def _cparams(sem):
    return pltpu.CompilerParams(dimension_semantics=sem,
                                vmem_limit_bytes=_VMEM_LIMIT)


def _layernorm_rows(y, g, b, d_valid, out_dtype):
    """Row-wise LayerNorm of f32 y over its (possibly zero-padded) last dim."""
    width = y.shape[-1]
    if d_valid == width:
        mean = jnp.mean(y, axis=-1, keepdims=True)
        cent = y - mean
        var = jnp.mean(cent * cent, axis=-1, keepdims=True)
    else:
        col = jax.lax.broadcasted_iota(jnp.int32, y.shape, 1)
        valid = col < d_valid
        y = jnp.where(valid, y, 0.0)
        mean = jnp.sum(y, axis=-1, keepdims=True) / d_valid
        cent = jnp.where(valid, y - mean, 0.0)
        var = jnp.sum(cent * cent, axis=-1, keepdims=True) / d_valid
    inv = jax.lax.rsqrt(var + 1e-5)              # PyTorch nn.LayerNorm eps
    return (cent * inv * g + b).astype(out_dtype)


# ----------------------------------------------------------------------------
# Pallas kernels
# ----------------------------------------------------------------------------
def _matmul_bias_kernel(x_ref, w_ref, b_ref, o_ref, acc_ref):
    @pl.when(pl.program_id(2) == 0)
    def _():
        acc_ref[...] = jnp.zeros_like(acc_ref)

    acc_ref[...] += jnp.dot(x_ref[...], w_ref[...],
                            preferred_element_type=jnp.float32)

    @pl.when(pl.program_id(2) == pl.num_programs(2) - 1)
    def _():
        o_ref[...] = (acc_ref[...] + b_ref[...]).astype(o_ref.dtype)


def _matmul_bias_add_ln_kernel(x_ref, w_ref, b_ref, r_ref, g_ref, be_ref,
                               o_ref, acc_ref, *, d_valid):
    """out = LayerNorm(x @ w + b + res); grid = (M blocks, K blocks)."""
    @pl.when(pl.program_id(1) == 0)
    def _():
        acc_ref[...] = jnp.zeros_like(acc_ref)

    acc_ref[...] += jnp.dot(x_ref[...], w_ref[...],
                            preferred_element_type=jnp.float32)

    @pl.when(pl.program_id(1) == pl.num_programs(1) - 1)
    def _():
        y = acc_ref[...] + b_ref[...] + r_ref[...].astype(jnp.float32)
        o_ref[...] = _layernorm_rows(y, g_ref[...], be_ref[...],
                                     d_valid, o_ref.dtype)


def _ffn_add_ln_kernel(x_ref, w1_ref, b1_ref, w2_ref, b2_ref, r_ref, g_ref,
                       be_ref, o_ref, acc_ref, *, d_valid):
    """out = LayerNorm(relu(x@w1+b1)@w2 + b2 + res); grid = (M blocks, Dff blocks)."""
    j = pl.program_id(1)

    @pl.when(j == 0)
    def _():
        acc_ref[...] = jnp.zeros_like(acc_ref)

    x = x_ref[...]
    h = jnp.dot(x, w1_ref[...], preferred_element_type=jnp.float32) + b1_ref[...]
    h = jnp.maximum(h, 0.0)                       # ReLU (f32)
    acc_ref[...] += jnp.dot(h.astype(x.dtype), w2_ref[...],
                            preferred_element_type=jnp.float32)

    @pl.when(j == pl.num_programs(1) - 1)
    def _():
        y = acc_ref[...] + b2_ref[...] + r_ref[...].astype(jnp.float32)
        o_ref[...] = _layernorm_rows(y, g_ref[...], be_ref[...],
                                     d_valid, o_ref.dtype)


def _mha_kernel(m_ref, q_ref, k_ref, v_ref, o_ref, *, heads, scale, causal):
    # Blocks: q (1,tq,D), k/v (1,Skp,D), mask (1,1,Skp), out (1,tq,D).
    # Scale folded into q once (f32 mul, then back to bf16 for the MXU).
    q = (q_ref[0].astype(jnp.float32) * scale).astype(q_ref.dtype)   # (tq, D)
    k = k_ref[0]                                                     # (Skp, D)
    v = v_ref[0]                                                     # (Skp, D)
    key_mask = m_ref[0]                                              # (1, Skp) f32

    Sq, D = q.shape
    Sk = k.shape[0]
    dk = D // heads

    if causal:
        q_base = pl.program_id(1) * Sq
        row = jax.lax.broadcasted_iota(jnp.int32, (Sq, Sk), 0) + q_base
        col = jax.lax.broadcasted_iota(jnp.int32, (Sq, Sk), 1)
        mask = key_mask + jnp.where(col <= row, 0.0, _NEG).astype(jnp.float32)
    else:
        mask = key_mask                      # (1, Sk): broadcasts on the add

    # TODO(synk): for large models put heads on the grid (pre-arranged
    # (B,H,S,dk) layout) so the DMA does the per-head slicing; with tiny dk the
    # in-kernel static loop avoids an HBM relayout and is kept here.
    outs = []
    for h in range(heads):                   # static unrolled loop over heads
        sl = slice(h * dk, (h + 1) * dk)
        s = jax.lax.dot_general(q[:, sl], k[:, sl],
                                (((1,), (1,)), ((), ())),
                                preferred_element_type=jnp.float32)
        s = s + mask                         # single combined additive mask
        m = jnp.max(s, axis=-1, keepdims=True)      # finite (masks are -1e9)
        p = jnp.exp(s - m)
        denom = jnp.sum(p, axis=-1, keepdims=True)
        o_h = jnp.dot(p.astype(v.dtype), v[:, sl],
                      preferred_element_type=jnp.float32)
        # normalize after PV: Sq*dk multiplies instead of Sq*Sk
        outs.append(o_h * pl.reciprocal(denom, approx=True))

    o_ref[0] = jnp.concatenate(outs, axis=-1).astype(o_ref.dtype)


# ----------------------------------------------------------------------------
# Pallas wrappers
# ----------------------------------------------------------------------------
def linear(x, w, b, *, tm=256, tk=1024, tn=256, out_dtype=None):
    """x: (..., K) @ w: (K, N) + b: (N,) -> (..., N), tiled & pipelined."""
    orig = x.shape
    K = orig[-1]
    N = w.shape[-1]
    M = int(math.prod(orig[:-1]))
    out_dtype = out_dtype or x.dtype

    tm_ = min(tm, _round_up(M, 8))
    tk_ = min(tk, _round_up(K, 128))
    tn_ = min(tn, _round_up(N, 128))
    Mp, Kp, Np = _round_up(M, tm_), _round_up(K, tk_), _round_up(N, tn_)

    x2 = _pad2d(x.reshape(M, K), Mp, Kp)
    wp = _pad2d(w, Kp, Np)
    bp = _pad2d(b.reshape(1, N).astype(jnp.float32), 1, Np)

    out = pl.pallas_call(
        _matmul_bias_kernel,
        out_shape=jax.ShapeDtypeStruct((Mp, Np), out_dtype),
        grid=(Mp // tm_, Np // tn_, Kp // tk_),
        in_specs=[
            pl.BlockSpec((tm_, tk_), lambda i, j, k: (i, k)),
            pl.BlockSpec((tk_, tn_), lambda i, j, k: (k, j)),
            pl.BlockSpec((1, tn_), lambda i, j, k: (0, j)),
        ],
        out_specs=pl.BlockSpec((tm_, tn_), lambda i, j, k: (i, j)),
        scratch_shapes=[pltpu.VMEM((tm_, tn_), jnp.float32)],
        compiler_params=_cparams(("parallel", "parallel", "arbitrary")),
    )(x2, wp, bp)
    return out[:M, :N].reshape(*orig[:-1], N)


def linear_add_layernorm(x, w, b, res, gamma, beta, *, tm=256, tk=1024):
    """LayerNorm(x @ w + b + res) fused; LN over the full output row."""
    orig = x.shape
    K = orig[-1]
    N = w.shape[-1]
    M = int(math.prod(orig[:-1]))

    tm_ = min(tm, _round_up(M, 8))
    tk_ = min(tk, _round_up(K, 128))
    Mp, Kp, Np = _round_up(M, tm_), _round_up(K, tk_), _round_up(N, 128)

    x2 = _pad2d(x.reshape(M, K), Mp, Kp)
    wp = _pad2d(w, Kp, Np)
    bp = _pad2d(b.reshape(1, N).astype(jnp.float32), 1, Np)
    rp = _pad2d(res.reshape(M, N), Mp, Np)
    gp = _pad2d(gamma.reshape(1, N).astype(jnp.float32), 1, Np)
    bep = _pad2d(beta.reshape(1, N).astype(jnp.float32), 1, Np)

    out = pl.pallas_call(
        functools.partial(_matmul_bias_add_ln_kernel, d_valid=N),
        out_shape=jax.ShapeDtypeStruct((Mp, Np), x.dtype),
        grid=(Mp // tm_, Kp // tk_),
        in_specs=[
            pl.BlockSpec((tm_, tk_), lambda i, k: (i, k)),
            pl.BlockSpec((tk_, Np), lambda i, k: (k, 0)),
            pl.BlockSpec((1, Np), lambda i, k: (0, 0)),
            pl.BlockSpec((tm_, Np), lambda i, k: (i, 0)),
            pl.BlockSpec((1, Np), lambda i, k: (0, 0)),
            pl.BlockSpec((1, Np), lambda i, k: (0, 0)),
        ],
        out_specs=pl.BlockSpec((tm_, Np), lambda i, k: (i, 0)),
        scratch_shapes=[pltpu.VMEM((tm_, Np), jnp.float32)],
        compiler_params=_cparams(("parallel", "arbitrary")),
    )(x2, wp, bp, rp, gp, bep)
    return out[:M, :N].reshape(*orig[:-1], N)


def feed_forward_add_layernorm(x, w1, b1, w2, b2, res, gamma, beta,
                               *, tm=256, tdff=512):
    """LayerNorm(relu(x@w1+b1)@w2 + b2 + res), Dff tiled as a grid axis."""
    orig = x.shape
    D = orig[-1]
    Dff = w1.shape[-1]
    M = int(math.prod(orig[:-1]))

    tm_ = min(tm, _round_up(M, 8))
    tdff_ = min(tdff, _round_up(Dff, 128))
    Mp = _round_up(M, tm_)
    Dp = _round_up(D, 128)
    Dffp = _round_up(Dff, tdff_)

    x2 = _pad2d(x.reshape(M, D), Mp, Dp)
    w1p = _pad2d(w1, Dp, Dffp)
    b1p = _pad2d(b1.reshape(1, Dff).astype(jnp.float32), 1, Dffp)
    w2p = _pad2d(w2, Dffp, Dp)
    b2p = _pad2d(b2.reshape(1, D).astype(jnp.float32), 1, Dp)
    rp = _pad2d(res.reshape(M, D), Mp, Dp)
    gp = _pad2d(gamma.reshape(1, D).astype(jnp.float32), 1, Dp)
    bep = _pad2d(beta.reshape(1, D).astype(jnp.float32), 1, Dp)

    out = pl.pallas_call(
        functools.partial(_ffn_add_ln_kernel, d_valid=D),
        out_shape=jax.ShapeDtypeStruct((Mp, Dp), x.dtype),
        grid=(Mp // tm_, Dffp // tdff_),
        in_specs=[
            pl.BlockSpec((tm_, Dp), lambda i, j: (i, 0)),      # x
            pl.BlockSpec((Dp, tdff_), lambda i, j: (0, j)),    # w1 tile
            pl.BlockSpec((1, tdff_), lambda i, j: (0, j)),     # b1 tile
            pl.BlockSpec((tdff_, Dp), lambda i, j: (j, 0)),    # w2 tile
            pl.BlockSpec((1, Dp), lambda i, j: (0, 0)),        # b2
            pl.BlockSpec((tm_, Dp), lambda i, j: (i, 0)),      # residual
            pl.BlockSpec((1, Dp), lambda i, j: (0, 0)),        # gamma
            pl.BlockSpec((1, Dp), lambda i, j: (0, 0)),        # beta
        ],
        out_specs=pl.BlockSpec((tm_, Dp), lambda i, j: (i, 0)),
        scratch_shapes=[pltpu.VMEM((tm_, Dp), jnp.float32)],
        compiler_params=_cparams(("parallel", "arbitrary")),
    )(x2, w1p, b1p, w2p, b2p, rp, gp, bep)
    return out[:M, :D].reshape(orig)


def _mha_core(q, k, v, key_mask_add, heads, causal, *, tq=256):
    """q:(B,Sq,D), k/v:(B,Sk,D), key_mask_add:(B,Sk) additive (0/-1e9)."""
    B, Sq, D = q.shape
    Sk = k.shape[1]
    dk = D // heads

    tq_ = min(tq, _round_up(Sq, 8))
    Sqp = _round_up(Sq, tq_)
    Skp = _round_up(Sk, 128)            # lane-dense scores / full MXU N-dim

    qp = jnp.pad(q, ((0, 0), (0, Sqp - Sq), (0, 0)))
    kp = jnp.pad(k, ((0, 0), (0, Skp - Sk), (0, 0)))
    vp = jnp.pad(v, ((0, 0), (0, Skp - Sk), (0, 0)))
    mask = jnp.pad(key_mask_add.astype(jnp.float32),
                   ((0, 0), (0, Skp - Sk)), constant_values=_NEG)
    mask = mask.reshape(B, 1, Skp)

    out = pl.pallas_call(
        functools.partial(_mha_kernel, heads=heads,
                          scale=1.0 / math.sqrt(dk), causal=causal),
        out_shape=jax.ShapeDtypeStruct((B, Sqp, D), q.dtype),
        grid=(B, Sqp // tq_),
        in_specs=[
            pl.BlockSpec((1, 1, Skp), lambda b, qi: (b, 0, 0)),
            pl.BlockSpec((1, tq_, D), lambda b, qi: (b, qi, 0)),
            pl.BlockSpec((1, Skp, D), lambda b, qi: (b, 0, 0)),
            pl.BlockSpec((1, Skp, D), lambda b, qi: (b, 0, 0)),
        ],
        out_specs=pl.BlockSpec((1, tq_, D), lambda b, qi: (b, qi, 0)),
        compiler_params=_cparams(("parallel", "parallel")),
    )(mask, qp, kp, vp)
    return out[:, :Sq, :]


def self_attention_block(p, x, key_mask_add, heads, causal, ln_g, ln_b):
    """Fused QKV proj + MHA + (out proj + residual + LayerNorm)."""
    D = x.shape[-1]
    qkv = linear(x, p["wqkv"], p["bqkv"])            # (B, S, 3D)
    q, k, v = qkv[..., :D], qkv[..., D:2 * D], qkv[..., 2 * D:]
    mha = _mha_core(q, k, v, key_mask_add, heads, causal)
    return linear_add_layernorm(mha, p["wo"], p["bo"], x, ln_g, ln_b)


def cross_attention_block(p, x, enc, key_mask_add, heads, ln_g, ln_b):
    """Q from decoder, fused KV projection from encoder output."""
    D = x.shape[-1]
    q = linear(x, p["wq"], p["bq"])
    kv = linear(enc, p["wkv"], p["bkv"])             # (B, S_src, 2D)
    k, v = kv[..., :D], kv[..., D:]
    mha = _mha_core(q, k, v, key_mask_add, heads, causal=False)
    return linear_add_layernorm(mha, p["wo"], p["bo"], x, ln_g, ln_b)


# ----------------------------------------------------------------------------
# Parameter initialization (deterministic, synthetic)
# ----------------------------------------------------------------------------
def _init_linear(key, fan_in, fan_out):
    w = (jax.random.normal(key, (fan_in, fan_out), jnp.float32)
         * 0.02).astype(_WEIGHT_DTYPE)
    b = jnp.zeros((fan_out,), jnp.float32)
    return w, b


def _init_self_mha(key, d_model):
    k1, k2 = jax.random.split(key)
    wqkv, bqkv = _init_linear(k1, d_model, 3 * d_model)   # fused QKV weight
    wo, bo = _init_linear(k2, d_model, d_model)
    return {"wqkv": wqkv, "bqkv": bqkv, "wo": wo, "bo": bo}


def _init_cross_mha(key, d_model):
    k1, k2, k3 = jax.random.split(key, 3)
    wq, bq = _init_linear(k1, d_model, d_model)
    wkv, bkv = _init_linear(k2, d_model, 2 * d_model)      # fused KV weight
    wo, bo = _init_linear(k3, d_model, d_model)
    return {"wq": wq, "bq": bq, "wkv": wkv, "bkv": bkv, "wo": wo, "bo": bo}


def _sinusoidal_pe(max_len, d_model):
    pos = jnp.arange(max_len, dtype=jnp.float32)[:, None]
    i = jnp.arange(d_model // 2, dtype=jnp.float32)[None, :]
    angle = pos / jnp.power(10000.0, 2.0 * i / d_model)
    pe = jnp.zeros((max_len, d_model), jnp.float32)
    pe = pe.at[:, 0::2].set(jnp.sin(angle))
    pe = pe.at[:, 1::2].set(jnp.cos(angle))
    return pe


def init_transformer_params(key, src_vocab_size, tgt_vocab_size, num_layers,
                            d_model, forward_expansion, max_len):
    d_ff = forward_expansion * d_model
    keys = jax.random.split(key, 8)

    def enc_layer(k):
        k1, k2, k3 = jax.random.split(k, 3)
        w1, b1 = _init_linear(k2, d_model, d_ff)
        w2, b2 = _init_linear(k3, d_ff, d_model)
        return {
            "attn": _init_self_mha(k1, d_model),
            "ln1_g": jnp.ones((d_model,), jnp.float32),
            "ln1_b": jnp.zeros((d_model,), jnp.float32),
            "ln2_g": jnp.ones((d_model,), jnp.float32),
            "ln2_b": jnp.zeros((d_model,), jnp.float32),
            "ff_w1": w1, "ff_b1": b1, "ff_w2": w2, "ff_b2": b2,
        }

    def dec_layer(k):
        k1, k2, k3, k4 = jax.random.split(k, 4)
        w1, b1 = _init_linear(k3, d_model, d_ff)
        w2, b2 = _init_linear(k4, d_ff, d_model)
        return {
            "self_attn": _init_self_mha(k1, d_model),
            "cross_attn": _init_cross_mha(k2, d_model),
            "ln1_g": jnp.ones((d_model,), jnp.float32),
            "ln1_b": jnp.zeros((d_model,), jnp.float32),
            "ln2_g": jnp.ones((d_model,), jnp.float32),
            "ln2_b": jnp.zeros((d_model,), jnp.float32),
            "ln3_g": jnp.ones((d_model,), jnp.float32),
            "ln3_b": jnp.zeros((d_model,), jnp.float32),
            "ff_w1": w1, "ff_b1": b1, "ff_w2": w2, "ff_b2": b2,
        }

    enc_keys = jax.random.split(keys[2], num_layers)
    dec_keys = jax.random.split(keys[3], num_layers)
    fc_w, fc_b = _init_linear(keys[4], d_model, tgt_vocab_size)
    return {
        "src_tok_emb": jax.random.normal(keys[0], (src_vocab_size, d_model),
                                         jnp.float32) * 0.02,
        "tgt_tok_emb": jax.random.normal(keys[1], (tgt_vocab_size, d_model),
                                         jnp.float32) * 0.02,
        "pos_enc": _sinusoidal_pe(max_len, d_model),
        "enc_layers": [enc_layer(k) for k in enc_keys],
        "dec_layers": [dec_layer(k) for k in dec_keys],
        "fc_out_w": fc_w,
        "fc_out_b": fc_b,
    }


# ----------------------------------------------------------------------------
# Model forward (mirrors Transformer.forward)
# ----------------------------------------------------------------------------
def make_src_key_mask(src, src_pad_idx):
    # Additive key mask (B, S_src): 0.0 = keep, -1e9 = pad token.
    # Finite value instead of -inf guards fully-masked softmax rows (no NaN).
    return jnp.where(src == src_pad_idx, _NEG, 0.0).astype(jnp.float32)


def encoder_forward(params, src, src_key_mask, heads):
    # TODO(synk): Encoder internals not given in the prompt; standard post-LN
    # encoder with sinusoidal PE and ReLU FFN is assumed.
    x = (params["src_tok_emb"][src]
         + params["pos_enc"][: src.shape[1]][None]).astype(_ACT_DTYPE)
    for layer in params["enc_layers"]:
        x = self_attention_block(layer["attn"], x, src_key_mask, heads,
                                 False, layer["ln1_g"], layer["ln1_b"])
        x = feed_forward_add_layernorm(x, layer["ff_w1"], layer["ff_b1"],
                                       layer["ff_w2"], layer["ff_b2"],
                                       x, layer["ln2_g"], layer["ln2_b"])
    return x


def decoder_forward(params, tgt, enc_src, src_key_mask, heads):
    B, T = tgt.shape
    # Matches make_tgt_mask: causal only (tgt padding intentionally not masked).
    tgt_key_mask = jnp.zeros((B, T), jnp.float32)
    x = (params["tgt_tok_emb"][tgt]
         + params["pos_enc"][: T][None]).astype(_ACT_DTYPE)
    for layer in params["dec_layers"]:
        x = self_attention_block(layer["self_attn"], x, tgt_key_mask, heads,
                                 True, layer["ln1_g"], layer["ln1_b"])
        x = cross_attention_block(layer["cross_attn"], x, enc_src,
                                  src_key_mask, heads,
                                  layer["ln2_g"], layer["ln2_b"])
        x = feed_forward_add_layernorm(x, layer["ff_w1"], layer["ff_b1"],
                                       layer["ff_w2"], layer["ff_b2"],
                                       x, layer["ln3_g"], layer["ln3_b"])
    # TODO(synk): repo may apply a final softmax; returning logits here.
    return linear(x, params["fc_out_w"], params["fc_out_b"],
                  out_dtype=jnp.float32)


def transformer_forward(params, src, tgt, src_pad_idx, heads):
    src_key_mask = make_src_key_mask(src, src_pad_idx)
    enc_src = encoder_forward(params, src, src_key_mask, heads)
    return decoder_forward(params, tgt, enc_src, src_key_mask, heads)


# ----------------------------------------------------------------------------
if __name__ == "__main__":
    # Small, forward-consistent shapes.
    src_vocab_size = 64
    tgt_vocab_size = 64
    src_pad_idx = 0
    tgt_pad_idx = 0
    num_layers = 2
    d_model = 32
    heads = 4
    forward_expansion = 4
    max_len = 16

    batch = 2
    src_len = 8
    tgt_len = 8

    key = jax.random.PRNGKey(0)
    kp, ks, kt = jax.random.split(key, 3)

    params = init_transformer_params(
        kp, src_vocab_size, tgt_vocab_size, num_layers, d_model,
        forward_expansion, max_len)

    src = jax.random.randint(ks, (batch, src_len), 1, src_vocab_size, dtype=jnp.int32)
    tgt = jax.random.randint(kt, (batch, tgt_len), 1, tgt_vocab_size, dtype=jnp.int32)
    # Introduce some source padding so the pad mask is exercised.
    src = src.at[:, -2:].set(src_pad_idx)

    fwd = jax.jit(transformer_forward, static_argnames=("src_pad_idx", "heads"))
    out = fwd(params, src, tgt, src_pad_idx=src_pad_idx, heads=heads)
    out = jax.block_until_ready(out)

    assert out.shape == (batch, tgt_len, tgt_vocab_size)
    assert bool(jnp.all(jnp.isfinite(out)))
    print("KERNEL_OK")
</pallas_src>

<mosaic_0001>
module attributes {stable_mosaic.version = 11 : i64} {
  func.func @_matmul_bias_kernel(%arg0: i32, %arg1: i32, %arg2: i32, %arg3: memref<16x128xbf16, #tpu.memory_space<vmem>>, %arg4: memref<128x128xbf16, #tpu.memory_space<vmem>>, %arg5: memref<1x128xf32, #tpu.memory_space<vmem>>, %arg6: memref<16x128xbf16, #tpu.memory_space<vmem>>, %arg7: memref<16x128xf32, #tpu.memory_space<vmem>>) attributes {dimension_semantics = [#tpu.dimension_semantics<parallel>, #tpu.dimension_semantics<parallel>, #tpu.dimension_semantics<arbitrary>], iteration_bounds = array<i64: 1, 1, 1>, scalar_prefetch = 0 : i64, scratch_operands = 1 : i64, tpu.core_type = #tpu.core_type<tc>, window_params = [{transform_indices = @transform_0, window_bounds = array<i64: 16, 128>}, {transform_indices = @transform_1, window_bounds = array<i64: 128, 128>}, {transform_indices = @transform_2, window_bounds = array<i64: 1, 128>}, {transform_indices = @transform_3, window_bounds = array<i64: 16, 128>}]} {
    %c0_i32 = arith.constant 0 : i32
    %0 = arith.cmpi eq, %arg2, %c0_i32 : i32
    %1 = arith.extui %0 : i1 to i32
    %c0_i32_0 = arith.constant 0 : i32
    %2 = arith.cmpi ne, %1, %c0_i32_0 : i32
    scf.if %2 {
      %cst_10 = arith.constant 0.000000e+00 : f32
      %12 = vector.broadcast %cst_10 : f32 to vector<16x128xf32>
      %c0_11 = arith.constant 0 : index
      %c0_12 = arith.constant 0 : index
      %13 = vector.load %arg7[%c0_11, %c0_12] : memref<16x128xf32, #tpu.memory_space<vmem>>, vector<16x128xf32>
      tpu.vector_store %arg7[%c0_11, %c0_12], %12 {strides = array<i32>} : memref<16x128xf32, #tpu.memory_space<vmem>>, vector<16x128xf32>,
    } else {
    }
    %c0 = arith.constant 0 : index
    %c0_1 = arith.constant 0 : index
    %3 = vector.load %arg7[%c0, %c0_1] : memref<16x128xf32, #tpu.memory_space<vmem>>, vector<16x128xf32>
    %c0_2 = arith.constant 0 : index
    %c0_3 = arith.constant 0 : index
    %4 = vector.load %arg3[%c0_2, %c0_3] : memref<16x128xbf16, #tpu.memory_space<vmem>>, vector<16x128xbf16>
    %c0_4 = arith.constant 0 : index
    %c0_5 = arith.constant 0 : index
    %5 = vector.load %arg4[%c0_4, %c0_5] : memref<128x128xbf16, #tpu.memory_space<vmem>>, vector<128x128xbf16>
    %cst = arith.constant dense<0.000000e+00> : vector<16x128xf32>
    %6 = tpu.matmul %4, %5, %cst {dimension_numbers = #tpu.dot_dimension_numbers<[1], [0], [0], [1], [0, 0, 1, 1], [], []>} : vector<16x128xbf16>, vector<128x128xbf16>, vector<16x128xf32> -> vector<16x128xf32>
    %7 = arith.addf %3, %6 : vector<16x128xf32>
    %c0_6 = arith.constant 0 : index
    %c0_7 = arith.constant 0 : index
    %8 = vector.load %arg7[%c0_6, %c0_7] : memref<16x128xf32, #tpu.memory_space<vmem>>, vector<16x128xf32>
    tpu.vector_store %arg7[%c0_6, %c0_7], %7 {strides = array<i32>} : memref<16x128xf32, #tpu.memory_space<vmem>>, vector<16x128xf32>,
    %c0_i32_8 = arith.constant 0 : i32
    %9 = arith.cmpi eq, %arg2, %c0_i32_8 : i32
    %10 = arith.extui %9 : i1 to i32
    %c0_i32_9 = arith.constant 0 : i32
    %11 = arith.cmpi ne, %10, %c0_i32_9 : i32
    scf.if %11 {
      %c0_10 = arith.constant 0 : index
      %c0_11 = arith.constant 0 : index
      %12 = vector.load %arg7[%c0_10, %c0_11] : memref<16x128xf32, #tpu.memory_space<vmem>>, vector<16x128xf32>
      %c0_12 = arith.constant 0 : index
      %c0_13 = arith.constant 0 : index
      %13 = vector.load %arg5[%c0_12, %c0_13] : memref<1x128xf32, #tpu.memory_space<vmem>>, vector<1x128xf32>
      %14 = vector.broadcast %13 : vector<1x128xf32> to vector<16x128xf32>
      %15 = arith.addf %12, %14 : vector<16x128xf32>
      %16 = arith.truncf %15 : vector<16x128xf32> to vector<16x128xbf16>
      %c0_14 = arith.constant 0 : index
      %c0_15 = arith.constant 0 : index
      %17 = vector.load %arg6[%c0_14, %c0_15] : memref<16x128xbf16, #tpu.memory_space<vmem>>, vector<16x128xbf16>
      tpu.vector_store %arg6[%c0_14, %c0_15], %16 {strides = array<i32>} : memref<16x128xbf16, #tpu.memory_space<vmem>>, vector<16x128xbf16>,
    } else {
    }
    return
  }
  func.func @transform_0(%arg0: i32, %arg1: i32, %arg2: i32) -> (i32, i32) {
    %c0_i32 = arith.constant 0 : i32
    return %arg0, %arg2 : i32, i32
  }
  func.func @transform_1(%arg0: i32, %arg1: i32, %arg2: i32) -> (i32, i32) {
    %c0_i32 = arith.constant 0 : i32
    return %arg2, %arg1 : i32, i32
  }
  func.func @transform_2(%arg0: i32, %arg1: i32, %arg2: i32) -> (i32, i32) {
    %c0_i32 = arith.constant 0 : i32
    %c0_i32_0 = arith.constant 0 : i32
    return %c0_i32, %arg1 : i32, i32
  }
  func.func @transform_3(%arg0: i32, %arg1: i32, %arg2: i32) -> (i32, i32) {
    %c0_i32 = arith.constant 0 : i32
    return %arg0, %arg1 : i32, i32
  }
}

module attributes {stable_mosaic.version = 11 : i64} {
  func.func @_mha_kernel(%arg0: i32, %arg1: i32, %arg2: memref<1x1x128xf32, #tpu.memory_space<vmem>>, %arg3: memref<1x8x32xbf16, #tpu.memory_space<vmem>>, %arg4: memref<1x128x32xbf16, #tpu.memory_space<vmem>>, %arg5: memref<1x128x32xbf16, #tpu.memory_space<vmem>>, %arg6: memref<1x8x32xbf16, #tpu.memory_space<vmem>>) attributes {dimension_semantics = [#tpu.dimension_semantics<parallel>, #tpu.dimension_semantics<parallel>], iteration_bounds = array<i64: 2, 1>, scalar_prefetch = 0 : i64, scratch_operands = 0 : i64, tpu.core_type = #tpu.core_type<tc>, window_params = [{transform_indices = @transform_0, window_bounds = array<i64: 1, 1, 128>}, {transform_indices = @transform_1, window_bounds = array<i64: 1, 8, 32>}, {transform_indices = @transform_2, window_bounds = array<i64: 1, 128, 32>}, {transform_indices = @transform_3, window_bounds = array<i64: 1, 128, 32>}, {transform_indices = @transform_4, window_bounds = array<i64: 1, 8, 32>}]} {
    %c0 = arith.constant 0 : index
    %c0_0 = arith.constant 0 : index
    %c0_1 = arith.constant 0 : index
    %0 = vector.load %arg3[%c0, %c0_0, %c0_1] : memref<1x8x32xbf16, #tpu.memory_space<vmem>>, vector<1x8x32xbf16>
    %1 = vector.shape_cast %0 : vector<1x8x32xbf16> to vector<8x32xbf16>
    %2 = arith.extf %1 : vector<8x32xbf16> to vector<8x32xf32>
    %cst = arith.constant 0.353553385 : f32
    %3 = vector.broadcast %cst : f32 to vector<8x32xf32>
    %4 = arith.mulf %2, %3 : vector<8x32xf32>
    %5 = arith.truncf %4 : vector<8x32xf32> to vector<8x32xbf16>
    %c0_2 = arith.constant 0 : index
    %c0_3 = arith.constant 0 : index
    %c0_4 = arith.constant 0 : index
    %6 = vector.load %arg4[%c0_2, %c0_3, %c0_4] : memref<1x128x32xbf16, #tpu.memory_space<vmem>>, vector<1x128x32xbf16>
    %7 = vector.shape_cast %6 : vector<1x128x32xbf16> to vector<128x32xbf16>
    %c0_5 = arith.constant 0 : index
    %c0_6 = arith.constant 0 : index
    %c0_7 = arith.constant 0 : index
    %8 = vector.load %arg5[%c0_5, %c0_6, %c0_7] : memref<1x128x32xbf16, #tpu.memory_space<vmem>>, vector<1x128x32xbf16>
    %9 = vector.shape_cast %8 : vector<1x128x32xbf16> to vector<128x32xbf16>
    %c0_8 = arith.constant 0 : index
    %c0_9 = arith.constant 0 : index
    %c0_10 = arith.constant 0 : index
    %10 = vector.load %arg2[%c0_8, %c0_9, %c0_10] : memref<1x1x128xf32, #tpu.memory_space<vmem>>, vector<1x1x128xf32>
    %11 = vector.shape_cast %10 : vector<1x1x128xf32> to vector<1x128xf32>
    %12 = vector.extract_strided_slice %5 {offsets = [0, 0], sizes = [8, 8], strides = [1, 1]} : vector<8x32xbf16> to vector<8x8xbf16>
    %13 = vector.extract_strided_slice %7 {offsets = [0, 0], sizes = [128, 8], strides = [1, 1]} : vector<128x32xbf16> to vector<128x8xbf16>
    %cst_11 = arith.constant dense<0.000000e+00> : vector<8x128xf32>
    %14 = tpu.matmul %12, %13, %cst_11 {dimension_numbers = #tpu.dot_dimension_numbers<[1], [1], [0], [0], [0, 0, 1, 0], [], []>} : vector<8x8xbf16>, vector<128x8xbf16>, vector<8x128xf32> -> vector<8x128xf32>
    %15 = vector.broadcast %11 : vector<1x128xf32> to vector<8x128xf32>
    %16 = arith.addf %14, %15 : vector<8x128xf32>
    %cst_12 = arith.constant dense<0xFF800000> : vector<8xf32>
    %17 = vector.multi_reduction <maximumf>, %16, %cst_12 [1] : vector<8x128xf32> to vector<8xf32>
    %18 = vector.shape_cast %17 : vector<8xf32> to vector<8x1xf32>
    %19 = vector.broadcast %18 : vector<8x1xf32> to vector<8x128xf32>
    %20 = arith.subf %16, %19 : vector<8x128xf32>
    %21 = math.exp %20 : vector<8x128xf32>
    %cst_13 = arith.constant dense<0.000000e+00> : vector<8xf32>
    %22 = vector.multi_reduction <add>, %21, %cst_13 [1] : vector<8x128xf32> to vector<8xf32>
    %23 = vector.shape_cast %22 : vector<8xf32> to vector<8x1xf32>
    %24 = arith.truncf %21 : vector<8x128xf32> to vector<8x128xbf16>
    %25 = vector.extract_strided_slice %9 {offsets = [0, 0], sizes = [128, 8], strides = [1, 1]} : vector<128x32xbf16> to vector<128x8xbf16>
    %cst_14 = arith.constant dense<0.000000e+00> : vector<8x8xf32>
    %26 = tpu.matmul %24, %25, %cst_14 {dimension_numbers = #tpu.dot_dimension_numbers<[1], [0], [0], [1], [0, 0, 1, 1], [], []>} : vector<8x128xbf16>, vector<128x8xbf16>, vector<8x8xf32> -> vector<8x8xf32>
    %27 = tpu.reciprocal %23 {approx = true} : vector<8x1xf32> -> vector<8x1xf32>
    %28 = vector.broadcast %27 : vector<8x1xf32> to vector<8x8xf32>
    %29 = arith.mulf %26, %28 : vector<8x8xf32>
    %30 = vector.extract_strided_slice %5 {offsets = [0, 8], sizes = [8, 8], strides = [1, 1]} : vector<8x32xbf16> to vector<8x8xbf16>
    %31 = vector.extract_strided_slice %7 {offsets = [0, 8], sizes = [128, 8], strides = [1, 1]} : vector<128x32xbf16> to vector<128x8xbf16>
    %cst_15 = arith.constant dense<0.000000e+00> : vector<8x128xf32>
    %32 = tpu.matmul %30, %31, %cst_15 {dimension_numbers = #tpu.dot_dimension_numbers<[1], [1], [0], [0], [0, 0, 1, 0], [], []>} : vector<8x8xbf16>, vector<128x8xbf16>, vector<8x128xf32> -> vector<8x128xf32>
    %33 = vector.broadcast %11 : vector<1x128xf32> to vector<8x128xf32>
    %34 = arith.addf %32, %33 : vector<8x128xf32>
    %cst_16 = arith.constant dense<0xFF800000> : vector<8xf32>
    %35 = vector.multi_reduction <maximumf>, %34, %cst_16 [1] : vector<8x128xf32> to vector<8xf32>
    %36 = vector.shape_cast %35 : vector<8xf32> to vector<8x1xf32>
    %37 = vector.broadcast %36 : vector<8x1xf32> to vector<8x128xf32>
    %38 = arith.subf %34, %37 : vector<8x128xf32>
    %39 = math.exp %38 : vector<8x128xf32>
    %cst_17 = arith.constant dense<0.000000e+00> : vector<8xf32>
    %40 = vector.multi_reduction <add>, %39, %cst_17 [1] : vector<8x128xf32> to vector<8xf32>
    %41 = vector.shape_cast %40 : vector<8xf32> to vector<8x1xf32>
    %42 = arith.truncf %39 : vector<8x128xf32> to vector<8x128xbf16>
    %43 = vector.extract_strided_slice %9 {offsets = [0, 8], sizes = [128, 8], strides = [1, 1]} : vector<128x32xbf16> to vector<128x8xbf16>
    %cst_18 = arith.constant dense<0.000000e+00> : vector<8x8xf32>
    %44 = tpu.matmul %42, %43, %cst_18 {dimension_numbers = #tpu.dot_dimension_numbers<[1], [0], [0], [1], [0, 0, 1, 1], [], []>} : vector<8x128xbf16>, vector<128x8xbf16>, vector<8x8xf32> -> vector<8x8xf32>
    %45 = tpu.reciprocal %41 {approx = true} : vector<8x1xf32> -> vector<8x1xf32>
    %46 = vector.broadcast %45 : vector<8x1xf32> to vector<8x8xf32>
    %47 = arith.mulf %44, %46 : vector<8x8xf32>
    %48 = vector.extract_strided_slice %5 {offsets = [0, 16], sizes = [8, 8], strides = [1, 1]} : vector<8x32xbf16> to vector<8x8xbf16>
    %49 = vector.extract_strided_slice %7 {offsets = [0, 16], sizes = [128, 8], strides = [1, 1]} : vector<128x32xbf16> to vector<128x8xbf16>
    %cst_19 = arith.constant dense<0.000000e+00> : vector<8x128xf32>
    %50 = tpu.matmul %48, %49, %cst_19 {dimension_numbers = #tpu.dot_dimension_numbers<[1], [1], [0], [0], [0, 0, 1, 0], [], []>} : vector<8x8xbf16>, vector<128x8xbf16>, vector<8x128xf32> -> vector<8x128xf32>
    %51 = vector.broadcast %11 : vector<1x128xf32> to vector<8x128xf32>
    %52 = arith.addf %50, %51 : vector<8x128xf32>
    %cst_20 = arith.constant dense<0xFF800000> : vector<8xf32>
    %53 = vector.multi_reduction <maximumf>, %52, %cst_20 [1] : vector<8x128xf32> to vector<8xf32>
    %54 = vector.shape_cast %53 : vector<8xf32> to vector<8x1xf32>
    %55 = vector.broadcast %54 : vector<8x1xf32> to vector<8x128xf32>
    %56 = arith.subf %52, %55 : vector<8x128xf32>
    %57 = math.exp %56 : vector<8x128xf32>
    %cst_21 = arith.constant dense<0.000000e+00> : vector<8xf32>
    %58 = vector.multi_reduction <add>, %57, %cst_21 [1] : vector<8x128xf32> to vector<8xf32>
    %59 = vector.shape_cast %58 : vector<8xf32> to vector<8x1xf32>
    %60 = arith.truncf %57 : vector<8x128xf32> to vector<8x128xbf16>
    %61 = vector.extract_strided_slice %9 {offsets = [0, 16], sizes = [128, 8], strides = [1, 1]} : vector<128x32xbf16> to vector<128x8xbf16>
    %cst_22 = arith.constant dense<0.000000e+00> : vector<8x8xf32>
    %62 = tpu.matmul %60, %61, %cst_22 {dimension_numbers = #tpu.dot_dimension_numbers<[1], [0], [0], [1], [0, 0, 1, 1], [], []>} : vector<8x128xbf16>, vector<128x8xbf16>, vector<8x8xf32> -> vector<8x8xf32>
    %63 = tpu.reciprocal %59 {approx = true} : vector<8x1xf32> -> vector<8x1xf32>
    %64 = vector.broadcast %63 : vector<8x1xf32> to vector<8x8xf32>
    %65 = arith.mulf %62, %64 : vector<8x8xf32>
    %66 = vector.extract_strided_slice %5 {offsets = [0, 24], sizes = [8, 8], strides = [1, 1]} : vector<8x32xbf16> to vector<8x8xbf16>
    %67 = vector.extract_strided_slice %7 {offsets = [0, 24], sizes = [128, 8], strides = [1, 1]} : vector<128x32xbf16> to vector<128x8xbf16>
    %cst_23 = arith.constant dense<0.000000e+00> : vector<8x128xf32>
    %68 = tpu.matmul %66, %67, %cst_23 {dimension_numbers = #tpu.dot_dimension_numbers<[1], [1], [0], [0], [0, 0, 1, 0], [], []>} : vector<8x8xbf16>, vector<128x8xbf16>, vector<8x128xf32> -> vector<8x128xf32>
    %69 = vector.broadcast %11 : vector<1x128xf32> to vector<8x128xf32>
    %70 = arith.addf %68, %69 : vector<8x128xf32>
    %cst_24 = arith.constant dense<0xFF800000> : vector<8xf32>
    %71 = vector.multi_reduction <maximumf>, %70, %cst_24 [1] : vector<8x128xf32> to vector<8xf32>
    %72 = vector.shape_cast %71 : vector<8xf32> to vector<8x1xf32>
    %73 = vector.broadcast %72 : vector<8x1xf32> to vector<8x128xf32>
    %74 = arith.subf %70, %73 : vector<8x128xf32>
    %75 = math.exp %74 : vector<8x128xf32>
    %cst_25 = arith.constant dense<0.000000e+00> : vector<8xf32>
    %76 = vector.multi_reduction <add>, %75, %cst_25 [1] : vector<8x128xf32> to vector<8xf32>
    %77 = vector.shape_cast %76 : vector<8xf32> to vector<8x1xf32>
    %78 = arith.truncf %75 : vector<8x128xf32> to vector<8x128xbf16>
    %79 = vector.extract_strided_slice %9 {offsets = [0, 24], sizes = [128, 8], strides = [1, 1]} : vector<128x32xbf16> to vector<128x8xbf16>
    %cst_26 = arith.constant dense<0.000000e+00> : vector<8x8xf32>
    %80 = tpu.matmul %78, %79, %cst_26 {dimension_numbers = #tpu.dot_dimension_numbers<[1], [0], [0], [1], [0, 0, 1, 1], [], []>} : vector<8x128xbf16>, vector<128x8xbf16>, vector<8x8xf32> -> vector<8x8xf32>
    %81 = tpu.reciprocal %77 {approx = true} : vector<8x1xf32> -> vector<8x1xf32>
    %82 = vector.broadcast %81 : vector<8x1xf32> to vector<8x8xf32>
    %83 = arith.mulf %80, %82 : vector<8x8xf32>
    %84 = tpu.concatenate %29, %47, %65, %83 in 1 : vector<8x8xf32>, vector<8x8xf32>, vector<8x8xf32>, vector<8x8xf32> -> vector<8x32xf32>
    %85 = arith.truncf %84 : vector<8x32xf32> to vector<8x32xbf16>
    %c0_27 = arith.constant 0 : index
    %c0_28 = arith.constant 0 : index
    %c0_29 = arith.constant 0 : index
    %86 = vector.load %arg6[%c0_27, %c0_28, %c0_29] : memref<1x8x32xbf16, #tpu.memory_space<vmem>>, vector<1x8x32xbf16>
    %87 = vector.shape_cast %86 : vector<1x8x32xbf16> to vector<8x32xbf16>
    %88 = vector.shape_cast %85 : vector<8x32xbf16> to vector<1x8x32xbf16>
    tpu.vector_store %arg6[%c0_27, %c0_28, %c0_29], %88 {strides = array<i32>} : memref<1x8x32xbf16, #tpu.memory_space<vmem>>, vector<1x8x32xbf16>,
    return
  }
  func.func @transform_0(%arg0: i32, %arg1: i32) -> (i32, i32, i32) {
    %c0_i32 = arith.constant 0 : i32
    %c0_i32_0 = arith.constant 0 : i32
    %c0_i32_1 = arith.constant 0 : i32
    return %arg0, %c0_i32, %c0_i32_0 : i32, i32, i32
  }
  func.func @transform_1(%arg0: i32, %arg1: i32) -> (i32, i32, i32) {
    %c0_i32 = arith.constant 0 : i32
    %c0_i32_0 = arith.constant 0 : i32
    return %arg0, %arg1, %c0_i32 : i32, i32, i32
  }
  func.func @transform_2(%arg0: i32, %arg1: i32) -> (i32, i32, i32) {
    %c0_i32 = arith.constant 0 : i32
    %c0_i32_0 = arith.constant 0 : i32
    %c0_i32_1 = arith.constant 0 : i32
    return %arg0, %c0_i32, %c0_i32_0 : i32, i32, i32
  }
  func.func @transform_3(%arg0: i32, %arg1: i32) -> (i32, i32, i32) {
    %c0_i32 = arith.constant 0 : i32
    %c0_i32_0 = arith.constant 0 : i32
    %c0_i32_1 = arith.constant 0 : i32
    return %arg0, %c0_i32, %c0_i32_0 : i32, i32, i32
  }
  func.func @transform_4(%arg0: i32, %arg1: i32) -> (i32, i32, i32) {
    %c0_i32 = arith.constant 0 : i32
    %c0_i32_0 = arith.constant 0 : i32
    return %arg0, %arg1, %c0_i32 : i32, i32, i32
  }
}

module attributes {stable_mosaic.version = 11 : i64} {
  func.func @_matmul_bias_add_ln_kernel(%arg0: i32, %arg1: i32, %arg2: memref<16x128xbf16, #tpu.memory_space<vmem>>, %arg3: memref<128x128xbf16, #tpu.memory_space<vmem>>, %arg4: memref<1x128xf32, #tpu.memory_space<vmem>>, %arg5: memref<16x128xbf16, #tpu.memory_space<vmem>>, %arg6: memref<1x128xf32, #tpu.memory_space<vmem>>, %arg7: memref<1x128xf32, #tpu.memory_space<vmem>>, %arg8: memref<16x128xbf16, #tpu.memory_space<vmem>>, %arg9: memref<16x128xf32, #tpu.memory_space<vmem>>) attributes {dimension_semantics = [#tpu.dimension_semantics<parallel>, #tpu.dimension_semantics<arbitrary>], iteration_bounds = array<i64: 1, 1>, scalar_prefetch = 0 : i64, scratch_operands = 1 : i64, tpu.core_type = #tpu.core_type<tc>, window_params = [{transform_indices = @transform_0, window_bounds = array<i64: 16, 128>}, {transform_indices = @transform_1, window_bounds = array<i64: 128, 128>}, {pipeline_mode = #tpu.pipeline_mode<synchronous>, transform_indices = @transform_2, window_bounds = array<i64: 1, 128>}, {transform_indices = @transform_3, window_bounds = array<i64: 16, 128>}, {pipeline_mode = #tpu.pipeline_mode<synchronous>, transform_indices = @transform_4, window_bounds = array<i64: 1, 128>}, {pipeline_mode = #tpu.pipeline_mode<synchronous>, transform_indices = @transform_5, window_bounds = array<i64: 1, 128>}, {transform_indices = @transform_6, window_bounds = array<i64: 16, 128>}]} {
    %c0_i32 = arith.constant 0 : i32
    %0 = arith.cmpi eq, %arg1, %c0_i32 : i32
    %1 = arith.extui %0 : i1 to i32
    %c0_i32_0 = arith.constant 0 : i32
    %2 = arith.cmpi ne, %1, %c0_i32_0 : i32
    scf.if %2 {
      %cst_10 = arith.constant 0.000000e+00 : f32
      %12 = vector.broadcast %cst_10 : f32 to vector<16x128xf32>
      %c0_11 = arith.constant 0 : index
      %c0_12 = arith.constant 0 : index
      %13 = vector.load %arg9[%c0_11, %c0_12] : memref<16x128xf32, #tpu.memory_space<vmem>>, vector<16x128xf32>
      tpu.vector_store %arg9[%c0_11, %c0_12], %12 {strides = array<i32>} : memref<16x128xf32, #tpu.memory_space<vmem>>, vector<16x128xf32>,
    } else {
    }
    %c0 = arith.constant 0 : index
    %c0_1 = arith.constant 0 : index
    %3 = vector.load %arg9[%c0, %c0_1] : memref<16x128xf32, #tpu.memory_space<vmem>>, vector<16x128xf32>
    %c0_2 = arith.constant 0 : index
    %c0_3 = arith.constant 0 : index
    %4 = vector.load %arg2[%c0_2, %c0_3] : memref<16x128xbf16, #tpu.memory_space<vmem>>, vector<16x128xbf16>
    %c0_4 = arith.constant 0 : index
    %c0_5 = arith.constant 0 : index
    %5 = vector.load %arg3[%c0_4, %c0_5] : memref<128x128xbf16, #tpu.memory_space<vmem>>, vector<128x128xbf16>
    %cst = arith.constant dense<0.000000e+00> : vector<16x128xf32>
    %6 = tpu.matmul %4, %5, %cst {dimension_numbers = #tpu.dot_dimension_numbers<[1], [0], [0], [1], [0, 0, 1, 1], [], []>} : vector<16x128xbf16>, vector<128x128xbf16>, vector<16x128xf32> -> vector<16x128xf32>
    %7 = arith.addf %3, %6 : vector<16x128xf32>
    %c0_6 = arith.constant 0 : index
    %c0_7 = arith.constant 0 : index
    %8 = vector.load %arg9[%c0_6, %c0_7] : memref<16x128xf32, #tpu.memory_space<vmem>>, vector<16x128xf32>
    tpu.vector_store %arg9[%c0_6, %c0_7], %7 {strides = array<i32>} : memref<16x128xf32, #tpu.memory_space<vmem>>, vector<16x128xf32>,
    %c0_i32_8 = arith.constant 0 : i32
    %9 = arith.cmpi eq, %arg1, %c0_i32_8 : i32
    %10 = arith.extui %9 : i1 to i32
    %c0_i32_9 = arith.constant 0 : i32
    %11 = arith.cmpi ne, %10, %c0_i32_9 : i32
    scf.if %11 {
      %c0_10 = arith.constant 0 : index
      %c0_11 = arith.constant 0 : index
      %12 = vector.load %arg9[%c0_10, %c0_11] : memref<16x128xf32, #tpu.memory_space<vmem>>, vector<16x128xf32>
      %c0_12 = arith.constant 0 : index
      %c0_13 = arith.constant 0 : index
      %13 = vector.load %arg4[%c0_12, %c0_13] : memref<1x128xf32, #tpu.memory_space<vmem>>, vector<1x128xf32>
      %14 = vector.broadcast %13 : vector<1x128xf32> to vector<16x128xf32>
      %15 = arith.addf %12, %14 : vector<16x128xf32>
      %c0_14 = arith.constant 0 : index
      %c0_15 = arith.constant 0 : index
      %16 = vector.load %arg5[%c0_14, %c0_15] : memref<16x128xbf16, #tpu.memory_space<vmem>>, vector<16x128xbf16>
      %17 = arith.extf %16 : vector<16x128xbf16> to vector<16x128xf32>
      %18 = arith.addf %15, %17 : vector<16x128xf32>
      %c0_16 = arith.constant 0 : index
      %c0_17 = arith.constant 0 : index
      %19 = vector.load %arg6[%c0_16, %c0_17] : memref<1x128xf32, #tpu.memory_space<vmem>>, vector<1x128xf32>
      %c0_18 = arith.constant 0 : index
      %c0_19 = arith.constant 0 : index
      %20 = vector.load %arg7[%c0_18, %c0_19] : memref<1x128xf32, #tpu.memory_space<vmem>>, vector<1x128xf32>
      %21 = tpu.iota {dimensions = array<i32: 1>} : vector<16x128xi32>
      %c32_i32 = arith.constant 32 : i32
      %22 = vector.broadcast %c32_i32 : i32 to vector<16x128xi32>
      %23 = arith.cmpi slt, %21, %22 : vector<16x128xi32>
      %cst_20 = arith.constant 0.000000e+00 : f32
      %24 = vector.broadcast %cst_20 : f32 to vector<16x128xf32>
      %25 = arith.select %23, %18, %24 : vector<16x128xi1>, vector<16x128xf32>
      %cst_21 = arith.constant dense<0.000000e+00> : vector<16xf32>
      %26 = vector.multi_reduction <add>, %25, %cst_21 [1] : vector<16x128xf32> to vector<16xf32>
      %27 = vector.shape_cast %26 : vector<16xf32> to vector<16x1xf32>
      %cst_22 = arith.constant 3.200000e+01 : f32
      %28 = vector.broadcast %cst_22 : f32 to vector<16x1xf32>
      %29 = arith.divf %27, %28 : vector<16x1xf32>
      %30 = vector.broadcast %29 : vector<16x1xf32> to vector<16x128xf32>
      %31 = arith.subf %25, %30 : vector<16x128xf32>
      %cst_23 = arith.constant 0.000000e+00 : f32
      %32 = vector.broadcast %cst_23 : f32 to vector<16x128xf32>
      %33 = arith.select %23, %31, %32 : vector<16x128xi1>, vector<16x128xf32>
      %34 = arith.mulf %33, %33 : vector<16x128xf32>
      %cst_24 = arith.constant dense<0.000000e+00> : vector<16xf32>
      %35 = vector.multi_reduction <add>, %34, %cst_24 [1] : vector<16x128xf32> to vector<16xf32>
      %36 = vector.shape_cast %35 : vector<16xf32> to vector<16x1xf32>
      %cst_25 = arith.constant 3.200000e+01 : f32
      %37 = vector.broadcast %cst_25 : f32 to vector<16x1xf32>
      %38 = arith.divf %36, %37 : vector<16x1xf32>
      %cst_26 = arith.constant 9.99999974E-6 : f32
      %39 = vector.broadcast %cst_26 : f32 to vector<16x1xf32>
      %40 = arith.addf %38, %39 : vector<16x1xf32>
      %41 = math.rsqrt %40 : vector<16x1xf32>
      %42 = vector.broadcast %41 : vector<16x1xf32> to vector<16x128xf32>
      %43 = arith.mulf %33, %42 : vector<16x128xf32>
      %44 = vector.broadcast %19 : vector<1x128xf32> to vector<16x128xf32>
      %45 = arith.mulf %43, %44 : vector<16x128xf32>
      %46 = vector.broadcast %20 : vector<1x128xf32> to vector<16x128xf32>
      %47 = arith.addf %45, %46 : vector<16x128xf32>
      %48 = arith.truncf %47 : vector<16x128xf32> to vector<16x128xbf16>
      %c0_27 = arith.constant 0 : index
      %c0_28 = arith.constant 0 : index
      %49 = vector.load %arg8[%c0_27, %c0_28] : memref<16x128xbf16, #tpu.memory_space<vmem>>, vector<16x128xbf16>
      tpu.vector_store %arg8[%c0_27, %c0_28], %48 {strides = array<i32>} : memref<16x128xbf16, #tpu.memory_space<vmem>>, vector<16x128xbf16>,
    } else {
    }
    return
  }
  func.func @transform_0(%arg0: i32, %arg1: i32) -> (i32, i32) {
    %c0_i32 = arith.constant 0 : i32
    return %arg0, %arg1 : i32, i32
  }
  func.func @transform_1(%arg0: i32, %arg1: i32) -> (i32, i32) {
    %c0_i32 = arith.constant 0 : i32
    %c0_i32_0 = arith.constant 0 : i32
    return %arg1, %c0_i32 : i32, i32
  }
  func.func @transform_2(%arg0: i32, %arg1: i32) -> (i32, i32) {
    %c0_i32 = arith.constant 0 : i32
    %c0_i32_0 = arith.constant 0 : i32
    %c0_i32_1 = arith.constant 0 : i32
    return %c0_i32, %c0_i32_0 : i32, i32
  }
  func.func @transform_3(%arg0: i32, %arg1: i32) -> (i32, i32) {
    %c0_i32 = arith.constant 0 : i32
    %c0_i32_0 = arith.constant 0 : i32
    return %arg0, %c0_i32 : i32, i32
  }
  func.func @transform_4(%arg0: i32, %arg1: i32) -> (i32, i32) {
    %c0_i32 = arith.constant 0 : i32
    %c0_i32_0 = arith.constant 0 : i32
    %c0_i32_1 = arith.constant 0 : i32
    return %c0_i32, %c0_i32_0 : i32, i32
  }
  func.func @transform_5(%arg0: i32, %arg1: i32) -> (i32, i32) {
    %c0_i32 = arith.constant 0 : i32
    %c0_i32_0 = arith.constant 0 : i32
    %c0_i32_1 = arith.constant 0 : i32
    return %c0_i32, %c0_i32_0 : i32, i32
  }
  func.func @transform_6(%arg0: i32, %arg1: i32) -> (i32, i32) {
    %c0_i32 = arith.constant 0 : i32
    %c0_i32_0 = arith.constant 0 : i32
    return %arg0, %c0_i32 : i32, i32
  }
}

module attributes {stable_mosaic.version = 11 : i64} {
  func.func @_ffn_add_ln_kernel(%arg0: i32, %arg1: i32, %arg2: memref<16x128xbf16, #tpu.memory_space<vmem>>, %arg3: memref<128x128xbf16, #tpu.memory_space<vmem>>, %arg4: memref<1x128xf32, #tpu.memory_space<vmem>>, %arg5: memref<128x128xbf16, #tpu.memory_space<vmem>>, %arg6: memref<1x128xf32, #tpu.memory_space<vmem>>, %arg7: memref<16x128xbf16, #tpu.memory_space<vmem>>, %arg8: memref<1x128xf32, #tpu.memory_space<vmem>>, %arg9: memref<1x128xf32, #tpu.memory_space<vmem>>, %arg10: memref<16x128xbf16, #tpu.memory_space<vmem>>, %arg11: memref<16x128xf32, #tpu.memory_space<vmem>>) attributes {dimension_semantics = [#tpu.dimension_semantics<parallel>, #tpu.dimension_semantics<arbitrary>], iteration_bounds = array<i64: 1, 1>, scalar_prefetch = 0 : i64, scratch_operands = 1 : i64, tpu.core_type = #tpu.core_type<tc>, window_params = [{transform_indices = @transform_0, window_bounds = array<i64: 16, 128>}, {transform_indices = @transform_1, window_bounds = array<i64: 128, 128>}, {transform_indices = @transform_2, window_bounds = array<i64: 1, 128>}, {transform_indices = @transform_3, window_bounds = array<i64: 128, 128>}, {pipeline_mode = #tpu.pipeline_mode<synchronous>, transform_indices = @transform_4, window_bounds = array<i64: 1, 128>}, {transform_indices = @transform_5, window_bounds = array<i64: 16, 128>}, {pipeline_mode = #tpu.pipeline_mode<synchronous>, transform_indices = @transform_6, window_bounds = array<i64: 1, 128>}, {pipeline_mode = #tpu.pipeline_mode<synchronous>, transform_indices = @transform_7, window_bounds = array<i64: 1, 128>}, {transform_indices = @transform_8, window_bounds = array<i64: 16, 128>}]} {
    %c0_i32 = arith.constant 0 : i32
    %0 = arith.cmpi eq, %arg1, %c0_i32 : i32
    %1 = arith.extui %0 : i1 to i32
    %c0_i32_0 = arith.constant 0 : i32
    %2 = arith.cmpi ne, %1, %c0_i32_0 : i32
    scf.if %2 {
      %cst_16 = arith.constant 0.000000e+00 : f32
      %20 = vector.broadcast %cst_16 : f32 to vector<16x128xf32>
      %c0_17 = arith.constant 0 : index
      %c0_18 = arith.constant 0 : index
      %21 = vector.load %arg11[%c0_17, %c0_18] : memref<16x128xf32, #tpu.memory_space<vmem>>, vector<16x128xf32>
      tpu.vector_store %arg11[%c0_17, %c0_18], %20 {strides = array<i32>} : memref<16x128xf32, #tpu.memory_space<vmem>>, vector<16x128xf32>,
    } else {
    }
    %c0 = arith.constant 0 : index
    %c0_1 = arith.constant 0 : index
    %3 = vector.load %arg2[%c0, %c0_1] : memref<16x128xbf16, #tpu.memory_space<vmem>>, vector<16x128xbf16>
    %c0_2 = arith.constant 0 : index
    %c0_3 = arith.constant 0 : index
    %4 = vector.load %arg3[%c0_2, %c0_3] : memref<128x128xbf16, #tpu.memory_space<vmem>>, vector<128x128xbf16>
    %cst = arith.constant dense<0.000000e+00> : vector<16x128xf32>
    %5 = tpu.matmul %3, %4, %cst {dimension_numbers = #tpu.dot_dimension_numbers<[1], [0], [0], [1], [0, 0, 1, 1], [], []>} : vector<16x128xbf16>, vector<128x128xbf16>, vector<16x128xf32> -> vector<16x128xf32>
    %c0_4 = arith.constant 0 : index
    %c0_5 = arith.constant 0 : index
    %6 = vector.load %arg4[%c0_4, %c0_5] : memref<1x128xf32, #tpu.memory_space<vmem>>, vector<1x128xf32>
    %7 = vector.broadcast %6 : vector<1x128xf32> to vector<16x128xf32>
    %8 = arith.addf %5, %7 : vector<16x128xf32>
    %cst_6 = arith.constant 0.000000e+00 : f32
    %9 = vector.broadcast %cst_6 : f32 to vector<16x128xf32>
    %10 = arith.maximumf %8, %9 : vector<16x128xf32>
    %c0_7 = arith.constant 0 : index
    %c0_8 = arith.constant 0 : index
    %11 = vector.load %arg11[%c0_7, %c0_8] : memref<16x128xf32, #tpu.memory_space<vmem>>, vector<16x128xf32>
    %12 = arith.truncf %10 : vector<16x128xf32> to vector<16x128xbf16>
    %c0_9 = arith.constant 0 : index
    %c0_10 = arith.constant 0 : index
    %13 = vector.load %arg5[%c0_9, %c0_10] : memref<128x128xbf16, #tpu.memory_space<vmem>>, vector<128x128xbf16>
    %cst_11 = arith.constant dense<0.000000e+00> : vector<16x128xf32>
    %14 = tpu.matmul %12, %13, %cst_11 {dimension_numbers = #tpu.dot_dimension_numbers<[1], [0], [0], [1], [0, 0, 1, 1], [], []>} : vector<16x128xbf16>, vector<128x128xbf16>, vector<16x128xf32> -> vector<16x128xf32>
    %15 = arith.addf %11, %14 : vector<16x128xf32>
    %c0_12 = arith.constant 0 : index
    %c0_13 = arith.constant 0 : index
    %16 = vector.load %arg11[%c0_12, %c0_13] : memref<16x128xf32, #tpu.memory_space<vmem>>, vector<16x128xf32>
    tpu.vector_store %arg11[%c0_12, %c0_13], %15 {strides = array<i32>} : memref<16x128xf32, #tpu.memory_space<vmem>>, vector<16x128xf32>,
    %c0_i32_14 = arith.constant 0 : i32
    %17 = arith.cmpi eq, %arg1, %c0_i32_14 : i32
    %18 = arith.extui %17 : i1 to i32
    %c0_i32_15 = arith.constant 0 : i32
    %19 = arith.cmpi ne, %18, %c0_i32_15 : i32
    scf.if %19 {
      %c0_16 = arith.constant 0 : index
      %c0_17 = arith.constant 0 : index
      %20 = vector.load %arg11[%c0_16, %c0_17] : memref<16x128xf32, #tpu.memory_space<vmem>>, vector<16x128xf32>
      %c0_18 = arith.constant 0 : index
      %c0_19 = arith.constant 0 : index
      %21 = vector.load %arg6[%c0_18, %c0_19] : memref<1x128xf32, #tpu.memory_space<vmem>>, vector<1x128xf32>
      %22 = vector.broadcast %21 : vector<1x128xf32> to vector<16x128xf32>
      %23 = arith.addf %20, %22 : vector<16x128xf32>
      %c0_20 = arith.constant 0 : index
      %c0_21 = arith.constant 0 : index
      %24 = vector.load %arg7[%c0_20, %c0_21] : memref<16x128xbf16, #tpu.memory_space<vmem>>, vector<16x128xbf16>
      %25 = arith.extf %24 : vector<16x128xbf16> to vector<16x128xf32>
      %26 = arith.addf %23, %25 : vector<16x128xf32>
      %c0_22 = arith.constant 0 : index
      %c0_23 = arith.constant 0 : index
      %27 = vector.load %arg8[%c0_22, %c0_23] : memref<1x128xf32, #tpu.memory_space<vmem>>, vector<1x128xf32>
      %c0_24 = arith.constant 0 : index
      %c0_25 = arith.constant 0 : index
      %28 = vector.load %arg9[%c0_24, %c0_25] : memref<1x128xf32, #tpu.memory_space<vmem>>, vector<1x128xf32>
      %29 = tpu.iota {dimensions = array<i32: 1>} : vector<16x128xi32>
      %c32_i32 = arith.constant 32 : i32
      %30 = vector.broadcast %c32_i32 : i32 to vector<16x128xi32>
      %31 = arith.cmpi slt, %29, %30 : vector<16x128xi32>
      %cst_26 = arith.constant 0.000000e+00 : f32
      %32 = vector.broadcast %cst_26 : f32 to vector<16x128xf32>
      %33 = arith.select %31, %26, %32 : vector<16x128xi1>, vector<16x128xf32>
      %cst_27 = arith.constant dense<0.000000e+00> : vector<16xf32>
      %34 = vector.multi_reduction <add>, %33, %cst_27 [1] : vector<16x128xf32> to vector<16xf32>
      %35 = vector.shape_cast %34 : vector<16xf32> to vector<16x1xf32>
      %cst_28 = arith.constant 3.200000e+01 : f32
      %36 = vector.broadcast %cst_28 : f32 to vector<16x1xf32>
      %37 = arith.divf %35, %36 : vector<16x1xf32>
      %38 = vector.broadcast %37 : vector<16x1xf32> to vector<16x128xf32>
      %39 = arith.subf %33, %38 : vector<16x128xf32>
      %cst_29 = arith.constant 0.000000e+00 : f32
      %40 = vector.broadcast %cst_29 : f32 to vector<16x128xf32>
      %41 = arith.select %31, %39, %40 : vector<16x128xi1>, vector<16x128xf32>
      %42 = arith.mulf %41, %41 : vector<16x128xf32>
      %cst_30 = arith.constant dense<0.000000e+00> : vector<16xf32>
      %43 = vector.multi_reduction <add>, %42, %cst_30 [1] : vector<16x128xf32> to vector<16xf32>
      %44 = vector.shape_cast %43 : vector<16xf32> to vector<16x1xf32>
      %cst_31 = arith.constant 3.200000e+01 : f32
      %45 = vector.broadcast %cst_31 : f32 to vector<16x1xf32>
      %46 = arith.divf %44, %45 : vector<16x1xf32>
      %cst_32 = arith.constant 9.99999974E-6 : f32
      %47 = vector.broadcast %cst_32 : f32 to vector<16x1xf32>
      %48 = arith.addf %46, %47 : vector<16x1xf32>
      %49 = math.rsqrt %48 : vector<16x1xf32>
      %50 = vector.broadcast %49 : vector<16x1xf32> to vector<16x128xf32>
      %51 = arith.mulf %41, %50 : vector<16x128xf32>
      %52 = vector.broadcast %27 : vector<1x128xf32> to vector<16x128xf32>
      %53 = arith.mulf %51, %52 : vector<16x128xf32>
      %54 = vector.broadcast %28 : vector<1x128xf32> to vector<16x128xf32>
      %55 = arith.addf %53, %54 : vector<16x128xf32>
      %56 = arith.truncf %55 : vector<16x128xf32> to vector<16x128xbf16>
      %c0_33 = arith.constant 0 : index
      %c0_34 = arith.constant 0 : index
      %57 = vector.load %arg10[%c0_33, %c0_34] : memref<16x128xbf16, #tpu.memory_space<vmem>>, vector<16x128xbf16>
      tpu.vector_store %arg10[%c0_33, %c0_34], %56 {strides = array<i32>} : memref<16x128xbf16, #tpu.memory_space<vmem>>, vector<16x128xbf16>,
    } else {
    }
    return
  }
  func.func @transform_0(%arg0: i32, %arg1: i32) -> (i32, i32) {
    %c0_i32 = arith.constant 0 : i32
    %c0_i32_0 = arith.constant 0 : i32
    return %arg0, %c0_i32 : i32, i32
  }
  func.func @transform_1(%arg0: i32, %arg1: i32) -> (i32, i32) {
    %c0_i32 = arith.constant 0 : i32
    %c0_i32_0 = arith.constant 0 : i32
    return %c0_i32, %arg1 : i32, i32
  }
  func.func @transform_2(%arg0: i32, %arg1: i32) -> (i32, i32) {
    %c0_i32 = arith.constant 0 : i32
    %c0_i32_0 = arith.constant 0 : i32
    return %c0_i32, %arg1 : i32, i32
  }
  func.func @transform_3(%arg0: i32, %arg1: i32) -> (i32, i32) {
    %c0_i32 = arith.constant 0 : i32
    %c0_i32_0 = arith.constant 0 : i32
    return %arg1, %c0_i32 : i32, i32
  }
  func.func @transform_4(%arg0: i32, %arg1: i32) -> (i32, i32) {
    %c0_i32 = arith.constant 0 : i32
    %c0_i32_0 = arith.constant 0 : i32
    %c0_i32_1 = arith.constant 0 : i32
    return %c0_i32, %c0_i32_0 : i32, i32
  }
  func.func @transform_5(%arg0: i32, %arg1: i32) -> (i32, i32) {
    %c0_i32 = arith.constant 0 : i32
    %c0_i32_0 = arith.constant 0 : i32
    return %arg0, %c0_i32 : i32, i32
  }
  func.func @transform_6(%arg0: i32, %arg1: i32) -> (i32, i32) {
    %c0_i32 = arith.constant 0 : i32
    %c0_i32_0 = arith.constant 0 : i32
    %c0_i32_1 = arith.constant 0 : i32
    return %c0_i32, %c0_i32_0 : i32, i32
  }
  func.func @transform_7(%arg0: i32, %arg1: i32) -> (i32, i32) {
    %c0_i32 = arith.constant 0 : i32
    %c0_i32_0 = arith.constant 0 : i32
    %c0_i32_1 = arith.constant 0 : i32
    return %c0_i32, %c0_i32_0 : i32, i32
  }
  func.func @transform_8(%arg0: i32, %arg1: i32) -> (i32, i32) {
    %c0_i32 = arith.constant 0 : i32
    %c0_i32_0 = arith.constant 0 : i32
    return %arg0, %c0_i32 : i32, i32
  }
}

module attributes {stable_mosaic.version = 11 : i64} {
  func.func @_mha_kernel(%arg0: i32, %arg1: i32, %arg2: memref<1x1x128xf32, #tpu.memory_space<vmem>>, %arg3: memref<1x8x32xbf16, #tpu.memory_space<vmem>>, %arg4: memref<1x128x32xbf16, #tpu.memory_space<vmem>>, %arg5: memref<1x128x32xbf16, #tpu.memory_space<vmem>>, %arg6: memref<1x8x32xbf16, #tpu.memory_space<vmem>>) attributes {dimension_semantics = [#tpu.dimension_semantics<parallel>, #tpu.dimension_semantics<parallel>], iteration_bounds = array<i64: 2, 1>, scalar_prefetch = 0 : i64, scratch_operands = 0 : i64, tpu.core_type = #tpu.core_type<tc>, window_params = [{transform_indices = @transform_0, window_bounds = array<i64: 1, 1, 128>}, {transform_indices = @transform_1, window_bounds = array<i64: 1, 8, 32>}, {transform_indices = @transform_2, window_bounds = array<i64: 1, 128, 32>}, {transform_indices = @transform_3, window_bounds = array<i64: 1, 128, 32>}, {transform_indices = @transform_4, window_bounds = array<i64: 1, 8, 32>}]} {
    %c0 = arith.constant 0 : index
    %c0_0 = arith.constant 0 : index
    %c0_1 = arith.constant 0 : index
    %0 = vector.load %arg3[%c0, %c0_0, %c0_1] : memref<1x8x32xbf16, #tpu.memory_space<vmem>>, vector<1x8x32xbf16>
    %1 = vector.shape_cast %0 : vector<1x8x32xbf16> to vector<8x32xbf16>
    %2 = arith.extf %1 : vector<8x32xbf16> to vector<8x32xf32>
    %cst = arith.constant 0.353553385 : f32
    %3 = vector.broadcast %cst : f32 to vector<8x32xf32>
    %4 = arith.mulf %2, %3 : vector<8x32xf32>
    %5 = arith.truncf %4 : vector<8x32xf32> to vector<8x32xbf16>
    %c0_2 = arith.constant 0 : index
    %c0_3 = arith.constant 0 : index
    %c0_4 = arith.constant 0 : index
    %6 = vector.load %arg4[%c0_2, %c0_3, %c0_4] : memref<1x128x32xbf16, #tpu.memory_space<vmem>>, vector<1x128x32xbf16>
    %7 = vector.shape_cast %6 : vector<1x128x32xbf16> to vector<128x32xbf16>
    %c0_5 = arith.constant 0 : index
    %c0_6 = arith.constant 0 : index
    %c0_7 = arith.constant 0 : index
    %8 = vector.load %arg5[%c0_5, %c0_6, %c0_7] : memref<1x128x32xbf16, #tpu.memory_space<vmem>>, vector<1x128x32xbf16>
    %9 = vector.shape_cast %8 : vector<1x128x32xbf16> to vector<128x32xbf16>
    %c0_8 = arith.constant 0 : index
    %c0_9 = arith.constant 0 : index
    %c0_10 = arith.constant 0 : index
    %10 = vector.load %arg2[%c0_8, %c0_9, %c0_10] : memref<1x1x128xf32, #tpu.memory_space<vmem>>, vector<1x1x128xf32>
    %11 = vector.shape_cast %10 : vector<1x1x128xf32> to vector<1x128xf32>
    %c8_i32 = arith.constant 8 : i32
    %12 = arith.muli %arg1, %c8_i32 : i32
    %13 = tpu.iota {dimensions = array<i32: 0>} : vector<8x128xi32>
    %14 = vector.broadcast %12 : i32 to vector<8x128xi32>
    %15 = arith.addi %13, %14 : vector<8x128xi32>
    %16 = tpu.iota {dimensions = array<i32: 1>} : vector<8x128xi32>
    %17 = arith.cmpi sle, %16, %15 : vector<8x128xi32>
    %cst_11 = arith.constant 0.000000e+00 : f32
    %cst_12 = arith.constant -1.000000e+09 : f32
    %18 = vector.broadcast %cst_11 : f32 to vector<8x128xf32>
    %19 = vector.broadcast %cst_12 : f32 to vector<8x128xf32>
    %20 = arith.select %17, %18, %19 : vector<8x128xi1>, vector<8x128xf32>
    %21 = vector.broadcast %11 : vector<1x128xf32> to vector<8x128xf32>
    %22 = arith.addf %21, %20 : vector<8x128xf32>
    %23 = vector.extract_strided_slice %5 {offsets = [0, 0], sizes = [8, 8], strides = [1, 1]} : vector<8x32xbf16> to vector<8x8xbf16>
    %24 = vector.extract_strided_slice %7 {offsets = [0, 0], sizes = [128, 8], strides = [1, 1]} : vector<128x32xbf16> to vector<128x8xbf16>
    %cst_13 = arith.constant dense<0.000000e+00> : vector<8x128xf32>
    %25 = tpu.matmul %23, %24, %cst_13 {dimension_numbers = #tpu.dot_dimension_numbers<[1], [1], [0], [0], [0, 0, 1, 0], [], []>} : vector<8x8xbf16>, vector<128x8xbf16>, vector<8x128xf32> -> vector<8x128xf32>
    %26 = arith.addf %25, %22 : vector<8x128xf32>
    %cst_14 = arith.constant dense<0xFF800000> : vector<8xf32>
    %27 = vector.multi_reduction <maximumf>, %26, %cst_14 [1] : vector<8x128xf32> to vector<8xf32>
    %28 = vector.shape_cast %27 : vector<8xf32> to vector<8x1xf32>
    %29 = vector.broadcast %28 : vector<8x1xf32> to vector<8x128xf32>
    %30 = arith.subf %26, %29 : vector<8x128xf32>
    %31 = math.exp %30 : vector<8x128xf32>
    %cst_15 = arith.constant dense<0.000000e+00> : vector<8xf32>
    %32 = vector.multi_reduction <add>, %31, %cst_15 [1] : vector<8x128xf32> to vector<8xf32>
    %33 = vector.shape_cast %32 : vector<8xf32> to vector<8x1xf32>
    %34 = arith.truncf %31 : vector<8x128xf32> to vector<8x128xbf16>
    %35 = vector.extract_strided_slice %9 {offsets = [0, 0], sizes = [128, 8], strides = [1, 1]} : vector<128x32xbf16> to vector<128x8xbf16>
    %cst_16 = arith.constant dense<0.000000e+00> : vector<8x8xf32>
    %36 = tpu.matmul %34, %35, %cst_16 {dimension_numbers = #tpu.dot_dimension_numbers<[1], [0], [0], [1], [0, 0, 1, 1], [], []>} : vector<8x128xbf16>, vector<128x8xbf16>, vector<8x8xf32> -> vector<8x8xf32>
    %37 = tpu.reciprocal %33 {approx = true} : vector<8x1xf32> -> vector<8x1xf32>
    %38 = vector.broadcast %37 : vector<8x1xf32> to vector<8x8xf32>
    %39 = arith.mulf %36, %38 : vector<8x8xf32>
    %40 = vector.extract_strided_slice %5 {offsets = [0, 8], sizes = [8, 8], strides = [1, 1]} : vector<8x32xbf16> to vector<8x8xbf16>
    %41 = vector.extract_strided_slice %7 {offsets = [0, 8], sizes = [128, 8], strides = [1, 1]} : vector<128x32xbf16> to vector<128x8xbf16>
    %cst_17 = arith.constant dense<0.000000e+00> : vector<8x128xf32>
    %42 = tpu.matmul %40, %41, %cst_17 {dimension_numbers = #tpu.dot_dimension_numbers<[1], [1], [0], [0], [0, 0, 1, 0], [], []>} : vector<8x8xbf16>, vector<128x8xbf16>, vector<8x128xf32> -> vector<8x128xf32>
    %43 = arith.addf %42, %22 : vector<8x128xf32>
    %cst_18 = arith.constant dense<0xFF800000> : vector<8xf32>
    %44 = vector.multi_reduction <maximumf>, %43, %cst_18 [1] : vector<8x128xf32> to vector<8xf32>
    %45 = vector.shape_cast %44 : vector<8xf32> to vector<8x1xf32>
    %46 = vector.broadcast %45 : vector<8x1xf32> to vector<8x128xf32>
    %47 = arith.subf %43, %46 : vector<8x128xf32>
    %48 = math.exp %47 : vector<8x128xf32>
    %cst_19 = arith.constant dense<0.000000e+00> : vector<8xf32>
    %49 = vector.multi_reduction <add>, %48, %cst_19 [1] : vector<8x128xf32> to vector<8xf32>
    %50 = vector.shape_cast %49 : vector<8xf32> to vector<8x1xf32>
    %51 = arith.truncf %48 : vector<8x128xf32> to vector<8x128xbf16>
    %52 = vector.extract_strided_slice %9 {offsets = [0, 8], sizes = [128, 8], strides = [1, 1]} : vector<128x32xbf16> to vector<128x8xbf16>
    %cst_20 = arith.constant dense<0.000000e+00> : vector<8x8xf32>
    %53 = tpu.matmul %51, %52, %cst_20 {dimension_numbers = #tpu.dot_dimension_numbers<[1], [0], [0], [1], [0, 0, 1, 1], [], []>} : vector<8x128xbf16>, vector<128x8xbf16>, vector<8x8xf32> -> vector<8x8xf32>
    %54 = tpu.reciprocal %50 {approx = true} : vector<8x1xf32> -> vector<8x1xf32>
    %55 = vector.broadcast %54 : vector<8x1xf32> to vector<8x8xf32>
    %56 = arith.mulf %53, %55 : vector<8x8xf32>
    %57 = vector.extract_strided_slice %5 {offsets = [0, 16], sizes = [8, 8], strides = [1, 1]} : vector<8x32xbf16> to vector<8x8xbf16>
    %58 = vector.extract_strided_slice %7 {offsets = [0, 16], sizes = [128, 8], strides = [1, 1]} : vector<128x32xbf16> to vector<128x8xbf16>
    %cst_21 = arith.constant dense<0.000000e+00> : vector<8x128xf32>
    %59 = tpu.matmul %57, %58, %cst_21 {dimension_numbers = #tpu.dot_dimension_numbers<[1], [1], [0], [0], [0, 0, 1, 0], [], []>} : vector<8x8xbf16>, vector<128x8xbf16>, vector<8x128xf32> -> vector<8x128xf32>
    %60 = arith.addf %59, %22 : vector<8x128xf32>
    %cst_22 = arith.constant dense<0xFF800000> : vector<8xf32>
    %61 = vector.multi_reduction <maximumf>, %60, %cst_22 [1] : vector<8x128xf32> to vector<8xf32>
    %62 = vector.shape_cast %61 : vector<8xf32> to vector<8x1xf32>
    %63 = vector.broadcast %62 : vector<8x1xf32> to vector<8x128xf32>
    %64 = arith.subf %60, %63 : vector<8x128xf32>
    %65 = math.exp %64 : vector<8x128xf32>
    %cst_23 = arith.constant dense<0.000000e+00> : vector<8xf32>
    %66 = vector.multi_reduction <add>, %65, %cst_23 [1] : vector<8x128xf32> to vector<8xf32>
    %67 = vector.shape_cast %66 : vector<8xf32> to vector<8x1xf32>
    %68 = arith.truncf %65 : vector<8x128xf32> to vector<8x128xbf16>
    %69 = vector.extract_strided_slice %9 {offsets = [0, 16], sizes = [128, 8], strides = [1, 1]} : vector<128x32xbf16> to vector<128x8xbf16>
    %cst_24 = arith.constant dense<0.000000e+00> : vector<8x8xf32>
    %70 = tpu.matmul %68, %69, %cst_24 {dimension_numbers = #tpu.dot_dimension_numbers<[1], [0], [0], [1], [0, 0, 1, 1], [], []>} : vector<8x128xbf16>, vector<128x8xbf16>, vector<8x8xf32> -> vector<8x8xf32>
    %71 = tpu.reciprocal %67 {approx = true} : vector<8x1xf32> -> vector<8x1xf32>
    %72 = vector.broadcast %71 : vector<8x1xf32> to vector<8x8xf32>
    %73 = arith.mulf %70, %72 : vector<8x8xf32>
    %74 = vector.extract_strided_slice %5 {offsets = [0, 24], sizes = [8, 8], strides = [1, 1]} : vector<8x32xbf16> to vector<8x8xbf16>
    %75 = vector.extract_strided_slice %7 {offsets = [0, 24], sizes = [128, 8], strides = [1, 1]} : vector<128x32xbf16> to vector<128x8xbf16>
    %cst_25 = arith.constant dense<0.000000e+00> : vector<8x128xf32>
    %76 = tpu.matmul %74, %75, %cst_25 {dimension_numbers = #tpu.dot_dimension_numbers<[1], [1], [0], [0], [0, 0, 1, 0], [], []>} : vector<8x8xbf16>, vector<128x8xbf16>, vector<8x128xf32> -> vector<8x128xf32>
    %77 = arith.addf %76, %22 : vector<8x128xf32>
    %cst_26 = arith.constant dense<0xFF800000> : vector<8xf32>
    %78 = vector.multi_reduction <maximumf>, %77, %cst_26 [1] : vector<8x128xf32> to vector<8xf32>
    %79 = vector.shape_cast %78 : vector<8xf32> to vector<8x1xf32>
    %80 = vector.broadcast %79 : vector<8x1xf32> to vector<8x128xf32>
    %81 = arith.subf %77, %80 : vector<8x128xf32>
    %82 = math.exp %81 : vector<8x128xf32>
    %cst_27 = arith.constant dense<0.000000e+00> : vector<8xf32>
    %83 = vector.multi_reduction <add>, %82, %cst_27 [1] : vector<8x128xf32> to vector<8xf32>
    %84 = vector.shape_cast %83 : vector<8xf32> to vector<8x1xf32>
    %85 = arith.truncf %82 : vector<8x128xf32> to vector<8x128xbf16>
    %86 = vector.extract_strided_slice %9 {offsets = [0, 24], sizes = [128, 8], strides = [1, 1]} : vector<128x32xbf16> to vector<128x8xbf16>
    %cst_28 = arith.constant dense<0.000000e+00> : vector<8x8xf32>
    %87 = tpu.matmul %85, %86, %cst_28 {dimension_numbers = #tpu.dot_dimension_numbers<[1], [0], [0], [1], [0, 0, 1, 1], [], []>} : vector<8x128xbf16>, vector<128x8xbf16>, vector<8x8xf32> -> vector<8x8xf32>
    %88 = tpu.reciprocal %84 {approx = true} : vector<8x1xf32> -> vector<8x1xf32>
    %89 = vector.broadcast %88 : vector<8x1xf32> to vector<8x8xf32>
    %90 = arith.mulf %87, %89 : vector<8x8xf32>
    %91 = tpu.concatenate %39, %56, %73, %90 in 1 : vector<8x8xf32>, vector<8x8xf32>, vector<8x8xf32>, vector<8x8xf32> -> vector<8x32xf32>
    %92 = arith.truncf %91 : vector<8x32xf32> to vector<8x32xbf16>
    %c0_29 = arith.constant 0 : index
    %c0_30 = arith.constant 0 : index
    %c0_31 = arith.constant 0 : index
    %93 = vector.load %arg6[%c0_29, %c0_30, %c0_31] : memref<1x8x32xbf16, #tpu.memory_space<vmem>>, vector<1x8x32xbf16>
    %94 = vector.shape_cast %93 : vector<1x8x32xbf16> to vector<8x32xbf16>
    %95 = vector.shape_cast %92 : vector<8x32xbf16> to vector<1x8x32xbf16>
    tpu.vector_store %arg6[%c0_29, %c0_30, %c0_31], %95 {strides = array<i32>} : memref<1x8x32xbf16, #tpu.memory_space<vmem>>, vector<1x8x32xbf16>,
    return
  }
  func.func @transform_0(%arg0: i32, %arg1: i32) -> (i32, i32, i32) {
    %c0_i32 = arith.constant 0 : i32
    %c0_i32_0 = arith.constant 0 : i32
    %c0_i32_1 = arith.constant 0 : i32
    return %arg0, %c0_i32, %c0_i32_0 : i32, i32, i32
  }
  func.func @transform_1(%arg0: i32, %arg1: i32) -> (i32, i32, i32) {
    %c0_i32 = arith.constant 0 : i32
    %c0_i32_0 = arith.constant 0 : i32
    return %arg0, %arg1, %c0_i32 : i32, i32, i32
  }
  func.func @transform_2(%arg0: i32, %arg1: i32) -> (i32, i32, i32) {
    %c0_i32 = arith.constant 0 : i32
    %c0_i32_0 = arith.constant 0 : i32
    %c0_i32_1 = arith.constant 0 : i32
    return %arg0, %c0_i32, %c0_i32_0 : i32, i32, i32
  }
  func.func @transform_3(%arg0: i32, %arg1: i32) -> (i32, i32, i32) {
    %c0_i32 = arith.constant 0 : i32
    %c0_i32_0 = arith.constant 0 : i32
    %c0_i32_1 = arith.constant 0 : i32
    return %arg0, %c0_i32, %c0_i32_0 : i32, i32, i32
  }
  func.func @transform_4(%arg0: i32, %arg1: i32) -> (i32, i32, i32) {
    %c0_i32 = arith.constant 0 : i32
    %c0_i32_0 = arith.constant 0 : i32
    return %arg0, %arg1, %c0_i32 : i32, i32, i32
  }
}

module attributes {stable_mosaic.version = 11 : i64} {
  func.func @_matmul_bias_kernel(%arg0: i32, %arg1: i32, %arg2: i32, %arg3: memref<16x128xbf16, #tpu.memory_space<vmem>>, %arg4: memref<128x128xbf16, #tpu.memory_space<vmem>>, %arg5: memref<1x128xf32, #tpu.memory_space<vmem>>, %arg6: memref<16x128xf32, #tpu.memory_space<vmem>>, %arg7: memref<16x128xf32, #tpu.memory_space<vmem>>) attributes {dimension_semantics = [#tpu.dimension_semantics<parallel>, #tpu.dimension_semantics<parallel>, #tpu.dimension_semantics<arbitrary>], iteration_bounds = array<i64: 1, 1, 1>, scalar_prefetch = 0 : i64, scratch_operands = 1 : i64, tpu.core_type = #tpu.core_type<tc>, window_params = [{transform_indices = @transform_0, window_bounds = array<i64: 16, 128>}, {transform_indices = @transform_1, window_bounds = array<i64: 128, 128>}, {transform_indices = @transform_2, window_bounds = array<i64: 1, 128>}, {transform_indices = @transform_3, window_bounds = array<i64: 16, 128>}]} {
    %c0_i32 = arith.constant 0 : i32
    %0 = arith.cmpi eq, %arg2, %c0_i32 : i32
    %1 = arith.extui %0 : i1 to i32
    %c0_i32_0 = arith.constant 0 : i32
    %2 = arith.cmpi ne, %1, %c0_i32_0 : i32
    scf.if %2 {
      %cst_10 = arith.constant 0.000000e+00 : f32
      %12 = vector.broadcast %cst_10 : f32 to vector<16x128xf32>
      %c0_11 = arith.constant 0 : index
      %c0_12 = arith.constant 0 : index
      %13 = vector.load %arg7[%c0_11, %c0_12] : memref<16x128xf32, #tpu.memory_space<vmem>>, vector<16x128xf32>
      tpu.vector_store %arg7[%c0_11, %c0_12], %12 {strides = array<i32>} : memref<16x128xf32, #tpu.memory_space<vmem>>, vector<16x128xf32>,
    } else {
    }
    %c0 = arith.constant 0 : index
    %c0_1 = arith.constant 0 : index
    %3 = vector.load %arg7[%c0, %c0_1] : memref<16x128xf32, #tpu.memory_space<vmem>>, vector<16x128xf32>
    %c0_2 = arith.constant 0 : index
    %c0_3 = arith.constant 0 : index
    %4 = vector.load %arg3[%c0_2, %c0_3] : memref<16x128xbf16, #tpu.memory_space<vmem>>, vector<16x128xbf16>
    %c0_4 = arith.constant 0 : index
    %c0_5 = arith.constant 0 : index
    %5 = vector.load %arg4[%c0_4, %c0_5] : memref<128x128xbf16, #tpu.memory_space<vmem>>, vector<128x128xbf16>
    %cst = arith.constant dense<0.000000e+00> : vector<16x128xf32>
    %6 = tpu.matmul %4, %5, %cst {dimension_numbers = #tpu.dot_dimension_numbers<[1], [0], [0], [1], [0, 0, 1, 1], [], []>} : vector<16x128xbf16>, vector<128x128xbf16>, vector<16x128xf32> -> vector<16x128xf32>
    %7 = arith.addf %3, %6 : vector<16x128xf32>
    %c0_6 = arith.constant 0 : index
    %c0_7 = arith.constant 0 : index
    %8 = vector.load %arg7[%c0_6, %c0_7] : memref<16x128xf32, #tpu.memory_space<vmem>>, vector<16x128xf32>
    tpu.vector_store %arg7[%c0_6, %c0_7], %7 {strides = array<i32>} : memref<16x128xf32, #tpu.memory_space<vmem>>, vector<16x128xf32>,
    %c0_i32_8 = arith.constant 0 : i32
    %9 = arith.cmpi eq, %arg2, %c0_i32_8 : i32
    %10 = arith.extui %9 : i1 to i32
    %c0_i32_9 = arith.constant 0 : i32
    %11 = arith.cmpi ne, %10, %c0_i32_9 : i32
    scf.if %11 {
      %c0_10 = arith.constant 0 : index
      %c0_11 = arith.constant 0 : index
      %12 = vector.load %arg7[%c0_10, %c0_11] : memref<16x128xf32, #tpu.memory_space<vmem>>, vector<16x128xf32>
      %c0_12 = arith.constant 0 : index
      %c0_13 = arith.constant 0 : index
      %13 = vector.load %arg5[%c0_12, %c0_13] : memref<1x128xf32, #tpu.memory_space<vmem>>, vector<1x128xf32>
      %14 = vector.broadcast %13 : vector<1x128xf32> to vector<16x128xf32>
      %15 = arith.addf %12, %14 : vector<16x128xf32>
      %c0_14 = arith.constant 0 : index
      %c0_15 = arith.constant 0 : index
      %16 = vector.load %arg6[%c0_14, %c0_15] : memref<16x128xf32, #tpu.memory_space<vmem>>, vector<16x128xf32>
      tpu.vector_store %arg6[%c0_14, %c0_15], %15 {strides = array<i32>} : memref<16x128xf32, #tpu.memory_space<vmem>>, vector<16x128xf32>,
    } else {
    }
    return
  }
  func.func @transform_0(%arg0: i32, %arg1: i32, %arg2: i32) -> (i32, i32) {
    %c0_i32 = arith.constant 0 : i32
    return %arg0, %arg2 : i32, i32
  }
  func.func @transform_1(%arg0: i32, %arg1: i32, %arg2: i32) -> (i32, i32) {
    %c0_i32 = arith.constant 0 : i32
    return %arg2, %arg1 : i32, i32
  }
  func.func @transform_2(%arg0: i32, %arg1: i32, %arg2: i32) -> (i32, i32) {
    %c0_i32 = arith.constant 0 : i32
    %c0_i32_0 = arith.constant 0 : i32
    return %c0_i32, %arg1 : i32, i32
  }
  func.func @transform_3(%arg0: i32, %arg1: i32, %arg2: i32) -> (i32, i32) {
    %c0_i32 = arith.constant 0 : i32
    return %arg0, %arg1 : i32, i32
  }
}

</mosaic_0001>

<llo_original>
// kernel: transformer_forward.25
$region0: #{transformer_forward.25}
  #allocation0 [shape = 'u32[]', space=smem, size = 0x4, offset = 0x4, fixed_abs, tag = 'smem constant byte address 0x4 - core index']
  #allocation1 [shape = 'u32[144,128]{1,0:T(1,128)}', space=vmem, size = 0x12000, scoped, tag = 'internal scratch']
  #allocation2 [shape = 'f32[16,128]{1,0:T(8,128)}', space=vmem, size = 0x2000, scoped, tag = 'scratch operand']
  %s0 = inlined_call_operand.vmem [shape: bf16[16,128], index: 0, kind: input, shape index: {}]
  %s1 = inlined_call_operand.vmem [shape: bf16[128,128], index: 1, kind: input, shape index: {}]
  %s2 = inlined_call_operand.vmem [shape: f32[1,128], index: 2, kind: input, shape index: {}]
  %s3 = inlined_call_operand.vmem [shape: bf16[16,128], index: 3, kind: output, shape index: {}]
  %s4 = sld [smem:[#allocation0]]
  $region30: #{transformer_forward.25} parent=0
    _
  %s6 = ssub.s32 1, %s4
  %s7 = scalar_select 0, %s6, %s4
  // Predicated region
  $region2: #{transformer_forward.25} parent=0 // pred_check
    _
  $region3: #{transformer_forward.25} parent=0 // pred_check_branch
    %9 = sbr.rel (0) target = $region5
  $region4: #{transformer_forward.25} parent=0 // pred_region
    _
  $region5: #{transformer_forward.25} parent=0 // pred_fallthru
    _
  // Predicated region
  $region6: #{transformer_forward.25} parent=0 // pred_check
    _
  $region7: #{transformer_forward.25} parent=0 // pred_check_branch
    %11 = sbr.rel (0) target = $region9
  $region8: #{transformer_forward.25} parent=0 // pred_region
    _
  $region9: #{transformer_forward.25} parent=0 // pred_fallthru
    _
  // Predicated region
  $region10: #{transformer_forward.25} parent=0 // pred_check
    _
  $region11: #{transformer_forward.25} parent=0 // pred_check_branch
    %13 = sbr.rel (0) target = $region13
  $region12: #{transformer_forward.25} parent=0 // pred_region
    _
  $region13: #{transformer_forward.25} parent=0 // pred_fallthru
    _
  %p15 = scmp.eq.s32.totalorder 0, 0
  // Predicated region
  $region14: #{transformer_forward.25} parent=0 // pred_check
    %p16 = pneg %p15
  $region15: #{transformer_forward.25} parent=0 // pred_check_branch
    %18 = sbr.rel (%p16) target = $region17
  $region16: #{transformer_forward.25} parent=0 // pred_region
    %19 = vst [vmem:[#allocation2] sm:$0xff] 0.0
    %20 = vst [vmem:[#allocation2 + $0x8] sm:$0xff] 0.0
  $region17: #{transformer_forward.25} parent=0 // pred_fallthru
    _
  %v21 = vld [vmem:[#allocation2] sm:$0xff]
  %v22 = vld [vmem:[#allocation2 + $0x8] sm:$0xff]
  %v23 = vld [vmem:[%s0] sm:$0xf]
  %v24 = vld [vmem:[%s0 + $0x4] sm:$0xf]
  %v25 = vld [vmem:[%s1] sm:$0xf]
  %v26 = vld [vmem:[%s1 + $0x4] sm:$0xf]
  %v27 = vld [vmem:[%s1 + $0x8] sm:$0xf]
  %v28 = vld [vmem:[%s1 + $0xc] sm:$0xf]
  %v29 = vld [vmem:[%s1 + $0x10] sm:$0xf]
  %v30 = vld [vmem:[%s1 + $0x14] sm:$0xf]
  %v31 = vld [vmem:[%s1 + $0x18] sm:$0xf]
  %v32 = vld [vmem:[%s1 + $0x1c] sm:$0xf]
  %v33 = vld [vmem:[%s1 + $0x20] sm:$0xf]
  %v34 = vld [vmem:[%s1 + $0x24] sm:$0xf]
  %v35 = vld [vmem:[%s1 + $0x28] sm:$0xf]
  %v36 = vld [vmem:[%s1 + $0x2c] sm:$0xf]
  %v37 = vld [vmem:[%s1 + $0x30] sm:$0xf]
  %v38 = vld [vmem:[%s1 + $0x34] sm:$0xf]
  %v39 = vld [vmem:[%s1 + $0x38] sm:$0xf]
  %v40 = vld [vmem:[%s1 + $0x3c] sm:$0xf]
  %v43 = vunpack.c.l.b16 %v23
  %v44 = vunpack.c.l.b16 %v24
  %v45 = vpack.c.b16 %v44, %v43
  %v63 = vunpack.c.l.b16 %v25
  %v64 = vunpack.c.l.b16 %v26
  %v65 = vunpack.c.l.b16 %v27
  %v66 = vunpack.c.l.b16 %v28
  %v67 = vunpack.c.l.b16 %v29
  %v68 = vunpack.c.l.b16 %v30
  %v69 = vunpack.c.l.b16 %v31
  %v70 = vunpack.c.l.b16 %v32
  %v71 = vunpack.c.l.b16 %v33
  %v72 = vunpack.c.l.b16 %v34
  %v73 = vunpack.c.l.b16 %v35
  %v74 = vunpack.c.l.b16 %v36
  %v75 = vunpack.c.l.b16 %v37
  %v76 = vunpack.c.l.b16 %v38
  %v77 = vunpack.c.l.b16 %v39
  %v78 = vunpack.c.l.b16 %v40
  %v79 = vpack.c.b16 %v64, %v63
  %v80 = vpack.c.b16 %v66, %v65
  %v81 = vpack.c.b16 %v68, %v67
  %v82 = vpack.c.b16 %v70, %v69
  %v83 = vpack.c.b16 %v72, %v71
  %v84 = vpack.c.b16 %v74, %v73
  %v85 = vpack.c.b16 %v76, %v75
  %v86 = vpack.c.b16 %v78, %v77
  %95 = vmatprep.subr.bf16.mxu0 0
  %96 = vmatpush1.bf16.msra.mxu0 %v86
  %97 = vmatprep.subr.bf16.mxu0 0
  %98 = vmatpush1.bf16.msra.mxu0 %v85
  %99 = vmatprep.subr.bf16.mxu0 0
  %100 = vmatpush1.bf16.msra.mxu0 %v84
  %101 = vmatprep.subr.bf16.mxu0 0
  %102 = vmatpush1.bf16.msra.mxu0 %v83
  %103 = vmatprep.subr.bf16.mxu0 0
  %104 = vmatpush1.bf16.msra.mxu0 %v82
  %105 = vmatprep.subr.bf16.mxu0 0
  %106 = vmatpush1.bf16.msra.mxu0 %v81
  %107 = vmatprep.subr.bf16.mxu0 0
  %108 = vmatpush1.bf16.msra.mxu0 %v80
  %109 = vmatprep.subr.bf16.mxu0 0
  %110 = vmatpush1.bf16.msra.mxu0 %v79
  %111 = vmatprep.subr.bf16.mxu0 0
  %112 = vmatpush2.bf16.msra.mxu0 0
  %113 = vmatprep.subr.bf16.mxu0 0
  %114 = vmatpush2.bf16.msra.mxu0 0
  %115 = vmatprep.subr.bf16.mxu0 0
  %116 = vmatpush2.bf16.msra.mxu0 0
  %117 = vmatprep.subr.bf16.mxu0 0
  %118 = vmatpush2.bf16.msra.mxu0 0
  %119 = vmatprep.subr.bf16.mxu0 0
  %120 = vmatpush2.bf16.msra.mxu0 0
  %121 = vmatprep.subr.bf16.mxu0 0
  %122 = vmatpush2.bf16.msra.mxu0 0
  %123 = vmatprep.subr.bf16.mxu0 0
  %124 = vmatpush2.bf16.msra.mxu0 0
  %125 = vmatprep.subr.bf16.mxu0 0
  %126 = vmatpush2.bf16.msra.mxu0 0
  %127 = vmatprep.mubr.bf16.mxu0 0
  %128 = vmatmul.mubr.bf16.gmra.mxu0 %v45
  %v129 = vpop.f32.mrf.mxu0
  %v130 = vadd.f32 0.0, %v129
  %v131 = vpop.f32.mrf.mxu0
  %v132 = vpop.f32.mrf.mxu0
  %v133 = vadd.f32 0.0, %v132
  %v134 = vpop.f32.mrf.mxu0
  %135 = vdwg.mxu0
  %v136 = vadd.f32 %v21, %v130
  %v137 = vadd.f32 %v22, %v133
  %138 = vst [vmem:[#allocation2] sm:$0xff] %v136
  %139 = vst [vmem:[#allocation2 + $0x8] sm:$0xff] %v137
  // Predicated region
  $region18: #{transformer_forward.25} parent=0 // pred_check
    %p140 = pneg %p15
  $region19: #{transformer_forward.25} parent=0 // pred_check_branch
    %142 = sbr.rel (%p140) target = $region21
  $region20: #{transformer_forward.25} parent=0 // pred_region
    %v143 = vld [vmem:[#allocation2] sm:$0xff]
    %v144 = vld [vmem:[#allocation2 + $0x8] sm:$0xff]
    %v145 = vld [vmem:[%s2] sm:$0x1]
    %v147 = vlaneseq
    %v148 = vshrl.u32 %v147, 7
    %v149 = vsub.s32 0, %v148
    %v150 = vrot.slane %v145, %v149
    %v152 = vadd.f32 %v143, %v150
    %v153 = vadd.f32 %v144, %v150
    %v154 = vpack.c.bf16 %v153, %v152
    %v156 = vunpack.c.l.b16 %v154
    %v157 = vunpack.c.h.b16 %v154
    %v158 = vpack.c.b16 %v156, %v156
    %v159 = vpack.c.b16 %v157, %v157
    %162 = vst [vmem:[%s3] sm:$0xf] %v158
    %163 = vst [vmem:[%s3 + $0x4] sm:$0xf] %v159
  $region21: #{transformer_forward.25} parent=0 // pred_fallthru
    _
  // Predicated region
  $region22: #{transformer_forward.25} parent=0 // pred_check
    _
  $region23: #{transformer_forward.25} parent=0 // pred_check_branch
    %165 = sbr.rel (0) target = $region25
  $region24: #{transformer_forward.25} parent=0 // pred_region
    _
  $region25: #{transformer_forward.25} parent=0 // pred_fallthru
    _
  // Predicated region
  $region26: #{transformer_forward.25} parent=0 // pred_check
    _
  $region27: #{transformer_forward.25} parent=0 // pred_check_branch
    %167 = sbr.rel (0) target = $region29
  $region28: #{transformer_forward.25} parent=0 // pred_region
    _
  $region29: #{transformer_forward.25} parent=0 // pred_fallthru
    _

// kernel: transformer_forward.27
$region0: #{transformer_forward.27}
  #allocation0 [shape = 'u32[]', space=smem, size = 0x4, offset = 0x4, fixed_abs, tag = 'smem constant byte address 0x4 - core index']
  #allocation1 [shape = 'u32[144,128]{1,0:T(1,128)}', space=vmem, size = 0x12000, scoped, tag = 'internal scratch']
  #allocation2 [shape = 'f32[16,128]{1,0:T(8,128)}', space=vmem, size = 0x2000, scoped, tag = 'scratch operand']
  %s0 = inlined_call_operand.vmem [shape: bf16[16,128], index: 0, kind: input, shape index: {}]
  %s1 = inlined_call_operand.vmem [shape: bf16[128,128], index: 1, kind: input, shape index: {}]
  %s2 = inlined_call_operand.vmem [shape: f32[1,128], index: 2, kind: input, shape index: {}]
  %s3 = inlined_call_operand.vmem [shape: bf16[16,128], index: 3, kind: input, shape index: {}]
  %s4 = inlined_call_operand.vmem [shape: f32[1,128], index: 4, kind: input, shape index: {}]
  %s5 = inlined_call_operand.vmem [shape: f32[1,128], index: 5, kind: input, shape index: {}]
  %s6 = inlined_call_operand.vmem [shape: bf16[16,128], index: 6, kind: output, shape index: {}]
  %s7 = sld [smem:[#allocation0]]
  $region42: #{transformer_forward.27} parent=0
    _
  %s9 = ssub.s32 1, %s7
  %s10 = scalar_select 0, %s9, %s7
  // Predicated region
  $region2: #{transformer_forward.27} parent=0 // pred_check
    _
  $region3: #{transformer_forward.27} parent=0 // pred_check_branch
    %12 = sbr.rel (0) target = $region5
  $region4: #{transformer_forward.27} parent=0 // pred_region
    _
  $region5: #{transformer_forward.27} parent=0 // pred_fallthru
    _
  // Predicated region
  $region6: #{transformer_forward.27} parent=0 // pred_check
    _
  $region7: #{transformer_forward.27} parent=0 // pred_check_branch
    %14 = sbr.rel (0) target = $region9
  $region8: #{transformer_forward.27} parent=0 // pred_region
    _
  $region9: #{transformer_forward.27} parent=0 // pred_fallthru
    _
  // Predicated region
  $region10: #{transformer_forward.27} parent=0 // pred_check
    _
  $region11: #{transformer_forward.27} parent=0 // pred_check_branch
    %16 = sbr.rel (0) target = $region13
  $region12: #{transformer_forward.27} parent=0 // pred_region
    _
  $region13: #{transformer_forward.27} parent=0 // pred_fallthru
    _
  // Predicated region
  $region14: #{transformer_forward.27} parent=0 // pred_check
    _
  $region15: #{transformer_forward.27} parent=0 // pred_check_branch
    %18 = sbr.rel (0) target = $region17
  $region16: #{transformer_forward.27} parent=0 // pred_region
    _
  $region17: #{transformer_forward.27} parent=0 // pred_fallthru
    _
  // Predicated region
  $region18: #{transformer_forward.27} parent=0 // pred_check
    _
  $region19: #{transformer_forward.27} parent=0 // pred_check_branch
    %20 = sbr.rel (0) target = $region21
  $region20: #{transformer_forward.27} parent=0 // pred_region
    _
  $region21: #{transformer_forward.27} parent=0 // pred_fallthru
    _
  // Predicated region
  $region22: #{transformer_forward.27} parent=0 // pred_check
    _
  $region23: #{transformer_forward.27} parent=0 // pred_check_branch
    %22 = sbr.rel (0) target = $region25
  $region24: #{transformer_forward.27} parent=0 // pred_region
    _
  $region25: #{transformer_forward.27} parent=0 // pred_fallthru
    _
  %p24 = scmp.eq.s32.totalorder 0, 0
  // Predicated region
  $region26: #{transformer_forward.27} parent=0 // pred_check
    %p25 = pneg %p24
  $region27: #{transformer_forward.27} parent=0 // pred_check_branch
    %27 = sbr.rel (%p25) target = $region29
  $region28: #{transformer_forward.27} parent=0 // pred_region
    %28 = vst [vmem:[#allocation2] sm:$0xff] 0.0
    %29 = vst [vmem:[#allocation2 + $0x8] sm:$0xff] 0.0
  $region29: #{transformer_forward.27} parent=0 // pred_fallthru
    _
  %v30 = vld [vmem:[#allocation2] sm:$0xff]
  %v31 = vld [vmem:[#allocation2 + $0x8] sm:$0xff]
  %v32 = vld [vmem:[%s0] sm:$0xf]
  %v33 = vld [vmem:[%s0 + $0x4] sm:$0xf]
  %v34 = vld [vmem:[%s1] sm:$0xf]
  %v35 = vld [vmem:[%s1 + $0x4] sm:$0xf]
  %v36 = vld [vmem:[%s1 + $0x8] sm:$0xf]
  %v37 = vld [vmem:[%s1 + $0xc] sm:$0xf]
  %v38 = vld [vmem:[%s1 + $0x10] sm:$0xf]
  %v39 = vld [vmem:[%s1 + $0x14] sm:$0xf]
  %v40 = vld [vmem:[%s1 + $0x18] sm:$0xf]
  %v41 = vld [vmem:[%s1 + $0x1c] sm:$0xf]
  %v42 = vld [vmem:[%s1 + $0x20] sm:$0xf]
  %v43 = vld [vmem:[%s1 + $0x24] sm:$0xf]
  %v44 = vld [vmem:[%s1 + $0x28] sm:$0xf]
  %v45 = vld [vmem:[%s1 + $0x2c] sm:$0xf]
  %v46 = vld [vmem:[%s1 + $0x30] sm:$0xf]
  %v47 = vld [vmem:[%s1 + $0x34] sm:$0xf]
  %v48 = vld [vmem:[%s1 + $0x38] sm:$0xf]
  %v49 = vld [vmem:[%s1 + $0x3c] sm:$0xf]
  %v52 = vunpack.c.l.b16 %v32
  %v53 = vunpack.c.l.b16 %v33
  %v54 = vpack.c.b16 %v53, %v52
  %v72 = vunpack.c.l.b16 %v34
  %v73 = vunpack.c.l.b16 %v35
  %v74 = vunpack.c.l.b16 %v36
  %v75 = vunpack.c.l.b16 %v37
  %v76 = vunpack.c.l.b16 %v38
  %v77 = vunpack.c.l.b16 %v39
  %v78 = vunpack.c.l.b16 %v40
  %v79 = vunpack.c.l.b16 %v41
  %v80 = vunpack.c.l.b16 %v42
  %v81 = vunpack.c.l.b16 %v43
  %v82 = vunpack.c.l.b16 %v44
  %v83 = vunpack.c.l.b16 %v45
  %v84 = vunpack.c.l.b16 %v46
  %v85 = vunpack.c.l.b16 %v47
  %v86 = vunpack.c.l.b16 %v48
  %v87 = vunpack.c.l.b16 %v49
  %v88 = vpack.c.b16 %v73, %v72
  %v89 = vpack.c.b16 %v75, %v74
  %v90 = vpack.c.b16 %v77, %v76
  %v91 = vpack.c.b16 %v79, %v78
  %v92 = vpack.c.b16 %v81, %v80
  %v93 = vpack.c.b16 %v83, %v82
  %v94 = vpack.c.b16 %v85, %v84
  %v95 = vpack.c.b16 %v87, %v86
  %104 = vmatprep.subr.bf16.mxu0 0
  %105 = vmatpush1.bf16.msra.mxu0 %v95
  %106 = vmatprep.subr.bf16.mxu0 0
  %107 = vmatpush1.bf16.msra.mxu0 %v94
  %108 = vmatprep.subr.bf16.mxu0 0
  %109 = vmatpush1.bf16.msra.mxu0 %v93
  %110 = vmatprep.subr.bf16.mxu0 0
  %111 = vmatpush1.bf16.msra.mxu0 %v92
  %112 = vmatprep.subr.bf16.mxu0 0
  %113 = vmatpush1.bf16.msra.mxu0 %v91
  %114 = vmatprep.subr.bf16.mxu0 0
  %115 = vmatpush1.bf16.msra.mxu0 %v90
  %116 = vmatprep.subr.bf16.mxu0 0
  %117 = vmatpush1.bf16.msra.mxu0 %v89
  %118 = vmatprep.subr.bf16.mxu0 0
  %119 = vmatpush1.bf16.msra.mxu0 %v88
  %120 = vmatprep.subr.bf16.mxu0 0
  %121 = vmatpush2.bf16.msra.mxu0 0
  %122 = vmatprep.subr.bf16.mxu0 0
  %123 = vmatpush2.bf16.msra.mxu0 0
  %124 = vmatprep.subr.bf16.mxu0 0
  %125 = vmatpush2.bf16.msra.mxu0 0
  %126 = vmatprep.subr.bf16.mxu0 0
  %127 = vmatpush2.bf16.msra.mxu0 0
  %128 = vmatprep.subr.bf16.mxu0 0
  %129 = vmatpush2.bf16.msra.mxu0 0
  %130 = vmatprep.subr.bf16.mxu0 0
  %131 = vmatpush2.bf16.msra.mxu0 0
  %132 = vmatprep.subr.bf16.mxu0 0
  %133 = vmatpush2.bf16.msra.mxu0 0
  %134 = vmatprep.subr.bf16.mxu0 0
  %135 = vmatpush2.bf16.msra.mxu0 0
  %136 = vmatprep.mubr.bf16.mxu0 0
  %137 = vmatmul.mubr.bf16.gmra.mxu0 %v54
  %v138 = vpop.f32.mrf.mxu0
  %v139 = vadd.f32 0.0, %v138
  %v140 = vpop.f32.mrf.mxu0
  %v141 = vpop.f32.mrf.mxu0
  %v142 = vadd.f32 0.0, %v141
  %v143 = vpop.f32.mrf.mxu0
  %144 = vdwg.mxu0
  %v145 = vadd.f32 %v30, %v139
  %v146 = vadd.f32 %v31, %v142
  %147 = vst [vmem:[#allocation2] sm:$0xff] %v145
  %148 = vst [vmem:[#allocation2 + $0x8] sm:$0xff] %v146
  // Predicated region
  $region30: #{transformer_forward.27} parent=0 // pred_check
    %p149 = pneg %p24
  $region31: #{transformer_forward.27} parent=0 // pred_check_branch
    %151 = sbr.rel (%p149) target = $region33
  $region32: #{transformer_forward.27} parent=0 // pred_region
    %v152 = vld [vmem:[#allocation2] sm:$0xff]
    %v153 = vld [vmem:[#allocation2 + $0x8] sm:$0xff]
    %v154 = vld [vmem:[%s2] sm:$0x1]
    %v156 = vlaneseq
    %v157 = vshrl.u32 %v156, 7
    %v158 = vsub.s32 0, %v157
    %v159 = vrot.slane %v154, %v158
    %v161 = vadd.f32 %v152, %v159
    %v162 = vadd.f32 %v153, %v159
    %v163 = vld [vmem:[%s3] sm:$0xf]
    %v164 = vld [vmem:[%s3 + $0x4] sm:$0xf]
    %v165 = vunpack.c.l.bf16 %v163
    %v166 = vunpack.c.l.bf16 %v164
    %v167 = vadd.f32 %v161, %v165
    %v168 = vadd.f32 %v162, %v166
    %v169 = vld [vmem:[%s4] sm:$0x1]
    %v170 = vld [vmem:[%s5] sm:$0x1]
    %v171 = vlaneseq
    %v172 = vand.u32 %v171, 127
    %vm173 = vcmp.lt.s32.totalorder %v172, 32
    %v174 = vsel %vm173, %v167, 0.0
    %v175 = vsel %vm173, %v168, 0.0
    %176 = vadd.xlane.f32.xlu0 %v174
    %v177 = vpop.xlane.xlu0 %176
    %178 = vadd.xlane.f32.xlu0 %v175
    %v179 = vpop.xlane.xlu0 %178
    %v180 = vrcp.pop 32.0
    %v181 = vmul.f32 %v177, %v180
    %v182 = vmul.f32 %v179, %v180
    %v183 = vsub.f32 %v174, %v181
    %v184 = vsub.f32 %v175, %v182
    %v185 = vsel %vm173, %v183, 0.0
    %v186 = vsel %vm173, %v184, 0.0
    %v187 = vmul.f32 %v185, %v185
    %v188 = vmul.f32 %v186, %v186
    %189 = vadd.xlane.f32.xlu0 %v187
    %v190 = vpop.xlane.xlu0 %189
    %191 = vadd.xlane.f32.xlu0 %v188
    %v192 = vpop.xlane.xlu0 %191
    %v193 = vmul.f32 %v190, %v180
    %v194 = vmul.f32 %v192, %v180
    %v195 = vadd.f32 %v193, 1e-05
    %v196 = vadd.f32 %v194, 1e-05
    %v197 = vrsqrt.pop %v195
    %v198 = vrsqrt.pop %v196
    %v199 = vmul.f32 %v185, %v197
    %v200 = vmul.f32 %v186, %v198
    %v202 = vlaneseq
    %v203 = vshrl.u32 %v202, 7
    %v204 = vsub.s32 0, %v203
    %v205 = vrot.slane %v169, %v204
    %v207 = vmul.f32 %v199, %v205
    %v208 = vmul.f32 %v200, %v205
    %v210 = vlaneseq
    %v211 = vshrl.u32 %v210, 7
    %v212 = vsub.s32 0, %v211
    %v213 = vrot.slane %v170, %v212
    %v215 = vadd.f32 %v207, %v213
    %v216 = vadd.f32 %v208, %v213
    %v217 = vpack.c.bf16 %v216, %v215
    %v219 = vunpack.c.l.b16 %v217
    %v220 = vunpack.c.h.b16 %v217
    %v221 = vpack.c.b16 %v219, %v219
    %v222 = vpack.c.b16 %v220, %v220
    %225 = vst [vmem:[%s6] sm:$0xf] %v221
    %226 = vst [vmem:[%s6 + $0x4] sm:$0xf] %v222
  $region33: #{transformer_forward.27} parent=0 // pred_fallthru
    _
  // Predicated region
  $region34: #{transformer_forward.27} parent=0 // pred_check
    _
  $region35: #{transformer_forward.27} parent=0 // pred_check_branch
    %228 = sbr.rel (0) target = $region37
  $region36: #{transformer_forward.27} parent=0 // pred_region
    _
  $region37: #{transformer_forward.27} parent=0 // pred_fallthru
    _
  // Predicated region
  $region38: #{transformer_forward.27} parent=0 // pred_check
    _
  $region39: #{transformer_forward.27} parent=0 // pred_check_branch
    %230 = sbr.rel (0) target = $region41
  $region40: #{transformer_forward.27} parent=0 // pred_region
    _
  $region41: #{transformer_forward.27} parent=0 // pred_fallthru
    _

// kernel: transformer_forward.26
$region0: #{transformer_forward.26}
  #allocation0 [shape = 'u32[]', space=smem, size = 0x4, offset = 0x4, fixed_abs, tag = 'smem constant byte address 0x4 - core index']
  #allocation1 [shape = 'u32[144,128]{1,0:T(1,128)}', space=vmem, size = 0x12000, scoped, tag = 'internal scratch']
  %s0 = inlined_call_operand.vmem [shape: f32[2,1,128], index: 0, kind: input, shape index: {}]
  %s1 = inlined_call_operand.vmem [shape: bf16[2,8,32], index: 1, kind: input, shape index: {}]
  %s2 = inlined_call_operand.vmem [shape: bf16[2,128,32], index: 2, kind: input, shape index: {}]
  %s3 = inlined_call_operand.vmem [shape: bf16[2,128,32], index: 3, kind: input, shape index: {}]
  %s4 = inlined_call_operand.vmem [shape: bf16[2,8,32], index: 4, kind: output, shape index: {}]
  %s5 = sld [smem:[#allocation0]]
  $region49: #{transformer_forward.26} parent=0
    _
  %s7 = ssub.s32 1, %s5
  %s8 = scalar_select 0, %s7, %s5
  loop: start=0, step=1, limit=4
  $region2: #{transformer_forward.26} parent=0 // loop_pre_header
    _
  $region3: #{transformer_forward.26} parent=0 // loop_header
    %s10 = sphi 0, %s14
    %p11 = scmp.ge.s32.totalorder %s10, 4
    %s17 = sphi 0, %s29
    %s18 = sphi 0, %s25
    %s19 = sphi 0, %s17
    %s20 = sphi 0, %s18
    %s21 = sphi 0, %s19
    %s22 = sphi 0, %s20
    %s32 = sphi 0, %s34
    %s35 = sphi 0, %s32
    %s36 = sphi 0, %s35
    %s52 = sphi 0, %s36
    %s60 = sphi 0, %s62
    %s63 = sphi 0, %s60
    %s64 = sphi 0, %s63
    %s80 = sphi 0, %s64
    %s86 = sphi 0, %s88
    %s89 = sphi 0, %s86
    %s90 = sphi 0, %s89
    %s106 = sphi 0, %s90
    %s112 = sphi 0, %s114
    %s115 = sphi 0, %s112
    %s116 = sphi 0, %s115
    %s132 = sphi 0, %s116
    %s140 = sphi 0, %s142
    %s143 = sphi 0, %s140
    %s144 = sphi 0, %s143
    %s160 = sphi 0, %s144
  $region4: #{transformer_forward.26} parent=0 // loop_header_branch
    %13 = sbr.rel (%p11) target = $region8
  $region5: #{transformer_forward.26} parent=0 // loop_body
    %s15 = ssub.s32 %s10, 1
    %s16 = ssub.s32 %s10, 2
    %s23 = sadd.s32 1, %s18
    %p24 = scmp.ge.s32.totalorder %s23, 1
    %s25 = scalar_select %p24, 0, %s23
    %s26 = sadd.s32 1, %s17
    %s27 = scalar_select %p24, %s26, %s17
    %p28 = scmp.ge.s32.totalorder %s27, 2
    %s29 = scalar_select %p28, 0, %s27
    %s30 = ssub.s32 %s17, %s29
    %p31 = scmp.eq.s32.totalorder %s30, 0
    %s33 = sadd.s32 %s32, 1
    %s34 = scalar_select %p31, %s32, %s33
    %p37 = pneg %p31
    %p38 = scmp.eq.s32.totalorder %s10, 1
    %p39 = por %p37, %p38
    %p40 = scmp.ne.s32.totalorder %s32, %s35
    %p41 = scmp.eq.s32.totalorder %s10, 0
    %p42 = por %p40, %p41
    %p43 = scmp.ne.s32.totalorder %s32, %s35
    %p44 = scmp.eq.s32.totalorder %s15, 1
    %p45 = por %p43, %p44
    %p46 = scmp.ne.s32.totalorder %s35, %s36
    %p47 = scmp.eq.s32.totalorder %s15, 0
    %p48 = por %p46, %p47
    %p49 = scmp.ne.s32.totalorder %s35, %s36
    %p50 = scmp.eq.s32.totalorder %s16, 1
    %p51 = por %p49, %p50
    %p53 = scmp.ne.s32.totalorder %s36, %s52
    %p54 = scmp.eq.s32.totalorder %s16, 0
    %p55 = por %p53, %p54
    %s56 = ssub.s32 %s17, %s29
    %s57 = ssub.s32 %s18, %s25
    %s58 = sor.u32 %s56, %s57
    %p59 = scmp.eq.s32.totalorder %s58, 0
    %s61 = sadd.s32 %s60, 1
    %s62 = scalar_select %p59, %s60, %s61
    %p65 = pneg %p59
    %p66 = scmp.eq.s32.totalorder %s10, 1
    %p67 = por %p65, %p66
    %p68 = scmp.ne.s32.totalorder %s60, %s63
    %p69 = scmp.eq.s32.totalorder %s10, 0
    %p70 = por %p68, %p69
    %p71 = scmp.ne.s32.totalorder %s60, %s63
    %p72 = scmp.eq.s32.totalorder %s15, 1
    %p73 = por %p71, %p72
    %p74 = scmp.ne.s32.totalorder %s63, %s64
    %p75 = scmp.eq.s32.totalorder %s15, 0
    %p76 = por %p74, %p75
    %p77 = scmp.ne.s32.totalorder %s63, %s64
    %p78 = scmp.eq.s32.totalorder %s16, 1
    %p79 = por %p77, %p78
    %p81 = scmp.ne.s32.totalorder %s64, %s80
    %p82 = scmp.eq.s32.totalorder %s16, 0
    %p83 = por %p81, %p82
    %s84 = ssub.s32 %s17, %s29
    %p85 = scmp.eq.s32.totalorder %s84, 0
    %s87 = sadd.s32 %s86, 1
    %s88 = scalar_select %p85, %s86, %s87
    %p91 = pneg %p85
    %p92 = scmp.eq.s32.totalorder %s10, 1
    %p93 = por %p91, %p92
    %p94 = scmp.ne.s32.totalorder %s86, %s89
    %p95 = scmp.eq.s32.totalorder %s10, 0
    %p96 = por %p94, %p95
    %p97 = scmp.ne.s32.totalorder %s86, %s89
    %p98 = scmp.eq.s32.totalorder %s15, 1
    %p99 = por %p97, %p98
    %p100 = scmp.ne.s32.totalorder %s89, %s90
    %p101 = scmp.eq.s32.totalorder %s15, 0
    %p102 = por %p100, %p101
    %p103 = scmp.ne.s32.totalorder %s89, %s90
    %p104 = scmp.eq.s32.totalorder %s16, 1
    %p105 = por %p103, %p104
    %p107 = scmp.ne.s32.totalorder %s90, %s106
    %p108 = scmp.eq.s32.totalorder %s16, 0
    %p109 = por %p107, %p108
    %s110 = ssub.s32 %s17, %s29
    %p111 = scmp.eq.s32.totalorder %s110, 0
    %s113 = sadd.s32 %s112, 1
    %s114 = scalar_select %p111, %s112, %s113
    %p117 = pneg %p111
    %p118 = scmp.eq.s32.totalorder %s10, 1
    %p119 = por %p117, %p118
    %p120 = scmp.ne.s32.totalorder %s112, %s115
    %p121 = scmp.eq.s32.totalorder %s10, 0
    %p122 = por %p120, %p121
    %p123 = scmp.ne.s32.totalorder %s112, %s115
    %p124 = scmp.eq.s32.totalorder %s15, 1
    %p125 = por %p123, %p124
    %p126 = scmp.ne.s32.totalorder %s115, %s116
    %p127 = scmp.eq.s32.totalorder %s15, 0
    %p128 = por %p126, %p127
    %p129 = scmp.ne.s32.totalorder %s115, %s116
    %p130 = scmp.eq.s32.totalorder %s16, 1
    %p131 = por %p129, %p130
    %p133 = scmp.ne.s32.totalorder %s116, %s132
    %p134 = scmp.eq.s32.totalorder %s16, 0
    %p135 = por %p133, %p134
    %s136 = ssub.s32 %s17, %s29
    %s137 = ssub.s32 %s18, %s25
    %s138 = sor.u32 %s136, %s137
    %p139 = scmp.eq.s32.totalorder %s138, 0
    %s141 = sadd.s32 %s140, 1
    %s142 = scalar_select %p139, %s140, %s141
    %p145 = pneg %p139
    %p146 = scmp.eq.s32.totalorder %s10, 1
    %p147 = por %p145, %p146
    %p148 = scmp.ne.s32.totalorder %s140, %s143
    %p149 = scmp.eq.s32.totalorder %s10, 0
    %p150 = por %p148, %p149
    %p151 = scmp.ne.s32.totalorder %s140, %s143
    %p152 = scmp.eq.s32.totalorder %s15, 1
    %p153 = por %p151, %p152
    %p154 = scmp.ne.s32.totalorder %s143, %s144
    %p155 = scmp.eq.s32.totalorder %s15, 0
    %p156 = por %p154, %p155
    %p157 = scmp.ne.s32.totalorder %s143, %s144
    %p158 = scmp.eq.s32.totalorder %s16, 1
    %p159 = por %p157, %p158
    %p161 = scmp.ne.s32.totalorder %s144, %s160
    %p162 = scmp.eq.s32.totalorder %s16, 0
    %p163 = por %p161, %p162
    %p164 = scmp.le.s32.totalorder 1, %s10
    %p165 = scmp.lt.s32.totalorder %s10, 3
    %p166 = pnand %p164, %p165
    %p167 = pneg %p166
    // Predicated region
    $region9: #{transformer_forward.26} parent=5 // pred_check
      _
    $region10: #{transformer_forward.26} parent=5 // pred_check_branch
      %169 = sbr.rel (%p166) target = $region12
    $region11: #{transformer_forward.26} parent=5 // pred_region
      %s170 = ssub.s32 %s10, 1
    $region12: #{transformer_forward.26} parent=5 // pred_fallthru
      _
    %p171 = scmp.lt.s32.totalorder %s10, 2
    // Predicated region
    $region13: #{transformer_forward.26} parent=5 // pred_check
      %p172 = pneg %p171
    $region14: #{transformer_forward.26} parent=5 // pred_check_branch
      %174 = sbr.rel (%p172) target = $region16
    $region15: #{transformer_forward.26} parent=5 // pred_region
      // Predicated region
      $region17: #{transformer_forward.26} parent=15 // pred_check
        %p175 = pneg %p42
      $region18: #{transformer_forward.26} parent=15 // pred_check_branch
        %177 = sbr.rel (%p175) target = $region20
      $region19: #{transformer_forward.26} parent=15 // pred_region
        %p178 = scmp.lt.s32.totalorder %s17, 1
        %s179 = scalar_select %p178, %s17, 1
        %s180 = scalar_lea.vmem %s0, %s179
      $region20: #{transformer_forward.26} parent=15 // pred_fallthru
        _
      // Predicated region
      $region21: #{transformer_forward.26} parent=15 // pred_check
        %p181 = pneg %p70
      $region22: #{transformer_forward.26} parent=15 // pred_check_branch
        %183 = sbr.rel (%p181) target = $region24
      $region23: #{transformer_forward.26} parent=15 // pred_region
        %p184 = scmp.lt.s32.totalorder %s17, 1
        %s185 = scalar_select %p184, %s17, 1
        %p186 = scmp.lt.s32.totalorder %s18, 0
        %s187 = scalar_select %p186, %s18, 0
        %s188 = sadd.s32 %s187, %s185
        %s189 = smul.addr %s188, 4
        %s190 = scalar_lea.vmem %s1, %s189
      $region24: #{transformer_forward.26} parent=15 // pred_fallthru
        _
      // Predicated region
      $region25: #{transformer_forward.26} parent=15 // pred_check
        %p191 = pneg %p96
      $region26: #{transformer_forward.26} parent=15 // pred_check_branch
        %193 = sbr.rel (%p191) target = $region28
      $region27: #{transformer_forward.26} parent=15 // pred_region
        %p194 = scmp.lt.s32.totalorder %s17, 1
        %s195 = scalar_select %p194, %s17, 1
        %s196 = smul.addr %s195, 16
        %s197 = smul.addr %s196, 4
        %s198 = scalar_lea.vmem %s2, %s197
      $region28: #{transformer_forward.26} parent=15 // pred_fallthru
        _
      // Predicated region
      $region29: #{transformer_forward.26} parent=15 // pred_check
        %p199 = pneg %p122
      $region30: #{transformer_forward.26} parent=15 // pred_check_branch
        %201 = sbr.rel (%p199) target = $region32
      $region31: #{transformer_forward.26} parent=15 // pred_region
        %p202 = scmp.lt.s32.totalorder %s17, 1
        %s203 = scalar_select %p202, %s17, 1
        %s204 = smul.addr %s203, 16
        %s205 = smul.addr %s204, 4
        %s206 = scalar_lea.vmem %s3, %s205
      $region32: #{transformer_forward.26} parent=15 // pred_fallthru
        _
    $region16: #{transformer_forward.26} parent=5 // pred_fallthru
      _
    %p207 = scmp.le.s32.totalorder 1, %s10
    %p208 = scmp.lt.s32.totalorder %s10, 3
    %p209 = pnand %p207, %p208
    %p210 = pneg %p209
    // Predicated region
    $region33: #{transformer_forward.26} parent=5 // pred_check
      _
    $region34: #{transformer_forward.26} parent=5 // pred_check_branch
      %212 = sbr.rel (%p209) target = $region36
    $region35: #{transformer_forward.26} parent=5 // pred_region
      %s213 = ssub.s32 %s10, 1
      %p214 = scmp.lt.s32.totalorder %s19, 1
      %s215 = scalar_select %p214, %s19, 1
      %s216 = scalar_lea.vmem %s0, %s215
      %p217 = pneg %p48
      %p218 = pneg %p45
      %p219 = scmp.lt.s32.totalorder %s19, 1
      %s220 = scalar_select %p219, %s19, 1
      %p221 = scmp.lt.s32.totalorder %s20, 0
      %s222 = scalar_select %p221, %s20, 0
      %s223 = sadd.s32 %s222, %s220
      %s224 = smul.addr %s223, 4
      %s225 = scalar_lea.vmem %s1, %s224
      %p226 = pneg %p76
      %p227 = pneg %p73
      %p228 = scmp.lt.s32.totalorder %s19, 1
      %s229 = scalar_select %p228, %s19, 1
      %s230 = smul.addr %s229, 16
      %s231 = smul.addr %s230, 4
      %s232 = scalar_lea.vmem %s2, %s231
      %p233 = pneg %p102
      %p234 = pneg %p99
      %p235 = scmp.lt.s32.totalorder %s19, 1
      %s236 = scalar_select %p235, %s19, 1
      %s237 = smul.addr %s236, 16
      %s238 = smul.addr %s237, 4
      %s239 = scalar_lea.vmem %s3, %s238
      %p240 = pneg %p128
      %p241 = pneg %p125
      %p242 = pneg %p156
      %p243 = pneg %p153
      %p244 = scmp.lt.s32.totalorder %s19, 1
      %s245 = scalar_select %p244, %s19, 1
      %p246 = scmp.lt.s32.totalorder %s20, 0
      %s247 = scalar_select %p246, %s20, 0
      %s248 = sadd.s32 %s247, %s245
      %s249 = smul.addr %s248, 4
      %s250 = scalar_lea.vmem %s4, %s249
      %p251 = scmp.lt.s32.totalorder %s19, 1
      %s252 = scalar_select %p251, %s19, 1
      %s253 = scalar_lea.vmem %s0, %s252
      %p254 = scmp.lt.s32.totalorder %s19, 1
      %s255 = scalar_select %p254, %s19, 1
      %p256 = scmp.lt.s32.totalorder %s20, 0
      %s257 = scalar_select %p256, %s20, 0
      %s258 = sadd.s32 %s257, %s255
      %s259 = smul.addr %s258, 4
      %s260 = scalar_lea.vmem %s1, %s259
      %p261 = scmp.lt.s32.totalorder %s19, 1
      %s262 = scalar_select %p261, %s19, 1
      %s263 = smul.addr %s262, 16
      %s264 = smul.addr %s263, 4
      %s265 = scalar_lea.vmem %s2, %s264
      %p266 = scmp.lt.s32.totalorder %s19, 1
      %s267 = scalar_select %p266, %s19, 1
      %s268 = smul.addr %s267, 16
      %s269 = smul.addr %s268, 4
      %s270 = scalar_lea.vmem %s3, %s269
      %p271 = scmp.lt.s32.totalorder %s19, 1
      %s272 = scalar_select %p271, %s19, 1
      %p273 = scmp.lt.s32.totalorder %s20, 0
      %s274 = scalar_select %p273, %s20, 0
      %s275 = sadd.s32 %s274, %s272
      %s276 = smul.addr %s275, 4
      %s277 = scalar_lea.vmem %s4, %s276
      %v279 = vld [vmem:[%s260] sm:$0xf]
      %v280 = vunpack.c.l.bf16 %v279
      %v281 = vmul.f32 %v280, 0.35355338
      %v282 = vpack.c.bf16 %v281, %v281
      %v283 = vld [vmem:[%s265] sm:$0xf]
      %v284 = vld [vmem:[%s265 + $0x4] sm:$0xf]
      %v285 = vld [vmem:[%s265 + $0x8] sm:$0xf]
      %v286 = vld [vmem:[%s265 + $0xc] sm:$0xf]
      %v287 = vld [vmem:[%s265 + $0x10] sm:$0xf]
      %v288 = vld [vmem:[%s265 + $0x14] sm:$0xf]
      %v289 = vld [vmem:[%s265 + $0x18] sm:$0xf]
      %v290 = vld [vmem:[%s265 + $0x1c] sm:$0xf]
      %v291 = vld [vmem:[%s265 + $0x20] sm:$0xf]
      %v292 = vld [vmem:[%s265 + $0x24] sm:$0xf]
      %v293 = vld [vmem:[%s265 + $0x28] sm:$0xf]
      %v294 = vld [vmem:[%s265 + $0x2c] sm:$0xf]
      %v295 = vld [vmem:[%s265 + $0x30] sm:$0xf]
      %v296 = vld [vmem:[%s265 + $0x34] sm:$0xf]
      %v297 = vld [vmem:[%s265 + $0x38] sm:$0xf]
      %v298 = vld [vmem:[%s265 + $0x3c] sm:$0xf]
      %v299 = vld [vmem:[%s270] sm:$0xf]
      %v300 = vld [vmem:[%s270 + $0x4] sm:$0xf]
      %v301 = vld [vmem:[%s270 + $0x8] sm:$0xf]
      %v302 = vld [vmem:[%s270 + $0xc] sm:$0xf]
      %v303 = vld [vmem:[%s270 + $0x10] sm:$0xf]
      %v304 = vld [vmem:[%s270 + $0x14] sm:$0xf]
      %v305 = vld [vmem:[%s270 + $0x18] sm:$0xf]
      %v306 = vld [vmem:[%s270 + $0x1c] sm:$0xf]
      %v307 = vld [vmem:[%s270 + $0x20] sm:$0xf]
      %v308 = vld [vmem:[%s270 + $0x24] sm:$0xf]
      %v309 = vld [vmem:[%s270 + $0x28] sm:$0xf]
      %v310 = vld [vmem:[%s270 + $0x2c] sm:$0xf]
      %v311 = vld [vmem:[%s270 + $0x30] sm:$0xf]
      %v312 = vld [vmem:[%s270 + $0x34] sm:$0xf]
      %v313 = vld [vmem:[%s270 + $0x38] sm:$0xf]
      %v314 = vld [vmem:[%s270 + $0x3c] sm:$0xf]
      %v315 = vld [vmem:[%s253] sm:$0x1]
      %v317 = vlaneseq
      %v318 = vshrl.u32 %v317, 7
      %v319 = vsub.s32 0, %v318
      %v320 = vrot.slane %v315, %v319
      %v338 = vunpack.c.l.b16 %v283
      %v339 = vunpack.c.l.b16 %v284
      %v340 = vunpack.c.l.b16 %v285
      %v341 = vunpack.c.l.b16 %v286
      %v342 = vunpack.c.l.b16 %v287
      %v343 = vunpack.c.l.b16 %v288
      %v344 = vunpack.c.l.b16 %v289
      %v345 = vunpack.c.l.b16 %v290
      %v346 = vunpack.c.l.b16 %v291
      %v347 = vunpack.c.l.b16 %v292
      %v348 = vunpack.c.l.b16 %v293
      %v349 = vunpack.c.l.b16 %v294
      %v350 = vunpack.c.l.b16 %v295
      %v351 = vunpack.c.l.b16 %v296
      %v352 = vunpack.c.l.b16 %v297
      %v353 = vunpack.c.l.b16 %v298
      %v354 = vpack.c.b16 %v339, %v338
      %v355 = vpack.c.b16 %v341, %v340
      %v356 = vpack.c.b16 %v343, %v342
      %v357 = vpack.c.b16 %v345, %v344
      %v358 = vpack.c.b16 %v347, %v346
      %v359 = vpack.c.b16 %v349, %v348
      %v360 = vpack.c.b16 %v351, %v350
      %v361 = vpack.c.b16 %v353, %v352
      %vm362 = vcmask 64512
      %v364 = vsel %vm362, %v282, 0
      %v367 = vsel %vm362, %v354, 0
      %v370 = vsel %vm362, %v355, 0
      %v373 = vsel %vm362, %v356, 0
      %v376 = vsel %vm362, %v357, 0
      %v379 = vsel %vm362, %v358, 0
      %v382 = vsel %vm362, %v359, 0
      %v385 = vsel %vm362, %v360, 0
      %v388 = vsel %vm362, %v361, 0
      %390 = vmatprep.subr.bf16.mxu0 0
      %391 = vmatpush1.bf16.xpose.msra.mxu0 %v388
      %392 = vmatprep.subr.bf16.mxu0 0
      %393 = vmatpush1.bf16.xpose.msra.mxu0 %v385
      %394 = vmatprep.subr.bf16.mxu0 0
      %395 = vmatpush1.bf16.xpose.msra.mxu0 %v382
      %396 = vmatprep.subr.bf16.mxu0 0
      %397 = vmatpush1.bf16.xpose.msra.mxu0 %v379
      %398 = vmatprep.subr.bf16.mxu0 0
      %399 = vmatpush1.bf16.xpose.msra.mxu0 %v376
      %400 = vmatprep.subr.bf16.mxu0 0
      %401 = vmatpush1.bf16.xpose.msra.mxu0 %v373
      %402 = vmatprep.subr.bf16.mxu0 0
      %403 = vmatpush1.bf16.xpose.msra.mxu0 %v370
      %404 = vmatprep.subr.bf16.mxu0 0
      %405 = vmatpush1.bf16.xpose.msra.mxu0 %v367
      %406 = vmatprep.subr.bf16.mxu0 0
      %407 = vmatpush2.bf16.xpose.msra.mxu0 0
      %408 = vmatprep.subr.bf16.mxu0 0
      %409 = vmatpush2.bf16.xpose.msra.mxu0 0
      %410 = vmatprep.subr.bf16.mxu0 0
      %411 = vmatpush2.bf16.xpose.msra.mxu0 0
      %412 = vmatprep.subr.bf16.mxu0 0
      %413 = vmatpush2.bf16.xpose.msra.mxu0 0
      %414 = vmatprep.subr.bf16.mxu0 0
      %415 = vmatpush2.bf16.xpose.msra.mxu0 0
      %416 = vmatprep.subr.bf16.mxu0 0
      %417 = vmatpush2.bf16.xpose.msra.mxu0 0
      %418 = vmatprep.subr.bf16.mxu0 0
      %419 = vmatpush2.bf16.xpose.msra.mxu0 0
      %420 = vmatprep.subr.bf16.mxu0 0
      %421 = vmatpush2.bf16.xpose.msra.mxu0 0
      %422 = vmatprep.mubr.bf16.mxu0 0
      %423 = vmatmul.mubr.bf16.gmra.mxu0 %v364
      %v424 = vpop.f32.mrf.mxu0
      %v425 = vadd.f32 %v320, %v424
      %v426 = vpop.f32.mrf.mxu0
      %v427 = vpop.f32.mrf.mxu0
      %v428 = vpop.f32.mrf.mxu0
      %429 = vdwg.mxu0
      %430 = vmax.xlane.f32.xlu0 %v425
      %v431 = vpop.xlane.xlu0 %430
      %v432 = vsub.f32 %v425, %v431
      %v433 = vmul.f32 %v432, 1.442695
      %v434 = vpow.pop %v433
      %435 = vadd.xlane.f32.xlu0 %v434
      %v436 = vpop.xlane.xlu0 %435
      %v437 = vpack.c.bf16 %v434, %v434
      %v454 = vunpack.c.l.b16 %v299
      %v455 = vunpack.c.l.b16 %v300
      %v456 = vunpack.c.l.b16 %v301
      %v457 = vunpack.c.l.b16 %v302
      %v458 = vunpack.c.l.b16 %v303
      %v459 = vunpack.c.l.b16 %v304
      %v460 = vunpack.c.l.b16 %v305
      %v461 = vunpack.c.l.b16 %v306
      %v462 = vunpack.c.l.b16 %v307
      %v463 = vunpack.c.l.b16 %v308
      %v464 = vunpack.c.l.b16 %v309
      %v465 = vunpack.c.l.b16 %v310
      %v466 = vunpack.c.l.b16 %v311
      %v467 = vunpack.c.l.b16 %v312
      %v468 = vunpack.c.l.b16 %v313
      %v469 = vunpack.c.l.b16 %v314
      %v470 = vpack.c.b16 %v455, %v454
      %v471 = vpack.c.b16 %v457, %v456
      %v472 = vpack.c.b16 %v459, %v458
      %v473 = vpack.c.b16 %v461, %v460
      %v474 = vpack.c.b16 %v463, %v462
      %v475 = vpack.c.b16 %v465, %v464
      %v476 = vpack.c.b16 %v467, %v466
      %v477 = vpack.c.b16 %v469, %v468
      %486 = vmatprep.subr.bf16.mxu0 0
      %487 = vmatpush1.bf16.msra.mxu0 %v477
      %488 = vmatprep.subr.bf16.mxu0 0
      %489 = vmatpush1.bf16.msra.mxu0 %v476
      %490 = vmatprep.subr.bf16.mxu0 0
      %491 = vmatpush1.bf16.msra.mxu0 %v475
      %492 = vmatprep.subr.bf16.mxu0 0
      %493 = vmatpush1.bf16.msra.mxu0 %v474
      %494 = vmatprep.subr.bf16.mxu0 0
      %495 = vmatpush1.bf16.msra.mxu0 %v473
      %496 = vmatprep.subr.bf16.mxu0 0
      %497 = vmatpush1.bf16.msra.mxu0 %v472
      %498 = vmatprep.subr.bf16.mxu0 0
      %499 = vmatpush1.bf16.msra.mxu0 %v471
      %500 = vmatprep.subr.bf16.mxu0 0
      %501 = vmatpush1.bf16.msra.mxu0 %v470
      %502 = vmatprep.subr.bf16.mxu0 0
      %503 = vmatpush2.bf16.msra.mxu0 0
      %504 = vmatprep.subr.bf16.mxu0 0
      %505 = vmatpush2.bf16.msra.mxu0 0
      %506 = vmatprep.subr.bf16.mxu0 0
      %507 = vmatpush2.bf16.msra.mxu0 0
      %508 = vmatprep.subr.bf16.mxu0 0
      %509 = vmatpush2.bf16.msra.mxu0 0
      %510 = vmatprep.subr.bf16.mxu0 0
      %511 = vmatpush2.bf16.msra.mxu0 0
      %512 = vmatprep.subr.bf16.mxu0 0
      %513 = vmatpush2.bf16.msra.mxu0 0
      %514 = vmatprep.subr.bf16.mxu0 0
      %515 = vmatpush2.bf16.msra.mxu0 0
      %516 = vmatprep.subr.bf16.mxu0 0
      %517 = vmatpush2.bf16.msra.mxu0 0
      %518 = vmatprep.mubr.bf16.mxu0 0
      %519 = vmatmul.mubr.bf16.gmra.mxu0 %v437
      %v520 = vpop.f32.mrf.mxu0
      %v521 = vadd.f32 0.0, %v520
      %v522 = vpop.f32.mrf.mxu0
      %v523 = vpop.f32.mrf.mxu0
      %v524 = vpop.f32.mrf.mxu0
      %525 = vdwg.mxu0
      %v526 = vrcp.pop %v436
      %v527 = vmul.f32 %v521, %v526
      %529 = vrot.lane.b32.xlu0 %v282, 120
      %v530 = vpop.permute.xlu0 %529
      %531 = vrot.lane.b32.xlu0 %v354, 120
      %v532 = vpop.permute.xlu0 %531
      %533 = vrot.lane.b32.xlu0 %v355, 120
      %v534 = vpop.permute.xlu0 %533
      %535 = vrot.lane.b32.xlu0 %v356, 120
      %v536 = vpop.permute.xlu0 %535
      %537 = vrot.lane.b32.xlu0 %v357, 120
      %v538 = vpop.permute.xlu0 %537
      %539 = vrot.lane.b32.xlu0 %v358, 120
      %v540 = vpop.permute.xlu0 %539
      %541 = vrot.lane.b32.xlu0 %v359, 120
      %v542 = vpop.permute.xlu0 %541
      %543 = vrot.lane.b32.xlu0 %v360, 120
      %v544 = vpop.permute.xlu0 %543
      %545 = vrot.lane.b32.xlu0 %v361, 120
      %v546 = vpop.permute.xlu0 %545
      %v548 = vsel %vm362, %v530, 0
      %v551 = vsel %vm362, %v532, 0
      %v554 = vsel %vm362, %v534, 0
      %v557 = vsel %vm362, %v536, 0
      %v560 = vsel %vm362, %v538, 0
      %v563 = vsel %vm362, %v540, 0
      %v566 = vsel %vm362, %v542, 0
      %v569 = vsel %vm362, %v544, 0
      %v572 = vsel %vm362, %v546, 0
      %574 = vmatprep.subr.bf16.mxu0 0
      %575 = vmatpush1.bf16.xpose.msra.mxu0 %v572
      %576 = vmatprep.subr.bf16.mxu0 0
      %577 = vmatpush1.bf16.xpose.msra.mxu0 %v569
      %578 = vmatprep.subr.bf16.mxu0 0
      %579 = vmatpush1.bf16.xpose.msra.mxu0 %v566
      %580 = vmatprep.subr.bf16.mxu0 0
      %581 = vmatpush1.bf16.xpose.msra.mxu0 %v563
      %582 = vmatprep.subr.bf16.mxu0 0
      %583 = vmatpush1.bf16.xpose.msra.mxu0 %v560
      %584 = vmatprep.subr.bf16.mxu0 0
      %585 = vmatpush1.bf16.xpose.msra.mxu0 %v557
      %586 = vmatprep.subr.bf16.mxu0 0
      %587 = vmatpush1.bf16.xpose.msra.mxu0 %v554
      %588 = vmatprep.subr.bf16.mxu0 0
      %589 = vmatpush1.bf16.xpose.msra.mxu0 %v551
      %590 = vmatprep.subr.bf16.mxu0 0
      %591 = vmatpush2.bf16.xpose.msra.mxu0 0
      %592 = vmatprep.subr.bf16.mxu0 0
      %593 = vmatpush2.bf16.xpose.msra.mxu0 0
      %594 = vmatprep.subr.bf16.mxu0 0
      %595 = vmatpush2.bf16.xpose.msra.mxu0 0
      %596 = vmatprep.subr.bf16.mxu0 0
      %597 = vmatpush2.bf16.xpose.msra.mxu0 0
      %598 = vmatprep.subr.bf16.mxu0 0
      %599 = vmatpush2.bf16.xpose.msra.mxu0 0
      %600 = vmatprep.subr.bf16.mxu0 0
      %601 = vmatpush2.bf16.xpose.msra.mxu0 0
      %602 = vmatprep.subr.bf16.mxu0 0
      %603 = vmatpush2.bf16.xpose.msra.mxu0 0
      %604 = vmatprep.subr.bf16.mxu0 0
      %605 = vmatpush2.bf16.xpose.msra.mxu0 0
      %606 = vmatprep.mubr.bf16.mxu0 0
      %607 = vmatmul.mubr.bf16.gmra.mxu0 %v548
      %v608 = vpop.f32.mrf.mxu0
      %v609 = vadd.f32 %v320, %v608
      %v610 = vpop.f32.mrf.mxu0
      %v611 = vpop.f32.mrf.mxu0
      %v612 = vpop.f32.mrf.mxu0
      %613 = vdwg.mxu0
      %614 = vmax.xlane.f32.xlu0 %v609
      %v615 = vpop.xlane.xlu0 %614
      %v616 = vsub.f32 %v609, %v615
      %v617 = vmul.f32 %v616, 1.442695
      %v618 = vpow.pop %v617
      %619 = vadd.xlane.f32.xlu0 %v618
      %v620 = vpop.xlane.xlu0 %619
      %v621 = vpack.c.bf16 %v618, %v618
      %622 = vrot.lane.b32.xlu0 %v470, 120
      %v623 = vpop.permute.xlu0 %622
      %624 = vrot.lane.b32.xlu0 %v471, 120
      %v625 = vpop.permute.xlu0 %624
      %626 = vrot.lane.b32.xlu0 %v472, 120
      %v627 = vpop.permute.xlu0 %626
      %628 = vrot.lane.b32.xlu0 %v473, 120
      %v629 = vpop.permute.xlu0 %628
      %630 = vrot.lane.b32.xlu0 %v474, 120
      %v631 = vpop.permute.xlu0 %630
      %632 = vrot.lane.b32.xlu0 %v475, 120
      %v633 = vpop.permute.xlu0 %632
      %634 = vrot.lane.b32.xlu0 %v476, 120
      %v635 = vpop.permute.xlu0 %634
      %636 = vrot.lane.b32.xlu0 %v477, 120
      %v637 = vpop.permute.xlu0 %636
      %646 = vmatprep.subr.bf16.mxu0 0
      %647 = vmatpush1.bf16.msra.mxu0 %v637
      %648 = vmatprep.subr.bf16.mxu0 0
      %649 = vmatpush1.bf16.msra.mxu0 %v635
      %650 = vmatprep.subr.bf16.mxu0 0
      %651 = vmatpush1.bf16.msra.mxu0 %v633
      %652 = vmatprep.subr.bf16.mxu0 0
      %653 = vmatpush1.bf16.msra.mxu0 %v631
      %654 = vmatprep.subr.bf16.mxu0 0
      %655 = vmatpush1.bf16.msra.mxu0 %v629
      %656 = vmatprep.subr.bf16.mxu0 0
      %657 = vmatpush1.bf16.msra.mxu0 %v627
      %658 = vmatprep.subr.bf16.mxu0 0
      %659 = vmatpush1.bf16.msra.mxu0 %v625
      %660 = vmatprep.subr.bf16.mxu0 0
      %661 = vmatpush1.bf16.msra.mxu0 %v623
      %662 = vmatprep.subr.bf16.mxu0 0
      %663 = vmatpush2.bf16.msra.mxu0 0
      %664 = vmatprep.subr.bf16.mxu0 0
      %665 = vmatpush2.bf16.msra.mxu0 0
      %666 = vmatprep.subr.bf16.mxu0 0
      %667 = vmatpush2.bf16.msra.mxu0 0
      %668 = vmatprep.subr.bf16.mxu0 0
      %669 = vmatpush2.bf16.msra.mxu0 0
      %670 = vmatprep.subr.bf16.mxu0 0
      %671 = vmatpush2.bf16.msra.mxu0 0
      %672 = vmatprep.subr.bf16.mxu0 0
      %673 = vmatpush2.bf16.msra.mxu0 0
      %674 = vmatprep.subr.bf16.mxu0 0
      %675 = vmatpush2.bf16.msra.mxu0 0
      %676 = vmatprep.subr.bf16.mxu0 0
      %677 = vmatpush2.bf16.msra.mxu0 0
      %678 = vmatprep.mubr.bf16.mxu0 0
      %679 = vmatmul.mubr.bf16.gmra.mxu0 %v621
      %v680 = vpop.f32.mrf.mxu0
      %v681 = vadd.f32 0.0, %v680
      %v682 = vpop.f32.mrf.mxu0
      %v683 = vpop.f32.mrf.mxu0
      %v684 = vpop.f32.mrf.mxu0
      %685 = vdwg.mxu0
      %v686 = vrcp.pop %v620
      %v687 = vmul.f32 %v681, %v686
      %688 = vrot.lane.b32.xlu0 %v282, 112
      %v689 = vpop.permute.xlu0 %688
      %690 = vrot.lane.b32.xlu0 %v354, 112
      %v691 = vpop.permute.xlu0 %690
      %692 = vrot.lane.b32.xlu0 %v355, 112
      %v693 = vpop.permute.xlu0 %692
      %694 = vrot.lane.b32.xlu0 %v356, 112
      %v695 = vpop.permute.xlu0 %694
      %696 = vrot.lane.b32.xlu0 %v357, 112
      %v697 = vpop.permute.xlu0 %696
      %698 = vrot.lane.b32.xlu0 %v358, 112
      %v699 = vpop.permute.xlu0 %698
      %700 = vrot.lane.b32.xlu0 %v359, 112
      %v701 = vpop.permute.xlu0 %700
      %702 = vrot.lane.b32.xlu0 %v360, 112
      %v703 = vpop.permute.xlu0 %702
      %704 = vrot.lane.b32.xlu0 %v361, 112
      %v705 = vpop.permute.xlu0 %704
      %v707 = vsel %vm362, %v689, 0
      %v710 = vsel %vm362, %v691, 0
      %v713 = vsel %vm362, %v693, 0
      %v716 = vsel %vm362, %v695, 0
      %v719 = vsel %vm362, %v697, 0
      %v722 = vsel %vm362, %v699, 0
      %v725 = vsel %vm362, %v701, 0
      %v728 = vsel %vm362, %v703, 0
      %v731 = vsel %vm362, %v705, 0
      %733 = vmatprep.subr.bf16.mxu0 0
      %734 = vmatpush1.bf16.xpose.msra.mxu0 %v731
      %735 = vmatprep.subr.bf16.mxu0 0
      %736 = vmatpush1.bf16.xpose.msra.mxu0 %v728
      %737 = vmatprep.subr.bf16.mxu0 0
      %738 = vmatpush1.bf16.xpose.msra.mxu0 %v725
      %739 = vmatprep.subr.bf16.mxu0 0
      %740 = vmatpush1.bf16.xpose.msra.mxu0 %v722
      %741 = vmatprep.subr.bf16.mxu0 0
      %742 = vmatpush1.bf16.xpose.msra.mxu0 %v719
      %743 = vmatprep.subr.bf16.mxu0 0
      %744 = vmatpush1.bf16.xpose.msra.mxu0 %v716
      %745 = vmatprep.subr.bf16.mxu0 0
      %746 = vmatpush1.bf16.xpose.msra.mxu0 %v713
      %747 = vmatprep.subr.bf16.mxu0 0
      %748 = vmatpush1.bf16.xpose.msra.mxu0 %v710
      %749 = vmatprep.subr.bf16.mxu0 0
      %750 = vmatpush2.bf16.xpose.msra.mxu0 0
      %751 = vmatprep.subr.bf16.mxu0 0
      %752 = vmatpush2.bf16.xpose.msra.mxu0 0
      %753 = vmatprep.subr.bf16.mxu0 0
      %754 = vmatpush2.bf16.xpose.msra.mxu0 0
      %755 = vmatprep.subr.bf16.mxu0 0
      %756 = vmatpush2.bf16.xpose.msra.mxu0 0
      %757 = vmatprep.subr.bf16.mxu0 0
      %758 = vmatpush2.bf16.xpose.msra.mxu0 0
      %759 = vmatprep.subr.bf16.mxu0 0
      %760 = vmatpush2.bf16.xpose.msra.mxu0 0
      %761 = vmatprep.subr.bf16.mxu0 0
      %762 = vmatpush2.bf16.xpose.msra.mxu0 0
      %763 = vmatprep.subr.bf16.mxu0 0
      %764 = vmatpush2.bf16.xpose.msra.mxu0 0
      %765 = vmatprep.mubr.bf16.mxu0 0
      %766 = vmatmul.mubr.bf16.gmra.mxu0 %v707
      %v767 = vpop.f32.mrf.mxu0
      %v768 = vadd.f32 %v320, %v767
      %v769 = vpop.f32.mrf.mxu0
      %v770 = vpop.f32.mrf.mxu0
      %v771 = vpop.f32.mrf.mxu0
      %772 = vdwg.mxu0
      %773 = vmax.xlane.f32.xlu0 %v768
      %v774 = vpop.xlane.xlu0 %773
      %v775 = vsub.f32 %v768, %v774
      %v776 = vmul.f32 %v775, 1.442695
      %v777 = vpow.pop %v776
      %778 = vadd.xlane.f32.xlu0 %v777
      %v779 = vpop.xlane.xlu0 %778
      %v780 = vpack.c.bf16 %v777, %v777
      %781 = vrot.lane.b32.xlu0 %v470, 112
      %v782 = vpop.permute.xlu0 %781
      %783 = vrot.lane.b32.xlu0 %v471, 112
      %v784 = vpop.permute.xlu0 %783
      %785 = vrot.lane.b32.xlu0 %v472, 112
      %v786 = vpop.permute.xlu0 %785
      %787 = vrot.lane.b32.xlu0 %v473, 112
      %v788 = vpop.permute.xlu0 %787
      %789 = vrot.lane.b32.xlu0 %v474, 112
      %v790 = vpop.permute.xlu0 %789
      %791 = vrot.lane.b32.xlu0 %v475, 112
      %v792 = vpop.permute.xlu0 %791
      %793 = vrot.lane.b32.xlu0 %v476, 112
      %v794 = vpop.permute.xlu0 %793
      %795 = vrot.lane.b32.xlu0 %v477, 112
      %v796 = vpop.permute.xlu0 %795
      %805 = vmatprep.subr.bf16.mxu0 0
      %806 = vmatpush1.bf16.msra.mxu0 %v796
      %807 = vmatprep.subr.bf16.mxu0 0
      %808 = vmatpush1.bf16.msra.mxu0 %v794
      %809 = vmatprep.subr.bf16.mxu0 0
      %810 = vmatpush1.bf16.msra.mxu0 %v792
      %811 = vmatprep.subr.bf16.mxu0 0
      %812 = vmatpush1.bf16.msra.mxu0 %v790
      %813 = vmatprep.subr.bf16.mxu0 0
      %814 = vmatpush1.bf16.msra.mxu0 %v788
      %815 = vmatprep.subr.bf16.mxu0 0
      %816 = vmatpush1.bf16.msra.mxu0 %v786
      %817 = vmatprep.subr.bf16.mxu0 0
      %818 = vmatpush1.bf16.msra.mxu0 %v784
      %819 = vmatprep.subr.bf16.mxu0 0
      %820 = vmatpush1.bf16.msra.mxu0 %v782
      %821 = vmatprep.subr.bf16.mxu0 0
      %822 = vmatpush2.bf16.msra.mxu0 0
      %823 = vmatprep.subr.bf16.mxu0 0
      %824 = vmatpush2.bf16.msra.mxu0 0
      %825 = vmatprep.subr.bf16.mxu0 0
      %826 = vmatpush2.bf16.msra.mxu0 0
      %827 = vmatprep.subr.bf16.mxu0 0
      %828 = vmatpush2.bf16.msra.mxu0 0
      %829 = vmatprep.subr.bf16.mxu0 0
      %830 = vmatpush2.bf16.msra.mxu0 0
      %831 = vmatprep.subr.bf16.mxu0 0
      %832 = vmatpush2.bf16.msra.mxu0 0
      %833 = vmatprep.subr.bf16.mxu0 0
      %834 = vmatpush2.bf16.msra.mxu0 0
      %835 = vmatprep.subr.bf16.mxu0 0
      %836 = vmatpush2.bf16.msra.mxu0 0
      %837 = vmatprep.mubr.bf16.mxu0 0
      %838 = vmatmul.mubr.bf16.gmra.mxu0 %v780
      %v839 = vpop.f32.mrf.mxu0
      %v840 = vadd.f32 0.0, %v839
      %v841 = vpop.f32.mrf.mxu0
      %v842 = vpop.f32.mrf.mxu0
      %v843 = vpop.f32.mrf.mxu0
      %844 = vdwg.mxu0
      %v845 = vrcp.pop %v779
      %v846 = vmul.f32 %v840, %v845
      %847 = vrot.lane.b32.xlu0 %v282, 104
      %v848 = vpop.permute.xlu0 %847
      %849 = vrot.lane.b32.xlu0 %v354, 104
      %v850 = vpop.permute.xlu0 %849
      %851 = vrot.lane.b32.xlu0 %v355, 104
      %v852 = vpop.permute.xlu0 %851
      %853 = vrot.lane.b32.xlu0 %v356, 104
      %v854 = vpop.permute.xlu0 %853
      %855 = vrot.lane.b32.xlu0 %v357, 104
      %v856 = vpop.permute.xlu0 %855
      %857 = vrot.lane.b32.xlu0 %v358, 104
      %v858 = vpop.permute.xlu0 %857
      %859 = vrot.lane.b32.xlu0 %v359, 104
      %v860 = vpop.permute.xlu0 %859
      %861 = vrot.lane.b32.xlu0 %v360, 104
      %v862 = vpop.permute.xlu0 %861
      %863 = vrot.lane.b32.xlu0 %v361, 104
      %v864 = vpop.permute.xlu0 %863
      %v866 = vsel %vm362, %v848, 0
      %v869 = vsel %vm362, %v850, 0
      %v872 = vsel %vm362, %v852, 0
      %v875 = vsel %vm362, %v854, 0
      %v878 = vsel %vm362, %v856, 0
      %v881 = vsel %vm362, %v858, 0
      %v884 = vsel %vm362, %v860, 0
      %v887 = vsel %vm362, %v862, 0
      %v890 = vsel %vm362, %v864, 0
      %892 = vmatprep.subr.bf16.mxu0 0
      %893 = vmatpush1.bf16.xpose.msra.mxu0 %v890
      %894 = vmatprep.subr.bf16.mxu0 0
      %895 = vmatpush1.bf16.xpose.msra.mxu0 %v887
      %896 = vmatprep.subr.bf16.mxu0 0
      %897 = vmatpush1.bf16.xpose.msra.mxu0 %v884
      %898 = vmatprep.subr.bf16.mxu0 0
      %899 = vmatpush1.bf16.xpose.msra.mxu0 %v881
      %900 = vmatprep.subr.bf16.mxu0 0
      %901 = vmatpush1.bf16.xpose.msra.mxu0 %v878
      %902 = vmatprep.subr.bf16.mxu0 0
      %903 = vmatpush1.bf16.xpose.msra.mxu0 %v875
      %904 = vmatprep.subr.bf16.mxu0 0
      %905 = vmatpush1.bf16.xpose.msra.mxu0 %v872
      %906 = vmatprep.subr.bf16.mxu0 0
      %907 = vmatpush1.bf16.xpose.msra.mxu0 %v869
      %908 = vmatprep.subr.bf16.mxu0 0
      %909 = vmatpush2.bf16.xpose.msra.mxu0 0
      %910 = vmatprep.subr.bf16.mxu0 0
      %911 = vmatpush2.bf16.xpose.msra.mxu0 0
      %912 = vmatprep.subr.bf16.mxu0 0
      %913 = vmatpush2.bf16.xpose.msra.mxu0 0
      %914 = vmatprep.subr.bf16.mxu0 0
      %915 = vmatpush2.bf16.xpose.msra.mxu0 0
      %916 = vmatprep.subr.bf16.mxu0 0
      %917 = vmatpush2.bf16.xpose.msra.mxu0 0
      %918 = vmatprep.subr.bf16.mxu0 0
      %919 = vmatpush2.bf16.xpose.msra.mxu0 0
      %920 = vmatprep.subr.bf16.mxu0 0
      %921 = vmatpush2.bf16.xpose.msra.mxu0 0
      %922 = vmatprep.subr.bf16.mxu0 0
      %923 = vmatpush2.bf16.xpose.msra.mxu0 0
      %924 = vmatprep.mubr.bf16.mxu0 0
      %925 = vmatmul.mubr.bf16.gmra.mxu0 %v866
      %v926 = vpop.f32.mrf.mxu0
      %v927 = vadd.f32 %v320, %v926
      %v928 = vpop.f32.mrf.mxu0
      %v929 = vpop.f32.mrf.mxu0
      %v930 = vpop.f32.mrf.mxu0
      %931 = vdwg.mxu0
      %932 = vmax.xlane.f32.xlu0 %v927
      %v933 = vpop.xlane.xlu0 %932
      %v934 = vsub.f32 %v927, %v933
      %v935 = vmul.f32 %v934, 1.442695
      %v936 = vpow.pop %v935
      %937 = vadd.xlane.f32.xlu0 %v936
      %v938 = vpop.xlane.xlu0 %937
      %v939 = vpack.c.bf16 %v936, %v936
      %940 = vrot.lane.b32.xlu0 %v470, 104
      %v941 = vpop.permute.xlu0 %940
      %942 = vrot.lane.b32.xlu0 %v471, 104
      %v943 = vpop.permute.xlu0 %942
      %944 = vrot.lane.b32.xlu0 %v472, 104
      %v945 = vpop.permute.xlu0 %944
      %946 = vrot.lane.b32.xlu0 %v473, 104
      %v947 = vpop.permute.xlu0 %946
      %948 = vrot.lane.b32.xlu0 %v474, 104
      %v949 = vpop.permute.xlu0 %948
      %950 = vrot.lane.b32.xlu0 %v475, 104
      %v951 = vpop.permute.xlu0 %950
      %952 = vrot.lane.b32.xlu0 %v476, 104
      %v953 = vpop.permute.xlu0 %952
      %954 = vrot.lane.b32.xlu0 %v477, 104
      %v955 = vpop.permute.xlu0 %954
      %964 = vmatprep.subr.bf16.mxu0 0
      %965 = vmatpush1.bf16.msra.mxu0 %v955
      %966 = vmatprep.subr.bf16.mxu0 0
      %967 = vmatpush1.bf16.msra.mxu0 %v953
      %968 = vmatprep.subr.bf16.mxu0 0
      %969 = vmatpush1.bf16.msra.mxu0 %v951
      %970 = vmatprep.subr.bf16.mxu0 0
      %971 = vmatpush1.bf16.msra.mxu0 %v949
      %972 = vmatprep.subr.bf16.mxu0 0
      %973 = vmatpush1.bf16.msra.mxu0 %v947
      %974 = vmatprep.subr.bf16.mxu0 0
      %975 = vmatpush1.bf16.msra.mxu0 %v945
      %976 = vmatprep.subr.bf16.mxu0 0
      %977 = vmatpush1.bf16.msra.mxu0 %v943
      %978 = vmatprep.subr.bf16.mxu0 0
      %979 = vmatpush1.bf16.msra.mxu0 %v941
      %980 = vmatprep.subr.bf16.mxu0 0
      %981 = vmatpush2.bf16.msra.mxu0 0
      %982 = vmatprep.subr.bf16.mxu0 0
      %983 = vmatpush2.bf16.msra.mxu0 0
      %984 = vmatprep.subr.bf16.mxu0 0
      %985 = vmatpush2.bf16.msra.mxu0 0
      %986 = vmatprep.subr.bf16.mxu0 0
      %987 = vmatpush2.bf16.msra.mxu0 0
      %988 = vmatprep.subr.bf16.mxu0 0
      %989 = vmatpush2.bf16.msra.mxu0 0
      %990 = vmatprep.subr.bf16.mxu0 0
      %991 = vmatpush2.bf16.msra.mxu0 0
      %992 = vmatprep.subr.bf16.mxu0 0
      %993 = vmatpush2.bf16.msra.mxu0 0
      %994 = vmatprep.subr.bf16.mxu0 0
      %995 = vmatpush2.bf16.msra.mxu0 0
      %996 = vmatprep.mubr.bf16.mxu0 0
      %997 = vmatmul.mubr.bf16.gmra.mxu0 %v939
      %v998 = vpop.f32.mrf.mxu0
      %v999 = vadd.f32 0.0, %v998
      %v1000 = vpop.f32.mrf.mxu0
      %v1001 = vpop.f32.mrf.mxu0
      %v1002 = vpop.f32.mrf.mxu0
      %1003 = vdwg.mxu0
      %v1004 = vrcp.pop %v938
      %v1005 = vmul.f32 %v999, %v1004
      %1007 = vrot.lane.b32.xlu0 %v687, 8
      %v1008 = vpop.permute.xlu0 %1007
      %1011 = vrot.lane.b32.xlu0 %v846, 16
      %v1012 = vpop.permute.xlu0 %1011
      %1015 = vrot.lane.b32.xlu0 %v1005, 24
      %v1016 = vpop.permute.xlu0 %1015
      %v1018 = vsel %vm362, %v527, %v1008
      %vm1019 = vcmask 130048
      %v1020 = vsel %vm1019, %v1018, %v1012
      %vm1021 = vcmask 195584
      %v1022 = vsel %vm1021, %v1020, %v1016
      %v1023 = vpack.c.bf16 %v1022, %v1022
      %vm1024 = vcmask 257024
      %1025 = vst.msk [vmem:[%s277] sm:$0xf] %vm1024, %v1023
      %p1026 = scmp.lt.s32.totalorder %s19, 1
      %s1027 = scalar_select %p1026, %s19, 1
      %p1028 = scmp.lt.s32.totalorder %s20, 0
      %s1029 = scalar_select %p1028, %s20, 0
      %s1030 = sadd.s32 %s1029, %s1027
      %s1031 = smul.addr %s1030, 4
      %s1032 = scalar_lea.vmem %s4, %s1031
      // Predicated region
      $region37: #{transformer_forward.26} parent=35 // pred_check
        %p1033 = pneg %p153
      $region38: #{transformer_forward.26} parent=35 // pred_check_branch
        %1035 = sbr.rel (%p1033) target = $region40
      $region39: #{transformer_forward.26} parent=35 // pred_region
        _
      $region40: #{transformer_forward.26} parent=35 // pred_fallthru
        _
    $region36: #{transformer_forward.26} parent=5 // pred_fallthru
      _
    %p1036 = scmp.le.s32.totalorder 2, %s10
    // Predicated region
    $region41: #{transformer_forward.26} parent=5 // pred_check
      %p1037 = pneg %p1036
    $region42: #{transformer_forward.26} parent=5 // pred_check_branch
      %1039 = sbr.rel (%p1037) target = $region44
    $region43: #{transformer_forward.26} parent=5 // pred_region
      %s1040 = ssub.s32 %s10, 2
      // Predicated region
      $region45: #{transformer_forward.26} parent=43 // pred_check
        %p1041 = pneg %p159
      $region46: #{transformer_forward.26} parent=43 // pred_check_branch
        %1043 = sbr.rel (%p1041) target = $region48
      $region47: #{transformer_forward.26} parent=43 // pred_region
        %p1044 = scmp.lt.s32.totalorder %s21, 1
        %s1045 = scalar_select %p1044, %s21, 1
        %p1046 = scmp.lt.s32.totalorder %s22, 0
        %s1047 = scalar_select %p1046, %s22, 0
        %s1048 = sadd.s32 %s1047, %s1045
        %s1049 = smul.addr %s1048, 4
        %s1050 = scalar_lea.vmem %s4, %s1049
      $region48: #{transformer_forward.26} parent=43 // pred_fallthru
        _
    $region44: #{transformer_forward.26} parent=5 // pred_fallthru
      _
  $region6: #{transformer_forward.26} parent=0 // loop_footer
    %s14 = sadd.s32 1, %s10
  $region7: #{transformer_forward.26} parent=0 // loop_footer_branch
    %9 = sbr.rel target = $region3
  $region8: #{transformer_forward.26} parent=0 // loop_exit
    _

// kernel: transformer_forward.28
$region0: #{transformer_forward.28}
  #allocation0 [shape = 'u32[]', space=smem, size = 0x4, offset = 0x4, fixed_abs, tag = 'smem constant byte address 0x4 - core index']
  #allocation1 [shape = 'u32[144,128]{1,0:T(1,128)}', space=vmem, size = 0x12000, scoped, tag = 'internal scratch']
  #allocation2 [shape = 'f32[16,128]{1,0:T(8,128)}', space=vmem, size = 0x2000, scoped, tag = 'scratch operand']
  %s0 = inlined_call_operand.vmem [shape: bf16[16,128], index: 0, kind: input, shape index: {}, may-alias: {0,5}]
  %s1 = inlined_call_operand.vmem [shape: bf16[128,128], index: 1, kind: input, shape index: {}]
  %s2 = inlined_call_operand.vmem [shape: f32[1,128], index: 2, kind: input, shape index: {}]
  %s3 = inlined_call_operand.vmem [shape: bf16[128,128], index: 3, kind: input, shape index: {}]
  %s4 = inlined_call_operand.vmem [shape: f32[1,128], index: 4, kind: input, shape index: {}]
  %s5 = inlined_call_operand.vmem [shape: bf16[16,128], index: 5, kind: input, shape index: {}, may-alias: {0,5}]
  %s6 = inlined_call_operand.vmem [shape: f32[1,128], index: 6, kind: input, shape index: {}]
  %s7 = inlined_call_operand.vmem [shape: f32[1,128], index: 7, kind: input, shape index: {}]
  %s8 = inlined_call_operand.vmem [shape: bf16[16,128], index: 8, kind: output, shape index: {}]
  %s9 = sld [smem:[#allocation0]]
  $region50: #{transformer_forward.28} parent=0
    _
  %s11 = ssub.s32 1, %s9
  %s12 = scalar_select 0, %s11, %s9
  // Predicated region
  $region2: #{transformer_forward.28} parent=0 // pred_check
    _
  $region3: #{transformer_forward.28} parent=0 // pred_check_branch
    %14 = sbr.rel (0) target = $region5
  $region4: #{transformer_forward.28} parent=0 // pred_region
    _
  $region5: #{transformer_forward.28} parent=0 // pred_fallthru
    _
  // Predicated region
  $region6: #{transformer_forward.28} parent=0 // pred_check
    _
  $region7: #{transformer_forward.28} parent=0 // pred_check_branch
    %16 = sbr.rel (0) target = $region9
  $region8: #{transformer_forward.28} parent=0 // pred_region
    _
  $region9: #{transformer_forward.28} parent=0 // pred_fallthru
    _
  // Predicated region
  $region10: #{transformer_forward.28} parent=0 // pred_check
    _
  $region11: #{transformer_forward.28} parent=0 // pred_check_branch
    %18 = sbr.rel (0) target = $region13
  $region12: #{transformer_forward.28} parent=0 // pred_region
    _
  $region13: #{transformer_forward.28} parent=0 // pred_fallthru
    _
  // Predicated region
  $region14: #{transformer_forward.28} parent=0 // pred_check
    _
  $region15: #{transformer_forward.28} parent=0 // pred_check_branch
    %20 = sbr.rel (0) target = $region17
  $region16: #{transformer_forward.28} parent=0 // pred_region
    _
  $region17: #{transformer_forward.28} parent=0 // pred_fallthru
    _
  // Predicated region
  $region18: #{transformer_forward.28} parent=0 // pred_check
    _
  $region19: #{transformer_forward.28} parent=0 // pred_check_branch
    %22 = sbr.rel (0) target = $region21
  $region20: #{transformer_forward.28} parent=0 // pred_region
    _
  $region21: #{transformer_forward.28} parent=0 // pred_fallthru
    _
  // Predicated region
  $region22: #{transformer_forward.28} parent=0 // pred_check
    _
  $region23: #{transformer_forward.28} parent=0 // pred_check_branch
    %24 = sbr.rel (0) target = $region25
  $region24: #{transformer_forward.28} parent=0 // pred_region
    _
  $region25: #{transformer_forward.28} parent=0 // pred_fallthru
    _
  // Predicated region
  $region26: #{transformer_forward.28} parent=0 // pred_check
    _
  $region27: #{transformer_forward.28} parent=0 // pred_check_branch
    %26 = sbr.rel (0) target = $region29
  $region28: #{transformer_forward.28} parent=0 // pred_region
    _
  $region29: #{transformer_forward.28} parent=0 // pred_fallthru
    _
  // Predicated region
  $region30: #{transformer_forward.28} parent=0 // pred_check
    _
  $region31: #{transformer_forward.28} parent=0 // pred_check_branch
    %28 = sbr.rel (0) target = $region33
  $region32: #{transformer_forward.28} parent=0 // pred_region
    _
  $region33: #{transformer_forward.28} parent=0 // pred_fallthru
    _
  %p30 = scmp.eq.s32.totalorder 0, 0
  // Predicated region
  $region34: #{transformer_forward.28} parent=0 // pred_check
    %p31 = pneg %p30
  $region35: #{transformer_forward.28} parent=0 // pred_check_branch
    %33 = sbr.rel (%p31) target = $region37
  $region36: #{transformer_forward.28} parent=0 // pred_region
    %34 = vst [vmem:[#allocation2] sm:$0xff] 0.0
    %35 = vst [vmem:[#allocation2 + $0x8] sm:$0xff] 0.0
  $region37: #{transformer_forward.28} parent=0 // pred_fallthru
    _
  %v36 = vld [vmem:[%s0] sm:$0xf]
  %v37 = vld [vmem:[%s0 + $0x4] sm:$0xf]
  %v38 = vld [vmem:[%s1] sm:$0xf]
  %v39 = vld [vmem:[%s1 + $0x4] sm:$0xf]
  %v40 = vld [vmem:[%s1 + $0x8] sm:$0xf]
  %v41 = vld [vmem:[%s1 + $0xc] sm:$0xf]
  %v42 = vld [vmem:[%s1 + $0x10] sm:$0xf]
  %v43 = vld [vmem:[%s1 + $0x14] sm:$0xf]
  %v44 = vld [vmem:[%s1 + $0x18] sm:$0xf]
  %v45 = vld [vmem:[%s1 + $0x1c] sm:$0xf]
  %v46 = vld [vmem:[%s1 + $0x20] sm:$0xf]
  %v47 = vld [vmem:[%s1 + $0x24] sm:$0xf]
  %v48 = vld [vmem:[%s1 + $0x28] sm:$0xf]
  %v49 = vld [vmem:[%s1 + $0x2c] sm:$0xf]
  %v50 = vld [vmem:[%s1 + $0x30] sm:$0xf]
  %v51 = vld [vmem:[%s1 + $0x34] sm:$0xf]
  %v52 = vld [vmem:[%s1 + $0x38] sm:$0xf]
  %v53 = vld [vmem:[%s1 + $0x3c] sm:$0xf]
  %v54 = vld [vmem:[%s2] sm:$0x1]
  %v56 = vlaneseq
  %v57 = vshrl.u32 %v56, 7
  %v58 = vsub.s32 0, %v57
  %v59 = vrot.slane %v54, %v58
  %v63 = vunpack.c.l.b16 %v36
  %v64 = vunpack.c.l.b16 %v37
  %v65 = vpack.c.b16 %v64, %v63
  %v83 = vunpack.c.l.b16 %v38
  %v84 = vunpack.c.l.b16 %v39
  %v85 = vunpack.c.l.b16 %v40
  %v86 = vunpack.c.l.b16 %v41
  %v87 = vunpack.c.l.b16 %v42
  %v88 = vunpack.c.l.b16 %v43
  %v89 = vunpack.c.l.b16 %v44
  %v90 = vunpack.c.l.b16 %v45
  %v91 = vunpack.c.l.b16 %v46
  %v92 = vunpack.c.l.b16 %v47
  %v93 = vunpack.c.l.b16 %v48
  %v94 = vunpack.c.l.b16 %v49
  %v95 = vunpack.c.l.b16 %v50
  %v96 = vunpack.c.l.b16 %v51
  %v97 = vunpack.c.l.b16 %v52
  %v98 = vunpack.c.l.b16 %v53
  %v99 = vpack.c.b16 %v84, %v83
  %v100 = vpack.c.b16 %v86, %v85
  %v101 = vpack.c.b16 %v88, %v87
  %v102 = vpack.c.b16 %v90, %v89
  %v103 = vpack.c.b16 %v92, %v91
  %v104 = vpack.c.b16 %v94, %v93
  %v105 = vpack.c.b16 %v96, %v95
  %v106 = vpack.c.b16 %v98, %v97
  %115 = vmatprep.subr.bf16.mxu0 0
  %116 = vmatpush1.bf16.msra.mxu0 %v106
  %117 = vmatprep.subr.bf16.mxu0 0
  %118 = vmatpush1.bf16.msra.mxu0 %v105
  %119 = vmatprep.subr.bf16.mxu0 0
  %120 = vmatpush1.bf16.msra.mxu0 %v104
  %121 = vmatprep.subr.bf16.mxu0 0
  %122 = vmatpush1.bf16.msra.mxu0 %v103
  %123 = vmatprep.subr.bf16.mxu0 0
  %124 = vmatpush1.bf16.msra.mxu0 %v102
  %125 = vmatprep.subr.bf16.mxu0 0
  %126 = vmatpush1.bf16.msra.mxu0 %v101
  %127 = vmatprep.subr.bf16.mxu0 0
  %128 = vmatpush1.bf16.msra.mxu0 %v100
  %129 = vmatprep.subr.bf16.mxu0 0
  %130 = vmatpush1.bf16.msra.mxu0 %v99
  %131 = vmatprep.subr.bf16.mxu0 0
  %132 = vmatpush2.bf16.msra.mxu0 0
  %133 = vmatprep.subr.bf16.mxu0 0
  %134 = vmatpush2.bf16.msra.mxu0 0
  %135 = vmatprep.subr.bf16.mxu0 0
  %136 = vmatpush2.bf16.msra.mxu0 0
  %137 = vmatprep.subr.bf16.mxu0 0
  %138 = vmatpush2.bf16.msra.mxu0 0
  %139 = vmatprep.subr.bf16.mxu0 0
  %140 = vmatpush2.bf16.msra.mxu0 0
  %141 = vmatprep.subr.bf16.mxu0 0
  %142 = vmatpush2.bf16.msra.mxu0 0
  %143 = vmatprep.subr.bf16.mxu0 0
  %144 = vmatpush2.bf16.msra.mxu0 0
  %145 = vmatprep.subr.bf16.mxu0 0
  %146 = vmatpush2.bf16.msra.mxu0 0
  %147 = vmatprep.mubr.bf16.mxu0 0
  %148 = vmatmul.mubr.bf16.gmra.mxu0 %v65
  %v149 = vpop.f32.mrf.mxu0
  %v150 = vadd.f32 %v59, %v149
  %v151 = vpop.f32.mrf.mxu0
  %v152 = vpop.f32.mrf.mxu0
  %v153 = vadd.f32 %v59, %v152
  %v154 = vpop.f32.mrf.mxu0
  %155 = vdwg.mxu0
  %v156 = vmax.f32 %v150, 0.0
  %v157 = vmax.f32 %v153, 0.0
  %v158 = vld [vmem:[#allocation2] sm:$0xff]
  %v159 = vld [vmem:[#allocation2 + $0x8] sm:$0xff]
  %v160 = vpack.c.bf16 %v157, %v156
  %v161 = vld [vmem:[%s3] sm:$0xf]
  %v162 = vld [vmem:[%s3 + $0x4] sm:$0xf]
  %v163 = vld [vmem:[%s3 + $0x8] sm:$0xf]
  %v164 = vld [vmem:[%s3 + $0xc] sm:$0xf]
  %v165 = vld [vmem:[%s3 + $0x10] sm:$0xf]
  %v166 = vld [vmem:[%s3 + $0x14] sm:$0xf]
  %v167 = vld [vmem:[%s3 + $0x18] sm:$0xf]
  %v168 = vld [vmem:[%s3 + $0x1c] sm:$0xf]
  %v169 = vld [vmem:[%s3 + $0x20] sm:$0xf]
  %v170 = vld [vmem:[%s3 + $0x24] sm:$0xf]
  %v171 = vld [vmem:[%s3 + $0x28] sm:$0xf]
  %v172 = vld [vmem:[%s3 + $0x2c] sm:$0xf]
  %v173 = vld [vmem:[%s3 + $0x30] sm:$0xf]
  %v174 = vld [vmem:[%s3 + $0x34] sm:$0xf]
  %v175 = vld [vmem:[%s3 + $0x38] sm:$0xf]
  %v176 = vld [vmem:[%s3 + $0x3c] sm:$0xf]
  %v193 = vunpack.c.l.b16 %v161
  %v194 = vunpack.c.l.b16 %v162
  %v195 = vunpack.c.l.b16 %v163
  %v196 = vunpack.c.l.b16 %v164
  %v197 = vunpack.c.l.b16 %v165
  %v198 = vunpack.c.l.b16 %v166
  %v199 = vunpack.c.l.b16 %v167
  %v200 = vunpack.c.l.b16 %v168
  %v201 = vunpack.c.l.b16 %v169
  %v202 = vunpack.c.l.b16 %v170
  %v203 = vunpack.c.l.b16 %v171
  %v204 = vunpack.c.l.b16 %v172
  %v205 = vunpack.c.l.b16 %v173
  %v206 = vunpack.c.l.b16 %v174
  %v207 = vunpack.c.l.b16 %v175
  %v208 = vunpack.c.l.b16 %v176
  %v209 = vpack.c.b16 %v194, %v193
  %v210 = vpack.c.b16 %v196, %v195
  %v211 = vpack.c.b16 %v198, %v197
  %v212 = vpack.c.b16 %v200, %v199
  %v213 = vpack.c.b16 %v202, %v201
  %v214 = vpack.c.b16 %v204, %v203
  %v215 = vpack.c.b16 %v206, %v205
  %v216 = vpack.c.b16 %v208, %v207
  %225 = vmatprep.subr.bf16.mxu0 0
  %226 = vmatpush1.bf16.msra.mxu0 %v216
  %227 = vmatprep.subr.bf16.mxu0 0
  %228 = vmatpush1.bf16.msra.mxu0 %v215
  %229 = vmatprep.subr.bf16.mxu0 0
  %230 = vmatpush1.bf16.msra.mxu0 %v214
  %231 = vmatprep.subr.bf16.mxu0 0
  %232 = vmatpush1.bf16.msra.mxu0 %v213
  %233 = vmatprep.subr.bf16.mxu0 0
  %234 = vmatpush1.bf16.msra.mxu0 %v212
  %235 = vmatprep.subr.bf16.mxu0 0
  %236 = vmatpush1.bf16.msra.mxu0 %v211
  %237 = vmatprep.subr.bf16.mxu0 0
  %238 = vmatpush1.bf16.msra.mxu0 %v210
  %239 = vmatprep.subr.bf16.mxu0 0
  %240 = vmatpush1.bf16.msra.mxu0 %v209
  %241 = vmatprep.subr.bf16.mxu0 0
  %242 = vmatpush2.bf16.msra.mxu0 0
  %243 = vmatprep.subr.bf16.mxu0 0
  %244 = vmatpush2.bf16.msra.mxu0 0
  %245 = vmatprep.subr.bf16.mxu0 0
  %246 = vmatpush2.bf16.msra.mxu0 0
  %247 = vmatprep.subr.bf16.mxu0 0
  %248 = vmatpush2.bf16.msra.mxu0 0
  %249 = vmatprep.subr.bf16.mxu0 0
  %250 = vmatpush2.bf16.msra.mxu0 0
  %251 = vmatprep.subr.bf16.mxu0 0
  %252 = vmatpush2.bf16.msra.mxu0 0
  %253 = vmatprep.subr.bf16.mxu0 0
  %254 = vmatpush2.bf16.msra.mxu0 0
  %255 = vmatprep.subr.bf16.mxu0 0
  %256 = vmatpush2.bf16.msra.mxu0 0
  %257 = vmatprep.mubr.bf16.mxu0 0
  %258 = vmatmul.mubr.bf16.gmra.mxu0 %v160
  %v259 = vpop.f32.mrf.mxu0
  %v260 = vadd.f32 0.0, %v259
  %v261 = vpop.f32.mrf.mxu0
  %v262 = vpop.f32.mrf.mxu0
  %v263 = vadd.f32 0.0, %v262
  %v264 = vpop.f32.mrf.mxu0
  %265 = vdwg.mxu0
  %v266 = vadd.f32 %v158, %v260
  %v267 = vadd.f32 %v159, %v263
  %268 = vst [vmem:[#allocation2] sm:$0xff] %v266
  %269 = vst [vmem:[#allocation2 + $0x8] sm:$0xff] %v267
  // Predicated region
  $region38: #{transformer_forward.28} parent=0 // pred_check
    %p270 = pneg %p30
  $region39: #{transformer_forward.28} parent=0 // pred_check_branch
    %272 = sbr.rel (%p270) target = $region41
  $region40: #{transformer_forward.28} parent=0 // pred_region
    %v273 = vld [vmem:[#allocation2] sm:$0xff]
    %v274 = vld [vmem:[#allocation2 + $0x8] sm:$0xff]
    %v275 = vld [vmem:[%s4] sm:$0x1]
    %v277 = vlaneseq
    %v278 = vshrl.u32 %v277, 7
    %v279 = vsub.s32 0, %v278
    %v280 = vrot.slane %v275, %v279
    %v282 = vadd.f32 %v273, %v280
    %v283 = vadd.f32 %v274, %v280
    %v284 = vld [vmem:[%s5] sm:$0xf]
    %v285 = vld [vmem:[%s5 + $0x4] sm:$0xf]
    %v286 = vunpack.c.l.bf16 %v284
    %v287 = vunpack.c.l.bf16 %v285
    %v288 = vadd.f32 %v282, %v286
    %v289 = vadd.f32 %v283, %v287
    %v290 = vld [vmem:[%s6] sm:$0x1]
    %v291 = vld [vmem:[%s7] sm:$0x1]
    %v292 = vlaneseq
    %v293 = vand.u32 %v292, 127
    %vm294 = vcmp.lt.s32.totalorder %v293, 32
    %v295 = vsel %vm294, %v288, 0.0
    %v296 = vsel %vm294, %v289, 0.0
    %297 = vadd.xlane.f32.xlu0 %v295
    %v298 = vpop.xlane.xlu0 %297
    %299 = vadd.xlane.f32.xlu0 %v296
    %v300 = vpop.xlane.xlu0 %299
    %v301 = vrcp.pop 32.0
    %v302 = vmul.f32 %v298, %v301
    %v303 = vmul.f32 %v300, %v301
    %v304 = vsub.f32 %v295, %v302
    %v305 = vsub.f32 %v296, %v303
    %v306 = vsel %vm294, %v304, 0.0
    %v307 = vsel %vm294, %v305, 0.0
    %v308 = vmul.f32 %v306, %v306
    %v309 = vmul.f32 %v307, %v307
    %310 = vadd.xlane.f32.xlu0 %v308
    %v311 = vpop.xlane.xlu0 %310
    %312 = vadd.xlane.f32.xlu0 %v309
    %v313 = vpop.xlane.xlu0 %312
    %v314 = vmul.f32 %v311, %v301
    %v315 = vmul.f32 %v313, %v301
    %v316 = vadd.f32 %v314, 1e-05
    %v317 = vadd.f32 %v315, 1e-05
    %v318 = vrsqrt.pop %v316
    %v319 = vrsqrt.pop %v317
    %v320 = vmul.f32 %v306, %v318
    %v321 = vmul.f32 %v307, %v319
    %v323 = vlaneseq
    %v324 = vshrl.u32 %v323, 7
    %v325 = vsub.s32 0, %v324
    %v326 = vrot.slane %v290, %v325
    %v328 = vmul.f32 %v320, %v326
    %v329 = vmul.f32 %v321, %v326
    %v331 = vlaneseq
    %v332 = vshrl.u32 %v331, 7
    %v333 = vsub.s32 0, %v332
    %v334 = vrot.slane %v291, %v333
    %v336 = vadd.f32 %v328, %v334
    %v337 = vadd.f32 %v329, %v334
    %v338 = vpack.c.bf16 %v337, %v336
    %v340 = vunpack.c.l.b16 %v338
    %v341 = vunpack.c.h.b16 %v338
    %v342 = vpack.c.b16 %v340, %v340
    %v343 = vpack.c.b16 %v341, %v341
    %346 = vst [vmem:[%s8] sm:$0xf] %v342
    %347 = vst [vmem:[%s8 + $0x4] sm:$0xf] %v343
  $region41: #{transformer_forward.28} parent=0 // pred_fallthru
    _
  // Predicated region
  $region42: #{transformer_forward.28} parent=0 // pred_check
    _
  $region43: #{transformer_forward.28} parent=0 // pred_check_branch
    %349 = sbr.rel (0) target = $region45
  $region44: #{transformer_forward.28} parent=0 // pred_region
    _
  $region45: #{transformer_forward.28} parent=0 // pred_fallthru
    _
  // Predicated region
  $region46: #{transformer_forward.28} parent=0 // pred_check
    _
  $region47: #{transformer_forward.28} parent=0 // pred_check_branch
    %351 = sbr.rel (0) target = $region49
  $region48: #{transformer_forward.28} parent=0 // pred_region
    _
  $region49: #{transformer_forward.28} parent=0 // pred_fallthru
    _

// kernel: transformer_forward.49
$region0: #{transformer_forward.49}
  #allocation0 [shape = 'u32[]', space=smem, size = 0x4, offset = 0x4, fixed_abs, tag = 'smem constant byte address 0x4 - core index']
  #allocation1 [shape = 'u32[144,128]{1,0:T(1,128)}', space=vmem, size = 0x12000, scoped, tag = 'internal scratch']
  #allocation2 [shape = 'f32[16,128]{1,0:T(8,128)}', space=vmem, size = 0x2000, scoped, tag = 'scratch operand']
  %s0 = inlined_call_operand.vmem [shape: bf16[16,128], index: 0, kind: input, shape index: {}]
  %s1 = inlined_call_operand.vmem [shape: bf16[128,128], index: 1, kind: input, shape index: {}]
  %s2 = inlined_call_operand.vmem [shape: f32[1,128], index: 2, kind: input, shape index: {}]
  %s3 = inlined_call_operand.vmem [shape: f32[16,128], index: 3, kind: output, shape index: {}]
  %s4 = sld [smem:[#allocation0]]
  $region30: #{transformer_forward.49} parent=0
    _
  %s6 = ssub.s32 1, %s4
  %s7 = scalar_select 0, %s6, %s4
  // Predicated region
  $region2: #{transformer_forward.49} parent=0 // pred_check
    _
  $region3: #{transformer_forward.49} parent=0 // pred_check_branch
    %9 = sbr.rel (0) target = $region5
  $region4: #{transformer_forward.49} parent=0 // pred_region
    _
  $region5: #{transformer_forward.49} parent=0 // pred_fallthru
    _
  // Predicated region
  $region6: #{transformer_forward.49} parent=0 // pred_check
    _
  $region7: #{transformer_forward.49} parent=0 // pred_check_branch
    %11 = sbr.rel (0) target = $region9
  $region8: #{transformer_forward.49} parent=0 // pred_region
    _
  $region9: #{transformer_forward.49} parent=0 // pred_fallthru
    _
  // Predicated region
  $region10: #{transformer_forward.49} parent=0 // pred_check
    _
  $region11: #{transformer_forward.49} parent=0 // pred_check_branch
    %13 = sbr.rel (0) target = $region13
  $region12: #{transformer_forward.49} parent=0 // pred_region
    _
  $region13: #{transformer_forward.49} parent=0 // pred_fallthru
    _
  %p15 = scmp.eq.s32.totalorder 0, 0
  // Predicated region
  $region14: #{transformer_forward.49} parent=0 // pred_check
    %p16 = pneg %p15
  $region15: #{transformer_forward.49} parent=0 // pred_check_branch
    %18 = sbr.rel (%p16) target = $region17
  $region16: #{transformer_forward.49} parent=0 // pred_region
    %19 = vst [vmem:[#allocation2] sm:$0xff] 0.0
    %20 = vst [vmem:[#allocation2 + $0x8] sm:$0xff] 0.0
  $region17: #{transformer_forward.49} parent=0 // pred_fallthru
    _
  %v21 = vld [vmem:[#allocation2] sm:$0xff]
  %v22 = vld [vmem:[#allocation2 + $0x8] sm:$0xff]
  %v23 = vld [vmem:[%s0] sm:$0xf]
  %v24 = vld [vmem:[%s0 + $0x4] sm:$0xf]
  %v25 = vld [vmem:[%s1] sm:$0xf]
  %v26 = vld [vmem:[%s1 + $0x4] sm:$0xf]
  %v27 = vld [vmem:[%s1 + $0x8] sm:$0xf]
  %v28 = vld [vmem:[%s1 + $0xc] sm:$0xf]
  %v29 = vld [vmem:[%s1 + $0x10] sm:$0xf]
  %v30 = vld [vmem:[%s1 + $0x14] sm:$0xf]
  %v31 = vld [vmem:[%s1 + $0x18] sm:$0xf]
  %v32 = vld [vmem:[%s1 + $0x1c] sm:$0xf]
  %v33 = vld [vmem:[%s1 + $0x20] sm:$0xf]
  %v34 = vld [vmem:[%s1 + $0x24] sm:$0xf]
  %v35 = vld [vmem:[%s1 + $0x28] sm:$0xf]
  %v36 = vld [vmem:[%s1 + $0x2c] sm:$0xf]
  %v37 = vld [vmem:[%s1 + $0x30] sm:$0xf]
  %v38 = vld [vmem:[%s1 + $0x34] sm:$0xf]
  %v39 = vld [vmem:[%s1 + $0x38] sm:$0xf]
  %v40 = vld [vmem:[%s1 + $0x3c] sm:$0xf]
  %v43 = vunpack.c.l.b16 %v23
  %v44 = vunpack.c.l.b16 %v24
  %v45 = vpack.c.b16 %v44, %v43
  %v63 = vunpack.c.l.b16 %v25
  %v64 = vunpack.c.l.b16 %v26
  %v65 = vunpack.c.l.b16 %v27
  %v66 = vunpack.c.l.b16 %v28
  %v67 = vunpack.c.l.b16 %v29
  %v68 = vunpack.c.l.b16 %v30
  %v69 = vunpack.c.l.b16 %v31
  %v70 = vunpack.c.l.b16 %v32
  %v71 = vunpack.c.l.b16 %v33
  %v72 = vunpack.c.l.b16 %v34
  %v73 = vunpack.c.l.b16 %v35
  %v74 = vunpack.c.l.b16 %v36
  %v75 = vunpack.c.l.b16 %v37
  %v76 = vunpack.c.l.b16 %v38
  %v77 = vunpack.c.l.b16 %v39
  %v78 = vunpack.c.l.b16 %v40
  %v79 = vpack.c.b16 %v64, %v63
  %v80 = vpack.c.b16 %v66, %v65
  %v81 = vpack.c.b16 %v68, %v67
  %v82 = vpack.c.b16 %v70, %v69
  %v83 = vpack.c.b16 %v72, %v71
  %v84 = vpack.c.b16 %v74, %v73
  %v85 = vpack.c.b16 %v76, %v75
  %v86 = vpack.c.b16 %v78, %v77
  %95 = vmatprep.subr.bf16.mxu0 0
  %96 = vmatpush1.bf16.msra.mxu0 %v86
  %97 = vmatprep.subr.bf16.mxu0 0
  %98 = vmatpush1.bf16.msra.mxu0 %v85
  %99 = vmatprep.subr.bf16.mxu0 0
  %100 = vmatpush1.bf16.msra.mxu0 %v84
  %101 = vmatprep.subr.bf16.mxu0 0
  %102 = vmatpush1.bf16.msra.mxu0 %v83
  %103 = vmatprep.subr.bf16.mxu0 0
  %104 = vmatpush1.bf16.msra.mxu0 %v82
  %105 = vmatprep.subr.bf16.mxu0 0
  %106 = vmatpush1.bf16.msra.mxu0 %v81
  %107 = vmatprep.subr.bf16.mxu0 0
  %108 = vmatpush1.bf16.msra.mxu0 %v80
  %109 = vmatprep.subr.bf16.mxu0 0
  %110 = vmatpush1.bf16.msra.mxu0 %v79
  %111 = vmatprep.subr.bf16.mxu0 0
  %112 = vmatpush2.bf16.msra.mxu0 0
  %113 = vmatprep.subr.bf16.mxu0 0
  %114 = vmatpush2.bf16.msra.mxu0 0
  %115 = vmatprep.subr.bf16.mxu0 0
  %116 = vmatpush2.bf16.msra.mxu0 0
  %117 = vmatprep.subr.bf16.mxu0 0
  %118 = vmatpush2.bf16.msra.mxu0 0
  %119 = vmatprep.subr.bf16.mxu0 0
  %120 = vmatpush2.bf16.msra.mxu0 0
  %121 = vmatprep.subr.bf16.mxu0 0
  %122 = vmatpush2.bf16.msra.mxu0 0
  %123 = vmatprep.subr.bf16.mxu0 0
  %124 = vmatpush2.bf16.msra.mxu0 0
  %125 = vmatprep.subr.bf16.mxu0 0
  %126 = vmatpush2.bf16.msra.mxu0 0
  %127 = vmatprep.mubr.bf16.mxu0 0
  %128 = vmatmul.mubr.bf16.gmra.mxu0 %v45
  %v129 = vpop.f32.mrf.mxu0
  %v130 = vadd.f32 0.0, %v129
  %v131 = vpop.f32.mrf.mxu0
  %v132 = vpop.f32.mrf.mxu0
  %v133 = vadd.f32 0.0, %v132
  %v134 = vpop.f32.mrf.mxu0
  %135 = vdwg.mxu0
  %v136 = vadd.f32 %v21, %v130
  %v137 = vadd.f32 %v22, %v133
  %138 = vst [vmem:[#allocation2] sm:$0xff] %v136
  %139 = vst [vmem:[#allocation2 + $0x8] sm:$0xff] %v137
  // Predicated region
  $region18: #{transformer_forward.49} parent=0 // pred_check
    %p140 = pneg %p15
  $region19: #{transformer_forward.49} parent=0 // pred_check_branch
    %142 = sbr.rel (%p140) target = $region21
  $region20: #{transformer_forward.49} parent=0 // pred_region
    %v143 = vld [vmem:[#allocation2] sm:$0xff]
    %v144 = vld [vmem:[#allocation2 + $0x8] sm:$0xff]
    %v145 = vld [vmem:[%s2] sm:$0x1]
    %v147 = vlaneseq
    %v148 = vshrl.u32 %v147, 7
    %v149 = vsub.s32 0, %v148
    %v150 = vrot.slane %v145, %v149
    %v152 = vadd.f32 %v143, %v150
    %v153 = vadd.f32 %v144, %v150
    %154 = vst [vmem:[%s3] sm:$0xff] %v152
    %155 = vst [vmem:[%s3 + $0x8] sm:$0xff] %v153
  $region21: #{transformer_forward.49} parent=0 // pred_fallthru
    _
  // Predicated region
  $region22: #{transformer_forward.49} parent=0 // pred_check
    _
  $region23: #{transformer_forward.49} parent=0 // pred_check_branch
    %157 = sbr.rel (0) target = $region25
  $region24: #{transformer_forward.49} parent=0 // pred_region
    _
  $region25: #{transformer_forward.49} parent=0 // pred_fallthru
    _
  // Predicated region
  $region26: #{transformer_forward.49} parent=0 // pred_check
    _
  $region27: #{transformer_forward.49} parent=0 // pred_check_branch
    %159 = sbr.rel (0) target = $region29
  $region28: #{transformer_forward.49} parent=0 // pred_region
    _
  $region29: #{transformer_forward.49} parent=0 // pred_fallthru
    _

// kernel: transformer_forward.34
$region0: #{transformer_forward.34}
  #allocation0 [shape = 'u32[]', space=smem, size = 0x4, offset = 0x4, fixed_abs, tag = 'smem constant byte address 0x4 - core index']
  #allocation1 [shape = 'u32[144,128]{1,0:T(1,128)}', space=vmem, size = 0x12000, scoped, tag = 'internal scratch']
  %s0 = inlined_call_operand.vmem [shape: f32[2,1,128], index: 0, kind: input, shape index: {}]
  %s1 = inlined_call_operand.vmem [shape: bf16[2,8,32], index: 1, kind: input, shape index: {}]
  %s2 = inlined_call_operand.vmem [shape: bf16[2,128,32], index: 2, kind: input, shape index: {}]
  %s3 = inlined_call_operand.vmem [shape: bf16[2,128,32], index: 3, kind: input, shape index: {}]
  %s4 = inlined_call_operand.vmem [shape: bf16[2,8,32], index: 4, kind: output, shape index: {}]
  %s5 = sld [smem:[#allocation0]]
  $region49: #{transformer_forward.34} parent=0
    _
  %s7 = ssub.s32 1, %s5
  %s8 = scalar_select 0, %s7, %s5
  loop: start=0, step=1, limit=4
  $region2: #{transformer_forward.34} parent=0 // loop_pre_header
    _
  $region3: #{transformer_forward.34} parent=0 // loop_header
    %s10 = sphi 0, %s14
    %p11 = scmp.ge.s32.totalorder %s10, 4
    %s17 = sphi 0, %s29
    %s18 = sphi 0, %s25
    %s19 = sphi 0, %s17
    %s20 = sphi 0, %s18
    %s21 = sphi 0, %s19
    %s22 = sphi 0, %s20
    %s32 = sphi 0, %s34
    %s35 = sphi 0, %s32
    %s36 = sphi 0, %s35
    %s52 = sphi 0, %s36
    %s60 = sphi 0, %s62
    %s63 = sphi 0, %s60
    %s64 = sphi 0, %s63
    %s80 = sphi 0, %s64
    %s86 = sphi 0, %s88
    %s89 = sphi 0, %s86
    %s90 = sphi 0, %s89
    %s106 = sphi 0, %s90
    %s112 = sphi 0, %s114
    %s115 = sphi 0, %s112
    %s116 = sphi 0, %s115
    %s132 = sphi 0, %s116
    %s140 = sphi 0, %s142
    %s143 = sphi 0, %s140
    %s144 = sphi 0, %s143
    %s160 = sphi 0, %s144
  $region4: #{transformer_forward.34} parent=0 // loop_header_branch
    %13 = sbr.rel (%p11) target = $region8
  $region5: #{transformer_forward.34} parent=0 // loop_body
    %s15 = ssub.s32 %s10, 1
    %s16 = ssub.s32 %s10, 2
    %s23 = sadd.s32 1, %s18
    %p24 = scmp.ge.s32.totalorder %s23, 1
    %s25 = scalar_select %p24, 0, %s23
    %s26 = sadd.s32 1, %s17
    %s27 = scalar_select %p24, %s26, %s17
    %p28 = scmp.ge.s32.totalorder %s27, 2
    %s29 = scalar_select %p28, 0, %s27
    %s30 = ssub.s32 %s17, %s29
    %p31 = scmp.eq.s32.totalorder %s30, 0
    %s33 = sadd.s32 %s32, 1
    %s34 = scalar_select %p31, %s32, %s33
    %p37 = pneg %p31
    %p38 = scmp.eq.s32.totalorder %s10, 1
    %p39 = por %p37, %p38
    %p40 = scmp.ne.s32.totalorder %s32, %s35
    %p41 = scmp.eq.s32.totalorder %s10, 0
    %p42 = por %p40, %p41
    %p43 = scmp.ne.s32.totalorder %s32, %s35
    %p44 = scmp.eq.s32.totalorder %s15, 1
    %p45 = por %p43, %p44
    %p46 = scmp.ne.s32.totalorder %s35, %s36
    %p47 = scmp.eq.s32.totalorder %s15, 0
    %p48 = por %p46, %p47
    %p49 = scmp.ne.s32.totalorder %s35, %s36
    %p50 = scmp.eq.s32.totalorder %s16, 1
    %p51 = por %p49, %p50
    %p53 = scmp.ne.s32.totalorder %s36, %s52
    %p54 = scmp.eq.s32.totalorder %s16, 0
    %p55 = por %p53, %p54
    %s56 = ssub.s32 %s17, %s29
    %s57 = ssub.s32 %s18, %s25
    %s58 = sor.u32 %s56, %s57
    %p59 = scmp.eq.s32.totalorder %s58, 0
    %s61 = sadd.s32 %s60, 1
    %s62 = scalar_select %p59, %s60, %s61
    %p65 = pneg %p59
    %p66 = scmp.eq.s32.totalorder %s10, 1
    %p67 = por %p65, %p66
    %p68 = scmp.ne.s32.totalorder %s60, %s63
    %p69 = scmp.eq.s32.totalorder %s10, 0
    %p70 = por %p68, %p69
    %p71 = scmp.ne.s32.totalorder %s60, %s63
    %p72 = scmp.eq.s32.totalorder %s15, 1
    %p73 = por %p71, %p72
    %p74 = scmp.ne.s32.totalorder %s63, %s64
    %p75 = scmp.eq.s32.totalorder %s15, 0
    %p76 = por %p74, %p75
    %p77 = scmp.ne.s32.totalorder %s63, %s64
    %p78 = scmp.eq.s32.totalorder %s16, 1
    %p79 = por %p77, %p78
    %p81 = scmp.ne.s32.totalorder %s64, %s80
    %p82 = scmp.eq.s32.totalorder %s16, 0
    %p83 = por %p81, %p82
    %s84 = ssub.s32 %s17, %s29
    %p85 = scmp.eq.s32.totalorder %s84, 0
    %s87 = sadd.s32 %s86, 1
    %s88 = scalar_select %p85, %s86, %s87
    %p91 = pneg %p85
    %p92 = scmp.eq.s32.totalorder %s10, 1
    %p93 = por %p91, %p92
    %p94 = scmp.ne.s32.totalorder %s86, %s89
    %p95 = scmp.eq.s32.totalorder %s10, 0
    %p96 = por %p94, %p95
    %p97 = scmp.ne.s32.totalorder %s86, %s89
    %p98 = scmp.eq.s32.totalorder %s15, 1
    %p99 = por %p97, %p98
    %p100 = scmp.ne.s32.totalorder %s89, %s90
    %p101 = scmp.eq.s32.totalorder %s15, 0
    %p102 = por %p100, %p101
    %p103 = scmp.ne.s32.totalorder %s89, %s90
    %p104 = scmp.eq.s32.totalorder %s16, 1
    %p105 = por %p103, %p104
    %p107 = scmp.ne.s32.totalorder %s90, %s106
    %p108 = scmp.eq.s32.totalorder %s16, 0
    %p109 = por %p107, %p108
    %s110 = ssub.s32 %s17, %s29
    %p111 = scmp.eq.s32.totalorder %s110, 0
    %s113 = sadd.s32 %s112, 1
    %s114 = scalar_select %p111, %s112, %s113
    %p117 = pneg %p111
    %p118 = scmp.eq.s32.totalorder %s10, 1
    %p119 = por %p117, %p118
    %p120 = scmp.ne.s32.totalorder %s112, %s115
    %p121 = scmp.eq.s32.totalorder %s10, 0
    %p122 = por %p120, %p121
    %p123 = scmp.ne.s32.totalorder %s112, %s115
    %p124 = scmp.eq.s32.totalorder %s15, 1
    %p125 = por %p123, %p124
    %p126 = scmp.ne.s32.totalorder %s115, %s116
    %p127 = scmp.eq.s32.totalorder %s15, 0
    %p128 = por %p126, %p127
    %p129 = scmp.ne.s32.totalorder %s115, %s116
    %p130 = scmp.eq.s32.totalorder %s16, 1
    %p131 = por %p129, %p130
    %p133 = scmp.ne.s32.totalorder %s116, %s132
    %p134 = scmp.eq.s32.totalorder %s16, 0
    %p135 = por %p133, %p134
    %s136 = ssub.s32 %s17, %s29
    %s137 = ssub.s32 %s18, %s25
    %s138 = sor.u32 %s136, %s137
    %p139 = scmp.eq.s32.totalorder %s138, 0
    %s141 = sadd.s32 %s140, 1
    %s142 = scalar_select %p139, %s140, %s141
    %p145 = pneg %p139
    %p146 = scmp.eq.s32.totalorder %s10, 1
    %p147 = por %p145, %p146
    %p148 = scmp.ne.s32.totalorder %s140, %s143
    %p149 = scmp.eq.s32.totalorder %s10, 0
    %p150 = por %p148, %p149
    %p151 = scmp.ne.s32.totalorder %s140, %s143
    %p152 = scmp.eq.s32.totalorder %s15, 1
    %p153 = por %p151, %p152
    %p154 = scmp.ne.s32.totalorder %s143, %s144
    %p155 = scmp.eq.s32.totalorder %s15, 0
    %p156 = por %p154, %p155
    %p157 = scmp.ne.s32.totalorder %s143, %s144
    %p158 = scmp.eq.s32.totalorder %s16, 1
    %p159 = por %p157, %p158
    %p161 = scmp.ne.s32.totalorder %s144, %s160
    %p162 = scmp.eq.s32.totalorder %s16, 0
    %p163 = por %p161, %p162
    %p164 = scmp.le.s32.totalorder 1, %s10
    %p165 = scmp.lt.s32.totalorder %s10, 3
    %p166 = pnand %p164, %p165
    %p167 = pneg %p166
    // Predicated region
    $region9: #{transformer_forward.34} parent=5 // pred_check
      _
    $region10: #{transformer_forward.34} parent=5 // pred_check_branch
      %169 = sbr.rel (%p166) target = $region12
    $region11: #{transformer_forward.34} parent=5 // pred_region
      %s170 = ssub.s32 %s10, 1
    $region12: #{transformer_forward.34} parent=5 // pred_fallthru
      _
    %p171 = scmp.lt.s32.totalorder %s10, 2
    // Predicated region
    $region13: #{transformer_forward.34} parent=5 // pred_check
      %p172 = pneg %p171
    $region14: #{transformer_forward.34} parent=5 // pred_check_branch
      %174 = sbr.rel (%p172) target = $region16
    $region15: #{transformer_forward.34} parent=5 // pred_region
      // Predicated region
      $region17: #{transformer_forward.34} parent=15 // pred_check
        %p175 = pneg %p42
      $region18: #{transformer_forward.34} parent=15 // pred_check_branch
        %177 = sbr.rel (%p175) target = $region20
      $region19: #{transformer_forward.34} parent=15 // pred_region
        %p178 = scmp.lt.s32.totalorder %s17, 1
        %s179 = scalar_select %p178, %s17, 1
        %s180 = scalar_lea.vmem %s0, %s179
      $region20: #{transformer_forward.34} parent=15 // pred_fallthru
        _
      // Predicated region
      $region21: #{transformer_forward.34} parent=15 // pred_check
        %p181 = pneg %p70
      $region22: #{transformer_forward.34} parent=15 // pred_check_branch
        %183 = sbr.rel (%p181) target = $region24
      $region23: #{transformer_forward.34} parent=15 // pred_region
        %p184 = scmp.lt.s32.totalorder %s17, 1
        %s185 = scalar_select %p184, %s17, 1
        %p186 = scmp.lt.s32.totalorder %s18, 0
        %s187 = scalar_select %p186, %s18, 0
        %s188 = sadd.s32 %s187, %s185
        %s189 = smul.addr %s188, 4
        %s190 = scalar_lea.vmem %s1, %s189
      $region24: #{transformer_forward.34} parent=15 // pred_fallthru
        _
      // Predicated region
      $region25: #{transformer_forward.34} parent=15 // pred_check
        %p191 = pneg %p96
      $region26: #{transformer_forward.34} parent=15 // pred_check_branch
        %193 = sbr.rel (%p191) target = $region28
      $region27: #{transformer_forward.34} parent=15 // pred_region
        %p194 = scmp.lt.s32.totalorder %s17, 1
        %s195 = scalar_select %p194, %s17, 1
        %s196 = smul.addr %s195, 16
        %s197 = smul.addr %s196, 4
        %s198 = scalar_lea.vmem %s2, %s197
      $region28: #{transformer_forward.34} parent=15 // pred_fallthru
        _
      // Predicated region
      $region29: #{transformer_forward.34} parent=15 // pred_check
        %p199 = pneg %p122
      $region30: #{transformer_forward.34} parent=15 // pred_check_branch
        %201 = sbr.rel (%p199) target = $region32
      $region31: #{transformer_forward.34} parent=15 // pred_region
        %p202 = scmp.lt.s32.totalorder %s17, 1
        %s203 = scalar_select %p202, %s17, 1
        %s204 = smul.addr %s203, 16
        %s205 = smul.addr %s204, 4
        %s206 = scalar_lea.vmem %s3, %s205
      $region32: #{transformer_forward.34} parent=15 // pred_fallthru
        _
    $region16: #{transformer_forward.34} parent=5 // pred_fallthru
      _
    %p207 = scmp.le.s32.totalorder 1, %s10
    %p208 = scmp.lt.s32.totalorder %s10, 3
    %p209 = pnand %p207, %p208
    %p210 = pneg %p209
    // Predicated region
    $region33: #{transformer_forward.34} parent=5 // pred_check
      _
    $region34: #{transformer_forward.34} parent=5 // pred_check_branch
      %212 = sbr.rel (%p209) target = $region36
    $region35: #{transformer_forward.34} parent=5 // pred_region
      %s213 = ssub.s32 %s10, 1
      %p214 = scmp.lt.s32.totalorder %s19, 1
      %s215 = scalar_select %p214, %s19, 1
      %s216 = scalar_lea.vmem %s0, %s215
      %p217 = pneg %p48
      %p218 = pneg %p45
      %p219 = scmp.lt.s32.totalorder %s19, 1
      %s220 = scalar_select %p219, %s19, 1
      %p221 = scmp.lt.s32.totalorder %s20, 0
      %s222 = scalar_select %p221, %s20, 0
      %s223 = sadd.s32 %s222, %s220
      %s224 = smul.addr %s223, 4
      %s225 = scalar_lea.vmem %s1, %s224
      %p226 = pneg %p76
      %p227 = pneg %p73
      %p228 = scmp.lt.s32.totalorder %s19, 1
      %s229 = scalar_select %p228, %s19, 1
      %s230 = smul.addr %s229, 16
      %s231 = smul.addr %s230, 4
      %s232 = scalar_lea.vmem %s2, %s231
      %p233 = pneg %p102
      %p234 = pneg %p99
      %p235 = scmp.lt.s32.totalorder %s19, 1
      %s236 = scalar_select %p235, %s19, 1
      %s237 = smul.addr %s236, 16
      %s238 = smul.addr %s237, 4
      %s239 = scalar_lea.vmem %s3, %s238
      %p240 = pneg %p128
      %p241 = pneg %p125
      %p242 = pneg %p156
      %p243 = pneg %p153
      %p244 = scmp.lt.s32.totalorder %s19, 1
      %s245 = scalar_select %p244, %s19, 1
      %p246 = scmp.lt.s32.totalorder %s20, 0
      %s247 = scalar_select %p246, %s20, 0
      %s248 = sadd.s32 %s247, %s245
      %s249 = smul.addr %s248, 4
      %s250 = scalar_lea.vmem %s4, %s249
      %p251 = scmp.lt.s32.totalorder %s19, 1
      %s252 = scalar_select %p251, %s19, 1
      %s253 = scalar_lea.vmem %s0, %s252
      %p254 = scmp.lt.s32.totalorder %s19, 1
      %s255 = scalar_select %p254, %s19, 1
      %p256 = scmp.lt.s32.totalorder %s20, 0
      %s257 = scalar_select %p256, %s20, 0
      %s258 = sadd.s32 %s257, %s255
      %s259 = smul.addr %s258, 4
      %s260 = scalar_lea.vmem %s1, %s259
      %p261 = scmp.lt.s32.totalorder %s19, 1
      %s262 = scalar_select %p261, %s19, 1
      %s263 = smul.addr %s262, 16
      %s264 = smul.addr %s263, 4
      %s265 = scalar_lea.vmem %s2, %s264
      %p266 = scmp.lt.s32.totalorder %s19, 1
      %s267 = scalar_select %p266, %s19, 1
      %s268 = smul.addr %s267, 16
      %s269 = smul.addr %s268, 4
      %s270 = scalar_lea.vmem %s3, %s269
      %p271 = scmp.lt.s32.totalorder %s19, 1
      %s272 = scalar_select %p271, %s19, 1
      %p273 = scmp.lt.s32.totalorder %s20, 0
      %s274 = scalar_select %p273, %s20, 0
      %s275 = sadd.s32 %s274, %s272
      %s276 = smul.addr %s275, 4
      %s277 = scalar_lea.vmem %s4, %s276
      %v279 = vld [vmem:[%s260] sm:$0xf]
      %v280 = vunpack.c.l.bf16 %v279
      %v281 = vmul.f32 %v280, 0.35355338
      %v282 = vpack.c.bf16 %v281, %v281
      %v283 = vld [vmem:[%s265] sm:$0xf]
      %v284 = vld [vmem:[%s265 + $0x4] sm:$0xf]
      %v285 = vld [vmem:[%s265 + $0x8] sm:$0xf]
      %v286 = vld [vmem:[%s265 + $0xc] sm:$0xf]
      %v287 = vld [vmem:[%s265 + $0x10] sm:$0xf]
      %v288 = vld [vmem:[%s265 + $0x14] sm:$0xf]
      %v289 = vld [vmem:[%s265 + $0x18] sm:$0xf]
      %v290 = vld [vmem:[%s265 + $0x1c] sm:$0xf]
      %v291 = vld [vmem:[%s265 + $0x20] sm:$0xf]
      %v292 = vld [vmem:[%s265 + $0x24] sm:$0xf]
      %v293 = vld [vmem:[%s265 + $0x28] sm:$0xf]
      %v294 = vld [vmem:[%s265 + $0x2c] sm:$0xf]
      %v295 = vld [vmem:[%s265 + $0x30] sm:$0xf]
      %v296 = vld [vmem:[%s265 + $0x34] sm:$0xf]
      %v297 = vld [vmem:[%s265 + $0x38] sm:$0xf]
      %v298 = vld [vmem:[%s265 + $0x3c] sm:$0xf]
      %v299 = vld [vmem:[%s270] sm:$0xf]
      %v300 = vld [vmem:[%s270 + $0x4] sm:$0xf]
      %v301 = vld [vmem:[%s270 + $0x8] sm:$0xf]
      %v302 = vld [vmem:[%s270 + $0xc] sm:$0xf]
      %v303 = vld [vmem:[%s270 + $0x10] sm:$0xf]
      %v304 = vld [vmem:[%s270 + $0x14] sm:$0xf]
      %v305 = vld [vmem:[%s270 + $0x18] sm:$0xf]
      %v306 = vld [vmem:[%s270 + $0x1c] sm:$0xf]
      %v307 = vld [vmem:[%s270 + $0x20] sm:$0xf]
      %v308 = vld [vmem:[%s270 + $0x24] sm:$0xf]
      %v309 = vld [vmem:[%s270 + $0x28] sm:$0xf]
      %v310 = vld [vmem:[%s270 + $0x2c] sm:$0xf]
      %v311 = vld [vmem:[%s270 + $0x30] sm:$0xf]
      %v312 = vld [vmem:[%s270 + $0x34] sm:$0xf]
      %v313 = vld [vmem:[%s270 + $0x38] sm:$0xf]
      %v314 = vld [vmem:[%s270 + $0x3c] sm:$0xf]
      %v315 = vld [vmem:[%s253] sm:$0x1]
      %s316 = smul.u32 %s20, 8
      %v317 = vlaneseq
      %v318 = vshrl.u32 %v317, 7
      %v319 = vstv %s316
      %v320 = vadd.s32 %v318, %v319
      %v321 = vlaneseq
      %v322 = vand.u32 %v321, 127
      %vm323 = vcmp.le.s32.totalorder %v322, %v320
      %v324 = vsel %vm323, 0.0, -1e+09
      %v326 = vlaneseq
      %v327 = vshrl.u32 %v326, 7
      %v328 = vsub.s32 0, %v327
      %v329 = vrot.slane %v315, %v328
      %v331 = vadd.f32 %v329, %v324
      %v348 = vunpack.c.l.b16 %v283
      %v349 = vunpack.c.l.b16 %v284
      %v350 = vunpack.c.l.b16 %v285
      %v351 = vunpack.c.l.b16 %v286
      %v352 = vunpack.c.l.b16 %v287
      %v353 = vunpack.c.l.b16 %v288
      %v354 = vunpack.c.l.b16 %v289
      %v355 = vunpack.c.l.b16 %v290
      %v356 = vunpack.c.l.b16 %v291
      %v357 = vunpack.c.l.b16 %v292
      %v358 = vunpack.c.l.b16 %v293
      %v359 = vunpack.c.l.b16 %v294
      %v360 = vunpack.c.l.b16 %v295
      %v361 = vunpack.c.l.b16 %v296
      %v362 = vunpack.c.l.b16 %v297
      %v363 = vunpack.c.l.b16 %v298
      %v364 = vpack.c.b16 %v349, %v348
      %v365 = vpack.c.b16 %v351, %v350
      %v366 = vpack.c.b16 %v353, %v352
      %v367 = vpack.c.b16 %v355, %v354
      %v368 = vpack.c.b16 %v357, %v356
      %v369 = vpack.c.b16 %v359, %v358
      %v370 = vpack.c.b16 %v361, %v360
      %v371 = vpack.c.b16 %v363, %v362
      %vm372 = vcmask 64512
      %v374 = vsel %vm372, %v282, 0
      %v377 = vsel %vm372, %v364, 0
      %v380 = vsel %vm372, %v365, 0
      %v383 = vsel %vm372, %v366, 0
      %v386 = vsel %vm372, %v367, 0
      %v389 = vsel %vm372, %v368, 0
      %v392 = vsel %vm372, %v369, 0
      %v395 = vsel %vm372, %v370, 0
      %v398 = vsel %vm372, %v371, 0
      %400 = vmatprep.subr.bf16.mxu0 0
      %401 = vmatpush1.bf16.xpose.msra.mxu0 %v398
      %402 = vmatprep.subr.bf16.mxu0 0
      %403 = vmatpush1.bf16.xpose.msra.mxu0 %v395
      %404 = vmatprep.subr.bf16.mxu0 0
      %405 = vmatpush1.bf16.xpose.msra.mxu0 %v392
      %406 = vmatprep.subr.bf16.mxu0 0
      %407 = vmatpush1.bf16.xpose.msra.mxu0 %v389
      %408 = vmatprep.subr.bf16.mxu0 0
      %409 = vmatpush1.bf16.xpose.msra.mxu0 %v386
      %410 = vmatprep.subr.bf16.mxu0 0
      %411 = vmatpush1.bf16.xpose.msra.mxu0 %v383
      %412 = vmatprep.subr.bf16.mxu0 0
      %413 = vmatpush1.bf16.xpose.msra.mxu0 %v380
      %414 = vmatprep.subr.bf16.mxu0 0
      %415 = vmatpush1.bf16.xpose.msra.mxu0 %v377
      %416 = vmatprep.subr.bf16.mxu0 0
      %417 = vmatpush2.bf16.xpose.msra.mxu0 0
      %418 = vmatprep.subr.bf16.mxu0 0
      %419 = vmatpush2.bf16.xpose.msra.mxu0 0
      %420 = vmatprep.subr.bf16.mxu0 0
      %421 = vmatpush2.bf16.xpose.msra.mxu0 0
      %422 = vmatprep.subr.bf16.mxu0 0
      %423 = vmatpush2.bf16.xpose.msra.mxu0 0
      %424 = vmatprep.subr.bf16.mxu0 0
      %425 = vmatpush2.bf16.xpose.msra.mxu0 0
      %426 = vmatprep.subr.bf16.mxu0 0
      %427 = vmatpush2.bf16.xpose.msra.mxu0 0
      %428 = vmatprep.subr.bf16.mxu0 0
      %429 = vmatpush2.bf16.xpose.msra.mxu0 0
      %430 = vmatprep.subr.bf16.mxu0 0
      %431 = vmatpush2.bf16.xpose.msra.mxu0 0
      %432 = vmatprep.mubr.bf16.mxu0 0
      %433 = vmatmul.mubr.bf16.gmra.mxu0 %v374
      %v434 = vpop.f32.mrf.mxu0
      %v435 = vadd.f32 %v331, %v434
      %v436 = vpop.f32.mrf.mxu0
      %v437 = vpop.f32.mrf.mxu0
      %v438 = vpop.f32.mrf.mxu0
      %439 = vdwg.mxu0
      %440 = vmax.xlane.f32.xlu0 %v435
      %v441 = vpop.xlane.xlu0 %440
      %v442 = vsub.f32 %v435, %v441
      %v443 = vmul.f32 %v442, 1.442695
      %v444 = vpow.pop %v443
      %445 = vadd.xlane.f32.xlu0 %v444
      %v446 = vpop.xlane.xlu0 %445
      %v447 = vpack.c.bf16 %v444, %v444
      %v464 = vunpack.c.l.b16 %v299
      %v465 = vunpack.c.l.b16 %v300
      %v466 = vunpack.c.l.b16 %v301
      %v467 = vunpack.c.l.b16 %v302
      %v468 = vunpack.c.l.b16 %v303
      %v469 = vunpack.c.l.b16 %v304
      %v470 = vunpack.c.l.b16 %v305
      %v471 = vunpack.c.l.b16 %v306
      %v472 = vunpack.c.l.b16 %v307
      %v473 = vunpack.c.l.b16 %v308
      %v474 = vunpack.c.l.b16 %v309
      %v475 = vunpack.c.l.b16 %v310
      %v476 = vunpack.c.l.b16 %v311
      %v477 = vunpack.c.l.b16 %v312
      %v478 = vunpack.c.l.b16 %v313
      %v479 = vunpack.c.l.b16 %v314
      %v480 = vpack.c.b16 %v465, %v464
      %v481 = vpack.c.b16 %v467, %v466
      %v482 = vpack.c.b16 %v469, %v468
      %v483 = vpack.c.b16 %v471, %v470
      %v484 = vpack.c.b16 %v473, %v472
      %v485 = vpack.c.b16 %v475, %v474
      %v486 = vpack.c.b16 %v477, %v476
      %v487 = vpack.c.b16 %v479, %v478
      %496 = vmatprep.subr.bf16.mxu0 0
      %497 = vmatpush1.bf16.msra.mxu0 %v487
      %498 = vmatprep.subr.bf16.mxu0 0
      %499 = vmatpush1.bf16.msra.mxu0 %v486
      %500 = vmatprep.subr.bf16.mxu0 0
      %501 = vmatpush1.bf16.msra.mxu0 %v485
      %502 = vmatprep.subr.bf16.mxu0 0
      %503 = vmatpush1.bf16.msra.mxu0 %v484
      %504 = vmatprep.subr.bf16.mxu0 0
      %505 = vmatpush1.bf16.msra.mxu0 %v483
      %506 = vmatprep.subr.bf16.mxu0 0
      %507 = vmatpush1.bf16.msra.mxu0 %v482
      %508 = vmatprep.subr.bf16.mxu0 0
      %509 = vmatpush1.bf16.msra.mxu0 %v481
      %510 = vmatprep.subr.bf16.mxu0 0
      %511 = vmatpush1.bf16.msra.mxu0 %v480
      %512 = vmatprep.subr.bf16.mxu0 0
      %513 = vmatpush2.bf16.msra.mxu0 0
      %514 = vmatprep.subr.bf16.mxu0 0
      %515 = vmatpush2.bf16.msra.mxu0 0
      %516 = vmatprep.subr.bf16.mxu0 0
      %517 = vmatpush2.bf16.msra.mxu0 0
      %518 = vmatprep.subr.bf16.mxu0 0
      %519 = vmatpush2.bf16.msra.mxu0 0
      %520 = vmatprep.subr.bf16.mxu0 0
      %521 = vmatpush2.bf16.msra.mxu0 0
      %522 = vmatprep.subr.bf16.mxu0 0
      %523 = vmatpush2.bf16.msra.mxu0 0
      %524 = vmatprep.subr.bf16.mxu0 0
      %525 = vmatpush2.bf16.msra.mxu0 0
      %526 = vmatprep.subr.bf16.mxu0 0
      %527 = vmatpush2.bf16.msra.mxu0 0
      %528 = vmatprep.mubr.bf16.mxu0 0
      %529 = vmatmul.mubr.bf16.gmra.mxu0 %v447
      %v530 = vpop.f32.mrf.mxu0
      %v531 = vadd.f32 0.0, %v530
      %v532 = vpop.f32.mrf.mxu0
      %v533 = vpop.f32.mrf.mxu0
      %v534 = vpop.f32.mrf.mxu0
      %535 = vdwg.mxu0
      %v536 = vrcp.pop %v446
      %v537 = vmul.f32 %v531, %v536
      %539 = vrot.lane.b32.xlu0 %v282, 120
      %v540 = vpop.permute.xlu0 %539
      %541 = vrot.lane.b32.xlu0 %v364, 120
      %v542 = vpop.permute.xlu0 %541
      %543 = vrot.lane.b32.xlu0 %v365, 120
      %v544 = vpop.permute.xlu0 %543
      %545 = vrot.lane.b32.xlu0 %v366, 120
      %v546 = vpop.permute.xlu0 %545
      %547 = vrot.lane.b32.xlu0 %v367, 120
      %v548 = vpop.permute.xlu0 %547
      %549 = vrot.lane.b32.xlu0 %v368, 120
      %v550 = vpop.permute.xlu0 %549
      %551 = vrot.lane.b32.xlu0 %v369, 120
      %v552 = vpop.permute.xlu0 %551
      %553 = vrot.lane.b32.xlu0 %v370, 120
      %v554 = vpop.permute.xlu0 %553
      %555 = vrot.lane.b32.xlu0 %v371, 120
      %v556 = vpop.permute.xlu0 %555
      %v558 = vsel %vm372, %v540, 0
      %v561 = vsel %vm372, %v542, 0
      %v564 = vsel %vm372, %v544, 0
      %v567 = vsel %vm372, %v546, 0
      %v570 = vsel %vm372, %v548, 0
      %v573 = vsel %vm372, %v550, 0
      %v576 = vsel %vm372, %v552, 0
      %v579 = vsel %vm372, %v554, 0
      %v582 = vsel %vm372, %v556, 0
      %584 = vmatprep.subr.bf16.mxu0 0
      %585 = vmatpush1.bf16.xpose.msra.mxu0 %v582
      %586 = vmatprep.subr.bf16.mxu0 0
      %587 = vmatpush1.bf16.xpose.msra.mxu0 %v579
      %588 = vmatprep.subr.bf16.mxu0 0
      %589 = vmatpush1.bf16.xpose.msra.mxu0 %v576
      %590 = vmatprep.subr.bf16.mxu0 0
      %591 = vmatpush1.bf16.xpose.msra.mxu0 %v573
      %592 = vmatprep.subr.bf16.mxu0 0
      %593 = vmatpush1.bf16.xpose.msra.mxu0 %v570
      %594 = vmatprep.subr.bf16.mxu0 0
      %595 = vmatpush1.bf16.xpose.msra.mxu0 %v567
      %596 = vmatprep.subr.bf16.mxu0 0
      %597 = vmatpush1.bf16.xpose.msra.mxu0 %v564
      %598 = vmatprep.subr.bf16.mxu0 0
      %599 = vmatpush1.bf16.xpose.msra.mxu0 %v561
      %600 = vmatprep.subr.bf16.mxu0 0
      %601 = vmatpush2.bf16.xpose.msra.mxu0 0
      %602 = vmatprep.subr.bf16.mxu0 0
      %603 = vmatpush2.bf16.xpose.msra.mxu0 0
      %604 = vmatprep.subr.bf16.mxu0 0
      %605 = vmatpush2.bf16.xpose.msra.mxu0 0
      %606 = vmatprep.subr.bf16.mxu0 0
      %607 = vmatpush2.bf16.xpose.msra.mxu0 0
      %608 = vmatprep.subr.bf16.mxu0 0
      %609 = vmatpush2.bf16.xpose.msra.mxu0 0
      %610 = vmatprep.subr.bf16.mxu0 0
      %611 = vmatpush2.bf16.xpose.msra.mxu0 0
      %612 = vmatprep.subr.bf16.mxu0 0
      %613 = vmatpush2.bf16.xpose.msra.mxu0 0
      %614 = vmatprep.subr.bf16.mxu0 0
      %615 = vmatpush2.bf16.xpose.msra.mxu0 0
      %616 = vmatprep.mubr.bf16.mxu0 0
      %617 = vmatmul.mubr.bf16.gmra.mxu0 %v558
      %v618 = vpop.f32.mrf.mxu0
      %v619 = vadd.f32 %v331, %v618
      %v620 = vpop.f32.mrf.mxu0
      %v621 = vpop.f32.mrf.mxu0
      %v622 = vpop.f32.mrf.mxu0
      %623 = vdwg.mxu0
      %624 = vmax.xlane.f32.xlu0 %v619
      %v625 = vpop.xlane.xlu0 %624
      %v626 = vsub.f32 %v619, %v625
      %v627 = vmul.f32 %v626, 1.442695
      %v628 = vpow.pop %v627
      %629 = vadd.xlane.f32.xlu0 %v628
      %v630 = vpop.xlane.xlu0 %629
      %v631 = vpack.c.bf16 %v628, %v628
      %632 = vrot.lane.b32.xlu0 %v480, 120
      %v633 = vpop.permute.xlu0 %632
      %634 = vrot.lane.b32.xlu0 %v481, 120
      %v635 = vpop.permute.xlu0 %634
      %636 = vrot.lane.b32.xlu0 %v482, 120
      %v637 = vpop.permute.xlu0 %636
      %638 = vrot.lane.b32.xlu0 %v483, 120
      %v639 = vpop.permute.xlu0 %638
      %640 = vrot.lane.b32.xlu0 %v484, 120
      %v641 = vpop.permute.xlu0 %640
      %642 = vrot.lane.b32.xlu0 %v485, 120
      %v643 = vpop.permute.xlu0 %642
      %644 = vrot.lane.b32.xlu0 %v486, 120
      %v645 = vpop.permute.xlu0 %644
      %646 = vrot.lane.b32.xlu0 %v487, 120
      %v647 = vpop.permute.xlu0 %646
      %656 = vmatprep.subr.bf16.mxu0 0
      %657 = vmatpush1.bf16.msra.mxu0 %v647
      %658 = vmatprep.subr.bf16.mxu0 0
      %659 = vmatpush1.bf16.msra.mxu0 %v645
      %660 = vmatprep.subr.bf16.mxu0 0
      %661 = vmatpush1.bf16.msra.mxu0 %v643
      %662 = vmatprep.subr.bf16.mxu0 0
      %663 = vmatpush1.bf16.msra.mxu0 %v641
      %664 = vmatprep.subr.bf16.mxu0 0
      %665 = vmatpush1.bf16.msra.mxu0 %v639
      %666 = vmatprep.subr.bf16.mxu0 0
      %667 = vmatpush1.bf16.msra.mxu0 %v637
      %668 = vmatprep.subr.bf16.mxu0 0
      %669 = vmatpush1.bf16.msra.mxu0 %v635
      %670 = vmatprep.subr.bf16.mxu0 0
      %671 = vmatpush1.bf16.msra.mxu0 %v633
      %672 = vmatprep.subr.bf16.mxu0 0
      %673 = vmatpush2.bf16.msra.mxu0 0
      %674 = vmatprep.subr.bf16.mxu0 0
      %675 = vmatpush2.bf16.msra.mxu0 0
      %676 = vmatprep.subr.bf16.mxu0 0
      %677 = vmatpush2.bf16.msra.mxu0 0
      %678 = vmatprep.subr.bf16.mxu0 0
      %679 = vmatpush2.bf16.msra.mxu0 0
      %680 = vmatprep.subr.bf16.mxu0 0
      %681 = vmatpush2.bf16.msra.mxu0 0
      %682 = vmatprep.subr.bf16.mxu0 0
      %683 = vmatpush2.bf16.msra.mxu0 0
      %684 = vmatprep.subr.bf16.mxu0 0
      %685 = vmatpush2.bf16.msra.mxu0 0
      %686 = vmatprep.subr.bf16.mxu0 0
      %687 = vmatpush2.bf16.msra.mxu0 0
      %688 = vmatprep.mubr.bf16.mxu0 0
      %689 = vmatmul.mubr.bf16.gmra.mxu0 %v631
      %v690 = vpop.f32.mrf.mxu0
      %v691 = vadd.f32 0.0, %v690
      %v692 = vpop.f32.mrf.mxu0
      %v693 = vpop.f32.mrf.mxu0
      %v694 = vpop.f32.mrf.mxu0
      %695 = vdwg.mxu0
      %v696 = vrcp.pop %v630
      %v697 = vmul.f32 %v691, %v696
      %698 = vrot.lane.b32.xlu0 %v282, 112
      %v699 = vpop.permute.xlu0 %698
      %700 = vrot.lane.b32.xlu0 %v364, 112
      %v701 = vpop.permute.xlu0 %700
      %702 = vrot.lane.b32.xlu0 %v365, 112
      %v703 = vpop.permute.xlu0 %702
      %704 = vrot.lane.b32.xlu0 %v366, 112
      %v705 = vpop.permute.xlu0 %704
      %706 = vrot.lane.b32.xlu0 %v367, 112
      %v707 = vpop.permute.xlu0 %706
      %708 = vrot.lane.b32.xlu0 %v368, 112
      %v709 = vpop.permute.xlu0 %708
      %710 = vrot.lane.b32.xlu0 %v369, 112
      %v711 = vpop.permute.xlu0 %710
      %712 = vrot.lane.b32.xlu0 %v370, 112
      %v713 = vpop.permute.xlu0 %712
      %714 = vrot.lane.b32.xlu0 %v371, 112
      %v715 = vpop.permute.xlu0 %714
      %v717 = vsel %vm372, %v699, 0
      %v720 = vsel %vm372, %v701, 0
      %v723 = vsel %vm372, %v703, 0
      %v726 = vsel %vm372, %v705, 0
      %v729 = vsel %vm372, %v707, 0
      %v732 = vsel %vm372, %v709, 0
      %v735 = vsel %vm372, %v711, 0
      %v738 = vsel %vm372, %v713, 0
      %v741 = vsel %vm372, %v715, 0
      %743 = vmatprep.subr.bf16.mxu0 0
      %744 = vmatpush1.bf16.xpose.msra.mxu0 %v741
      %745 = vmatprep.subr.bf16.mxu0 0
      %746 = vmatpush1.bf16.xpose.msra.mxu0 %v738
      %747 = vmatprep.subr.bf16.mxu0 0
      %748 = vmatpush1.bf16.xpose.msra.mxu0 %v735
      %749 = vmatprep.subr.bf16.mxu0 0
      %750 = vmatpush1.bf16.xpose.msra.mxu0 %v732
      %751 = vmatprep.subr.bf16.mxu0 0
      %752 = vmatpush1.bf16.xpose.msra.mxu0 %v729
      %753 = vmatprep.subr.bf16.mxu0 0
      %754 = vmatpush1.bf16.xpose.msra.mxu0 %v726
      %755 = vmatprep.subr.bf16.mxu0 0
      %756 = vmatpush1.bf16.xpose.msra.mxu0 %v723
      %757 = vmatprep.subr.bf16.mxu0 0
      %758 = vmatpush1.bf16.xpose.msra.mxu0 %v720
      %759 = vmatprep.subr.bf16.mxu0 0
      %760 = vmatpush2.bf16.xpose.msra.mxu0 0
      %761 = vmatprep.subr.bf16.mxu0 0
      %762 = vmatpush2.bf16.xpose.msra.mxu0 0
      %763 = vmatprep.subr.bf16.mxu0 0
      %764 = vmatpush2.bf16.xpose.msra.mxu0 0
      %765 = vmatprep.subr.bf16.mxu0 0
      %766 = vmatpush2.bf16.xpose.msra.mxu0 0
      %767 = vmatprep.subr.bf16.mxu0 0
      %768 = vmatpush2.bf16.xpose.msra.mxu0 0
      %769 = vmatprep.subr.bf16.mxu0 0
      %770 = vmatpush2.bf16.xpose.msra.mxu0 0
      %771 = vmatprep.subr.bf16.mxu0 0
      %772 = vmatpush2.bf16.xpose.msra.mxu0 0
      %773 = vmatprep.subr.bf16.mxu0 0
      %774 = vmatpush2.bf16.xpose.msra.mxu0 0
      %775 = vmatprep.mubr.bf16.mxu0 0
      %776 = vmatmul.mubr.bf16.gmra.mxu0 %v717
      %v777 = vpop.f32.mrf.mxu0
      %v778 = vadd.f32 %v331, %v777
      %v779 = vpop.f32.mrf.mxu0
      %v780 = vpop.f32.mrf.mxu0
      %v781 = vpop.f32.mrf.mxu0
      %782 = vdwg.mxu0
      %783 = vmax.xlane.f32.xlu0 %v778
      %v784 = vpop.xlane.xlu0 %783
      %v785 = vsub.f32 %v778, %v784
      %v786 = vmul.f32 %v785, 1.442695
      %v787 = vpow.pop %v786
      %788 = vadd.xlane.f32.xlu0 %v787
      %v789 = vpop.xlane.xlu0 %788
      %v790 = vpack.c.bf16 %v787, %v787
      %791 = vrot.lane.b32.xlu0 %v480, 112
      %v792 = vpop.permute.xlu0 %791
      %793 = vrot.lane.b32.xlu0 %v481, 112
      %v794 = vpop.permute.xlu0 %793
      %795 = vrot.lane.b32.xlu0 %v482, 112
      %v796 = vpop.permute.xlu0 %795
      %797 = vrot.lane.b32.xlu0 %v483, 112
      %v798 = vpop.permute.xlu0 %797
      %799 = vrot.lane.b32.xlu0 %v484, 112
      %v800 = vpop.permute.xlu0 %799
      %801 = vrot.lane.b32.xlu0 %v485, 112
      %v802 = vpop.permute.xlu0 %801
      %803 = vrot.lane.b32.xlu0 %v486, 112
      %v804 = vpop.permute.xlu0 %803
      %805 = vrot.lane.b32.xlu0 %v487, 112
      %v806 = vpop.permute.xlu0 %805
      %815 = vmatprep.subr.bf16.mxu0 0
      %816 = vmatpush1.bf16.msra.mxu0 %v806
      %817 = vmatprep.subr.bf16.mxu0 0
      %818 = vmatpush1.bf16.msra.mxu0 %v804
      %819 = vmatprep.subr.bf16.mxu0 0
      %820 = vmatpush1.bf16.msra.mxu0 %v802
      %821 = vmatprep.subr.bf16.mxu0 0
      %822 = vmatpush1.bf16.msra.mxu0 %v800
      %823 = vmatprep.subr.bf16.mxu0 0
      %824 = vmatpush1.bf16.msra.mxu0 %v798
      %825 = vmatprep.subr.bf16.mxu0 0
      %826 = vmatpush1.bf16.msra.mxu0 %v796
      %827 = vmatprep.subr.bf16.mxu0 0
      %828 = vmatpush1.bf16.msra.mxu0 %v794
      %829 = vmatprep.subr.bf16.mxu0 0
      %830 = vmatpush1.bf16.msra.mxu0 %v792
      %831 = vmatprep.subr.bf16.mxu0 0
      %832 = vmatpush2.bf16.msra.mxu0 0
      %833 = vmatprep.subr.bf16.mxu0 0
      %834 = vmatpush2.bf16.msra.mxu0 0
      %835 = vmatprep.subr.bf16.mxu0 0
      %836 = vmatpush2.bf16.msra.mxu0 0
      %837 = vmatprep.subr.bf16.mxu0 0
      %838 = vmatpush2.bf16.msra.mxu0 0
      %839 = vmatprep.subr.bf16.mxu0 0
      %840 = vmatpush2.bf16.msra.mxu0 0
      %841 = vmatprep.subr.bf16.mxu0 0
      %842 = vmatpush2.bf16.msra.mxu0 0
      %843 = vmatprep.subr.bf16.mxu0 0
      %844 = vmatpush2.bf16.msra.mxu0 0
      %845 = vmatprep.subr.bf16.mxu0 0
      %846 = vmatpush2.bf16.msra.mxu0 0
      %847 = vmatprep.mubr.bf16.mxu0 0
      %848 = vmatmul.mubr.bf16.gmra.mxu0 %v790
      %v849 = vpop.f32.mrf.mxu0
      %v850 = vadd.f32 0.0, %v849
      %v851 = vpop.f32.mrf.mxu0
      %v852 = vpop.f32.mrf.mxu0
      %v853 = vpop.f32.mrf.mxu0
      %854 = vdwg.mxu0
      %v855 = vrcp.pop %v789
      %v856 = vmul.f32 %v850, %v855
      %857 = vrot.lane.b32.xlu0 %v282, 104
      %v858 = vpop.permute.xlu0 %857
      %859 = vrot.lane.b32.xlu0 %v364, 104
      %v860 = vpop.permute.xlu0 %859
      %861 = vrot.lane.b32.xlu0 %v365, 104
      %v862 = vpop.permute.xlu0 %861
      %863 = vrot.lane.b32.xlu0 %v366, 104
      %v864 = vpop.permute.xlu0 %863
      %865 = vrot.lane.b32.xlu0 %v367, 104
      %v866 = vpop.permute.xlu0 %865
      %867 = vrot.lane.b32.xlu0 %v368, 104
      %v868 = vpop.permute.xlu0 %867
      %869 = vrot.lane.b32.xlu0 %v369, 104
      %v870 = vpop.permute.xlu0 %869
      %871 = vrot.lane.b32.xlu0 %v370, 104
      %v872 = vpop.permute.xlu0 %871
      %873 = vrot.lane.b32.xlu0 %v371, 104
      %v874 = vpop.permute.xlu0 %873
      %v876 = vsel %vm372, %v858, 0
      %v879 = vsel %vm372, %v860, 0
      %v882 = vsel %vm372, %v862, 0
      %v885 = vsel %vm372, %v864, 0
      %v888 = vsel %vm372, %v866, 0
      %v891 = vsel %vm372, %v868, 0
      %v894 = vsel %vm372, %v870, 0
      %v897 = vsel %vm372, %v872, 0
      %v900 = vsel %vm372, %v874, 0
      %902 = vmatprep.subr.bf16.mxu0 0
      %903 = vmatpush1.bf16.xpose.msra.mxu0 %v900
      %904 = vmatprep.subr.bf16.mxu0 0
      %905 = vmatpush1.bf16.xpose.msra.mxu0 %v897
      %906 = vmatprep.subr.bf16.mxu0 0
      %907 = vmatpush1.bf16.xpose.msra.mxu0 %v894
      %908 = vmatprep.subr.bf16.mxu0 0
      %909 = vmatpush1.bf16.xpose.msra.mxu0 %v891
      %910 = vmatprep.subr.bf16.mxu0 0
      %911 = vmatpush1.bf16.xpose.msra.mxu0 %v888
      %912 = vmatprep.subr.bf16.mxu0 0
      %913 = vmatpush1.bf16.xpose.msra.mxu0 %v885
      %914 = vmatprep.subr.bf16.mxu0 0
      %915 = vmatpush1.bf16.xpose.msra.mxu0 %v882
      %916 = vmatprep.subr.bf16.mxu0 0
      %917 = vmatpush1.bf16.xpose.msra.mxu0 %v879
      %918 = vmatprep.subr.bf16.mxu0 0
      %919 = vmatpush2.bf16.xpose.msra.mxu0 0
      %920 = vmatprep.subr.bf16.mxu0 0
      %921 = vmatpush2.bf16.xpose.msra.mxu0 0
      %922 = vmatprep.subr.bf16.mxu0 0
      %923 = vmatpush2.bf16.xpose.msra.mxu0 0
      %924 = vmatprep.subr.bf16.mxu0 0
      %925 = vmatpush2.bf16.xpose.msra.mxu0 0
      %926 = vmatprep.subr.bf16.mxu0 0
      %927 = vmatpush2.bf16.xpose.msra.mxu0 0
      %928 = vmatprep.subr.bf16.mxu0 0
      %929 = vmatpush2.bf16.xpose.msra.mxu0 0
      %930 = vmatprep.subr.bf16.mxu0 0
      %931 = vmatpush2.bf16.xpose.msra.mxu0 0
      %932 = vmatprep.subr.bf16.mxu0 0
      %933 = vmatpush2.bf16.xpose.msra.mxu0 0
      %934 = vmatprep.mubr.bf16.mxu0 0
      %935 = vmatmul.mubr.bf16.gmra.mxu0 %v876
      %v936 = vpop.f32.mrf.mxu0
      %v937 = vadd.f32 %v331, %v936
      %v938 = vpop.f32.mrf.mxu0
      %v939 = vpop.f32.mrf.mxu0
      %v940 = vpop.f32.mrf.mxu0
      %941 = vdwg.mxu0
      %942 = vmax.xlane.f32.xlu0 %v937
      %v943 = vpop.xlane.xlu0 %942
      %v944 = vsub.f32 %v937, %v943
      %v945 = vmul.f32 %v944, 1.442695
      %v946 = vpow.pop %v945
      %947 = vadd.xlane.f32.xlu0 %v946
      %v948 = vpop.xlane.xlu0 %947
      %v949 = vpack.c.bf16 %v946, %v946
      %950 = vrot.lane.b32.xlu0 %v480, 104
      %v951 = vpop.permute.xlu0 %950
      %952 = vrot.lane.b32.xlu0 %v481, 104
      %v953 = vpop.permute.xlu0 %952
      %954 = vrot.lane.b32.xlu0 %v482, 104
      %v955 = vpop.permute.xlu0 %954
      %956 = vrot.lane.b32.xlu0 %v483, 104
      %v957 = vpop.permute.xlu0 %956
      %958 = vrot.lane.b32.xlu0 %v484, 104
      %v959 = vpop.permute.xlu0 %958
      %960 = vrot.lane.b32.xlu0 %v485, 104
      %v961 = vpop.permute.xlu0 %960
      %962 = vrot.lane.b32.xlu0 %v486, 104
      %v963 = vpop.permute.xlu0 %962
      %964 = vrot.lane.b32.xlu0 %v487, 104
      %v965 = vpop.permute.xlu0 %964
      %974 = vmatprep.subr.bf16.mxu0 0
      %975 = vmatpush1.bf16.msra.mxu0 %v965
      %976 = vmatprep.subr.bf16.mxu0 0
      %977 = vmatpush1.bf16.msra.mxu0 %v963
      %978 = vmatprep.subr.bf16.mxu0 0
      %979 = vmatpush1.bf16.msra.mxu0 %v961
      %980 = vmatprep.subr.bf16.mxu0 0
      %981 = vmatpush1.bf16.msra.mxu0 %v959
      %982 = vmatprep.subr.bf16.mxu0 0
      %983 = vmatpush1.bf16.msra.mxu0 %v957
      %984 = vmatprep.subr.bf16.mxu0 0
      %985 = vmatpush1.bf16.msra.mxu0 %v955
      %986 = vmatprep.subr.bf16.mxu0 0
      %987 = vmatpush1.bf16.msra.mxu0 %v953
      %988 = vmatprep.subr.bf16.mxu0 0
      %989 = vmatpush1.bf16.msra.mxu0 %v951
      %990 = vmatprep.subr.bf16.mxu0 0
      %991 = vmatpush2.bf16.msra.mxu0 0
      %992 = vmatprep.subr.bf16.mxu0 0
      %993 = vmatpush2.bf16.msra.mxu0 0
      %994 = vmatprep.subr.bf16.mxu0 0
      %995 = vmatpush2.bf16.msra.mxu0 0
      %996 = vmatprep.subr.bf16.mxu0 0
      %997 = vmatpush2.bf16.msra.mxu0 0
      %998 = vmatprep.subr.bf16.mxu0 0
      %999 = vmatpush2.bf16.msra.mxu0 0
      %1000 = vmatprep.subr.bf16.mxu0 0
      %1001 = vmatpush2.bf16.msra.mxu0 0
      %1002 = vmatprep.subr.bf16.mxu0 0
      %1003 = vmatpush2.bf16.msra.mxu0 0
      %1004 = vmatprep.subr.bf16.mxu0 0
      %1005 = vmatpush2.bf16.msra.mxu0 0
      %1006 = vmatprep.mubr.bf16.mxu0 0
      %1007 = vmatmul.mubr.bf16.gmra.mxu0 %v949
      %v1008 = vpop.f32.mrf.mxu0
      %v1009 = vadd.f32 0.0, %v1008
      %v1010 = vpop.f32.mrf.mxu0
      %v1011 = vpop.f32.mrf.mxu0
      %v1012 = vpop.f32.mrf.mxu0
      %1013 = vdwg.mxu0
      %v1014 = vrcp.pop %v948
      %v1015 = vmul.f32 %v1009, %v1014
      %1017 = vrot.lane.b32.xlu0 %v697, 8
      %v1018 = vpop.permute.xlu0 %1017
      %1021 = vrot.lane.b32.xlu0 %v856, 16
      %v1022 = vpop.permute.xlu0 %1021
      %1025 = vrot.lane.b32.xlu0 %v1015, 24
      %v1026 = vpop.permute.xlu0 %1025
      %v1028 = vsel %vm372, %v537, %v1018
      %vm1029 = vcmask 130048
      %v1030 = vsel %vm1029, %v1028, %v1022
      %vm1031 = vcmask 195584
      %v1032 = vsel %vm1031, %v1030, %v1026
      %v1033 = vpack.c.bf16 %v1032, %v1032
      %vm1034 = vcmask 257024
      %1035 = vst.msk [vmem:[%s277] sm:$0xf] %vm1034, %v1033
      %p1036 = scmp.lt.s32.totalorder %s19, 1
      %s1037 = scalar_select %p1036, %s19, 1
      %p1038 = scmp.lt.s32.totalorder %s20, 0
      %s1039 = scalar_select %p1038, %s20, 0
      %s1040 = sadd.s32 %s1039, %s1037
      %s1041 = smul.addr %s1040, 4
      %s1042 = scalar_lea.vmem %s4, %s1041
      // Predicated region
      $region37: #{transformer_forward.34} parent=35 // pred_check
        %p1043 = pneg %p153
      $region38: #{transformer_forward.34} parent=35 // pred_check_branch
        %1045 = sbr.rel (%p1043) target = $region40
      $region39: #{transformer_forward.34} parent=35 // pred_region
        _
      $region40: #{transformer_forward.34} parent=35 // pred_fallthru
        _
    $region36: #{transformer_forward.34} parent=5 // pred_fallthru
      _
    %p1046 = scmp.le.s32.totalorder 2, %s10
    // Predicated region
    $region41: #{transformer_forward.34} parent=5 // pred_check
      %p1047 = pneg %p1046
    $region42: #{transformer_forward.34} parent=5 // pred_check_branch
      %1049 = sbr.rel (%p1047) target = $region44
    $region43: #{transformer_forward.34} parent=5 // pred_region
      %s1050 = ssub.s32 %s10, 2
      // Predicated region
      $region45: #{transformer_forward.34} parent=43 // pred_check
        %p1051 = pneg %p159
      $region46: #{transformer_forward.34} parent=43 // pred_check_branch
        %1053 = sbr.rel (%p1051) target = $region48
      $region47: #{transformer_forward.34} parent=43 // pred_region
        %p1054 = scmp.lt.s32.totalorder %s21, 1
        %s1055 = scalar_select %p1054, %s21, 1
        %p1056 = scmp.lt.s32.totalorder %s22, 0
        %s1057 = scalar_select %p1056, %s22, 0
        %s1058 = sadd.s32 %s1057, %s1055
        %s1059 = smul.addr %s1058, 4
        %s1060 = scalar_lea.vmem %s4, %s1059
      $region48: #{transformer_forward.34} parent=43 // pred_fallthru
        _
    $region44: #{transformer_forward.34} parent=5 // pred_fallthru
      _
  $region6: #{transformer_forward.34} parent=0 // loop_footer
    %s14 = sadd.s32 1, %s10
  $region7: #{transformer_forward.34} parent=0 // loop_footer_branch
    %9 = sbr.rel target = $region3
  $region8: #{transformer_forward.34} parent=0 // loop_exit
    _

</llo_original>
